<compile_context>
chip_gen: v5e
topology: v5e:2x2
jax: 0.10.0
libtpu: 0.0.40
codegen_flags: <defaults>
</compile_context>

<pallas_src>
from functools import partial

import jax
import jax.numpy as jnp
from jax import lax
from jax.experimental import pallas as pl
from jax.experimental.pallas import tpu as pltpu


GATE_BLOCK = 128   # each GRU gate (r, z, n) gets its own 128-lane block
BATCH_PAD = 8      # batch padded to one full sublane group


def _round_up(n, m):
    return ((n + m - 1) // m) * m


# --------------------------------- kernel ------------------------------------

def _make_kernel(B, T, CP, H, O):
    """Build the fused two-layer GRU kernel for static (B, T, CP, H, O)."""
    GB = GATE_BLOCK
    BP = BATCH_PAD
    HP = _round_up(H, 8)

    def kernel(x_ref, wf_ref, wb_ref, out_ref, gi1_ref):
        # x_ref  : (T*BP, CP) f32    time-major, row t*BP + b (pad rows zero)
        # wf_ref : (CP+8, 3*GB) f32  rows [0:CP) = W1_ih^T (gate-padded),
        #          row CP+0 = b1_ih + b1_hh[r,z], row CP+1 = b1_hh[n only],
        #          row CP+2 = b2_ih + b2_hh[r,z], row CP+3 = b2_hh[n only]
        # wb_ref : (2*HP+OP, 3*GB) bf16  rows [0:H)=W1_hh^T, [HP:HP+H)=W2_ih^T,
        #          [2*HP:2*HP+O)=W2_hh^T (all gate-padded to 128-lane blocks)
        # out_ref: (B, O) f32        final hidden state of the layer-2 GRU
        # gi1_ref: (T*BP, 3*GB) f32  scratch for the hoisted layer-1 projection

        # ---- Hoisted, full-precision layer-1 input projection for ALL steps
        # ---- (b1_ih and the r/z blocks of b1_hh are pre-folded into the bias).
        gi1_ref[...] = (
            jnp.dot(x_ref[...], wf_ref[0:CP, :],
                    preferred_element_type=jnp.float32)
            + wf_ref[CP + 0:CP + 1, :])

        # Recurrent / chained weights: bf16 -> single-pass MXU matmuls.
        w1h = wb_ref[0:H, :]
        w2i = wb_ref[HP:HP + H, :]
        w2h = wb_ref[2 * HP:2 * HP + O, :]

        # Hoisted bias broadcasts (JAX does not CSE broadcast_in_dim, so the
        # unrolled loop would otherwise re-emit them every iteration).
        b1hn = jnp.broadcast_to(wf_ref[CP + 1:CP + 2, 2 * GB:3 * GB], (BP, GB))
        b2i = jnp.broadcast_to(wf_ref[CP + 2:CP + 3, :], (BP, 3 * GB))
        b2hn = jnp.broadcast_to(wf_ref[CP + 3:CP + 4, 2 * GB:3 * GB], (BP, GB))

        def gru_update(gi, gh, bhn, h, hidden):
            """PyTorch GRU cell with biases pre-folded.

            gi already contains b_ih + b_hh[r,z]; gh is the raw h @ W_hh
            matmul (no bias); bhn is the broadcast n-block of b_hh.  Every
            gate lives in its own 128-lane block, so all slices below are
            vreg-aligned (no lane shuffles)."""
            s = gi[:, 0:2 * GB] + gh[:, 0:2 * GB]
            r = jax.nn.sigmoid(s[:, 0:GB])
            z = jax.nn.sigmoid(s[:, GB:2 * GB])
            n = jnp.tanh(gi[:, 2 * GB:3 * GB] + r * (gh[:, 2 * GB:3 * GB] + bhn))
            z_h = z[:, :hidden]      # leading slices: lane offset 0
            n_h = n[:, :hidden]
            return (1.0 - z_h) * n_h + z_h * h

        h1 = jnp.zeros((BP, H), jnp.float32)
        h2 = jnp.zeros((BP, O), jnp.float32)

        # ---- Fully unrolled recurrence (T static & small): layer-1 of step
        # ---- t+1 overlaps layer-2 of step t; every gi1 slice starts on an
        # ---- 8-sublane boundary thanks to the batch padding.
        for t in range(T):
            gi1 = gi1_ref[t * BP:(t + 1) * BP, :]
            gh1 = jnp.dot(h1.astype(jnp.bfloat16), w1h,
                          preferred_element_type=jnp.float32)
            h1 = gru_update(gi1, gh1, b1hn, h1, H)

            gi2 = jnp.dot(h1.astype(jnp.bfloat16), w2i,
                          preferred_element_type=jnp.float32) + b2i
            gh2 = jnp.dot(h2.astype(jnp.bfloat16), w2h,
                          preferred_element_type=jnp.float32)
            h2 = gru_update(gi2, gh2, b2hn, h2, O)

        out_ref[...] = h2[:B, :]     # store only the real batch rows

    return kernel


# ----------------------------- wrapper / prep --------------------------------

def _pad_gate_cols(w_t, hidden, gb=GATE_BLOCK):
    """(in, 3*hidden) -> (in, 3*gb): gate g in columns [g*gb, g*gb + hidden)."""
    rows = w_t.shape[0]
    out = jnp.zeros((rows, 3 * gb), jnp.float32)
    for g in range(3):
        out = out.at[:, g * gb:g * gb + hidden].set(
            w_t[:, g * hidden:(g + 1) * hidden])
    return out


def _pad_gate_vec(b, hidden, gb=GATE_BLOCK):
    """(3*hidden,) -> (3*gb,): gate g in lanes [g*gb, g*gb + hidden)."""
    out = jnp.zeros((3 * gb,), jnp.float32)
    for g in range(3):
        out = out.at[g * gb:g * gb + hidden].set(b[g * hidden:(g + 1) * hidden])
    return out


def prepare_params(params):
    """One-time weight prep outside the per-call jitted path.

    Packs everything into two buffers:
      wf (f32): [W1_ih^T rows (padded to CP) ; 4 folded bias rows ; pad]
      wb (bf16): [W1_hh^T ; W2_ih^T ; W2_hh^T], sections at 8-aligned rows.
    The r/z lane-blocks of b_hh are folded into the corresponding ih bias;
    only the n-block of b_hh is kept separate (it sits inside the r* term).
    """
    GB = GATE_BLOCK
    H = params["w1_hh"].shape[1]
    O = params["w2_hh"].shape[1]
    C = params["w1_ih"].shape[1]
    CP, HP, OP = _round_up(C, 8), _round_up(H, 8), _round_up(O, 8)
    f32 = lambda a: jnp.asarray(a, jnp.float32)

    w1i = _pad_gate_cols(f32(params["w1_ih"]).T, H)   # (C, 3*GB)
    w1h = _pad_gate_cols(f32(params["w1_hh"]).T, H)   # (H, 3*GB)
    w2i = _pad_gate_cols(f32(params["w2_ih"]).T, O)   # (H, 3*GB)
    w2h = _pad_gate_cols(f32(params["w2_hh"]).T, O)   # (O, 3*GB)

    b1i = _pad_gate_vec(f32(params["b1_ih"]), H)
    b1h = _pad_gate_vec(f32(params["b1_hh"]), H)
    b2i = _pad_gate_vec(f32(params["b2_ih"]), O)
    b2h = _pad_gate_vec(f32(params["b2_hh"]), O)

    # Fold r/z blocks of b_hh into the ih bias; keep only the n block of b_hh.
    b1i_f = b1i.at[0:2 * GB].add(b1h[0:2 * GB])
    b1h_n = jnp.zeros_like(b1h).at[2 * GB:].set(b1h[2 * GB:])
    b2i_f = b2i.at[0:2 * GB].add(b2h[0:2 * GB])
    b2h_n = jnp.zeros_like(b2h).at[2 * GB:].set(b2h[2 * GB:])

    # f32 block: W1_ih^T + bias rows (the hoisted projection stays f32).
    wf = jnp.zeros((CP + 8, 3 * GB), jnp.float32)
    wf = wf.at[:C, :].set(w1i)
    wf = wf.at[CP + 0, :].set(b1i_f)
    wf = wf.at[CP + 1, :].set(b1h_n)
    wf = wf.at[CP + 2, :].set(b2i_f)
    wf = wf.at[CP + 3, :].set(b2h_n)

    # bf16 block: the three matmuls on the per-step dependent chain.
    wb = jnp.zeros((2 * HP + OP, 3 * GB), jnp.bfloat16)
    wb = wb.at[0:H, :].set(w1h.astype(jnp.bfloat16))
    wb = wb.at[HP:HP + H, :].set(w2i.astype(jnp.bfloat16))
    wb = wb.at[2 * HP:2 * HP + O, :].set(w2h.astype(jnp.bfloat16))

    return {"wf": wf, "wb": wb, "hidden": H, "out_code": O}


@partial(jax.jit, static_argnames=("hidden", "out_code"))
def simple_classifier_forward(x, wf_packed, wb_packed, *, hidden, out_code):
    """x: (B, C_in, T) float32 -> (B, out_code)."""
    B, C, T = x.shape
    assert B <= BATCH_PAD, "kernel assumes batch <= 8 (one sublane group)"
    BP = BATCH_PAD
    CP = _round_up(C, 8)
    assert wf_packed.shape == (CP + 8, 3 * GATE_BLOCK)

    # (B, C, T) -> (T, BP, CP) zero-padded -> (T*BP, CP); rows ordered t*BP + b.
    xt = jnp.transpose(x.astype(jnp.float32), (2, 0, 1))
    xt = jnp.pad(xt, ((0, 0), (0, BP - B), (0, CP - C)))
    x_pad = xt.reshape(T * BP, CP)

    kernel = _make_kernel(B, T, CP, hidden, out_code)
    vmem = pl.BlockSpec(memory_space=pltpu.MemorySpace.VMEM)

    return pl.pallas_call(
        kernel,
        out_shape=jax.ShapeDtypeStruct((B, out_code), jnp.float32),
        in_specs=[vmem, vmem, vmem],
        out_specs=vmem,
        scratch_shapes=[pltpu.VMEM((T * BP, 3 * GATE_BLOCK), jnp.float32)],
        compiler_params=pltpu.CompilerParams(
            # Allow XLA to fuse the tiny x permute/pad/reshape into the custom
            # call instead of paying a separate dispatch + HBM round-trip.
            allow_input_fusion=[True, False, False]),
    )(x_pad, wf_packed, wb_packed)


# -------------------------- init + pure-JAX reference ------------------------

def init_params(key, channels_in, channels_h, output_code):
    """Deterministic synthetic init matching nn.GRU parameter shapes."""
    ks = jax.random.split(key, 8)
    s1 = 1.0 / jnp.sqrt(channels_h)
    s2 = 1.0 / jnp.sqrt(output_code)
    u = lambda k, shape, s: jax.random.uniform(k, shape, jnp.float32, -s, s)
    return {
        "w1_ih": u(ks[0], (3 * channels_h, channels_in), s1),
        "w1_hh": u(ks[1], (3 * channels_h, channels_h), s1),
        "b1_ih": u(ks[2], (3 * channels_h,), s1),
        "b1_hh": u(ks[3], (3 * channels_h,), s1),
        "w2_ih": u(ks[4], (3 * output_code, channels_h), s2),
        "w2_hh": u(ks[5], (3 * output_code, output_code), s2),
        "b2_ih": u(ks[6], (3 * output_code,), s2),
        "b2_hh": u(ks[7], (3 * output_code,), s2),
    }


def _reference_forward(x, params):
    """Pure-JAX f32 reference with PyTorch GRU semantics."""
    x = jnp.transpose(x, (0, 2, 1))  # (B, T, C_in)

    def run_gru(x_seq, w_ih, w_hh, b_ih, b_hh):
        B = x_seq.shape[0]
        H = w_hh.shape[1]

        def step(h, x_t):
            gi = x_t @ w_ih.T + b_ih
            gh = h @ w_hh.T + b_hh
            r = jax.nn.sigmoid(gi[:, :H] + gh[:, :H])
            z = jax.nn.sigmoid(gi[:, H:2 * H] + gh[:, H:2 * H])
            n = jnp.tanh(gi[:, 2 * H:] + r * gh[:, 2 * H:])
            h_new = (1.0 - z) * n + z * h
            return h_new, h_new

        h0 = jnp.zeros((B, H), jnp.float32)
        h_last, outs = lax.scan(step, h0, jnp.transpose(x_seq, (1, 0, 2)))
        return jnp.transpose(outs, (1, 0, 2)), h_last

    seq1, _ = run_gru(x, params["w1_ih"], params["w1_hh"],
                      params["b1_ih"], params["b1_hh"])
    _, h2 = run_gru(seq1, params["w2_ih"], params["w2_hh"],
                    params["b2_ih"], params["b2_hh"])
    return h2


if __name__ == "__main__":
    B, C_IN, T = 2, 4, 8
    C_H, OUT_CODE = 32, 8

    key = jax.random.PRNGKey(0)
    k_x, k_p = jax.random.split(key)
    x = jax.random.normal(k_x, (B, C_IN, T), jnp.float32)
    params = init_params(k_p, C_IN, C_H, OUT_CODE)

    prep = prepare_params(params)          # one-time weight prep, outside jit
    out = simple_classifier_forward(x, prep["wf"], prep["wb"],
                                    hidden=prep["hidden"],
                                    out_code=prep["out_code"])
    out = jax.block_until_ready(out)
    assert out.shape == (B, OUT_CODE), out.shape

    # bf16 MXU operands on the recurrent matmuls (all gate/elementwise math and
    # the hoisted input projection stay f32) -> bf16-appropriate tolerance.
    ref = _reference_forward(x, params)
    assert jnp.allclose(out, ref, atol=5e-3, rtol=5e-3), (
        "mismatch vs JAX reference")

    print("KERNEL_OK")
</pallas_src>

<mosaic_0001>
module attributes {stable_mosaic.version = 11 : i64} {
  func.func @kernel(%arg0: memref<64x8xf32, #tpu.memory_space<vmem>>, %arg1: memref<16x384xf32, #tpu.memory_space<vmem>>, %arg2: memref<72x384xbf16, #tpu.memory_space<vmem>>, %arg3: memref<2x8xf32, #tpu.memory_space<vmem>>, %arg4: memref<64x384xf32, #tpu.memory_space<vmem>>) attributes {dimension_semantics = [], scalar_prefetch = 0 : i64, scratch_operands = 1 : i64, tpu.core_type = #tpu.core_type<tc>} {
    %c0 = arith.constant 0 : index
    %c0_0 = arith.constant 0 : index
    %0 = vector.load %arg0[%c0, %c0_0] : memref<64x8xf32, #tpu.memory_space<vmem>>, vector<64x8xf32>
    %c0_1 = arith.constant 0 : index
    %c0_2 = arith.constant 0 : index
    %1 = vector.load %arg1[%c0_1, %c0_2] : memref<16x384xf32, #tpu.memory_space<vmem>>, vector<8x384xf32>
    %cst = arith.constant dense<0.000000e+00> : vector<64x384xf32>
    %2 = tpu.matmul %0, %1, %cst {dimension_numbers = #tpu.dot_dimension_numbers<[1], [0], [0], [1], [0, 0, 1, 1], [], []>} : vector<64x8xf32>, vector<8x384xf32>, vector<64x384xf32> -> vector<64x384xf32>
    %c8 = arith.constant 8 : index
    %c0_3 = arith.constant 0 : index
    %3 = vector.load %arg1[%c8, %c0_3] : memref<16x384xf32, #tpu.memory_space<vmem>>, vector<1x384xf32>
    %4 = vector.broadcast %3 : vector<1x384xf32> to vector<64x384xf32>
    %5 = arith.addf %2, %4 : vector<64x384xf32>
    %c0_4 = arith.constant 0 : index
    %c0_5 = arith.constant 0 : index
    %6 = vector.load %arg4[%c0_4, %c0_5] : memref<64x384xf32, #tpu.memory_space<vmem>>, vector<64x384xf32>
    tpu.vector_store %arg4[%c0_4, %c0_5], %5 {strides = array<i32>} : memref<64x384xf32, #tpu.memory_space<vmem>>, vector<64x384xf32>,
    %c0_6 = arith.constant 0 : index
    %c0_7 = arith.constant 0 : index
    %7 = vector.load %arg2[%c0_6, %c0_7] : memref<72x384xbf16, #tpu.memory_space<vmem>>, vector<32x384xbf16>
    %c32 = arith.constant 32 : index
    %c0_8 = arith.constant 0 : index
    %8 = vector.load %arg2[%c32, %c0_8] : memref<72x384xbf16, #tpu.memory_space<vmem>>, vector<32x384xbf16>
    %c64 = arith.constant 64 : index
    %c0_9 = arith.constant 0 : index
    %9 = vector.load %arg2[%c64, %c0_9] : memref<72x384xbf16, #tpu.memory_space<vmem>>, vector<8x384xbf16>
    %c9 = arith.constant 9 : index
    %c256 = arith.constant 256 : index
    %10 = vector.load %arg1[%c9, %c256] : memref<16x384xf32, #tpu.memory_space<vmem>>, vector<1x128xf32>
    %11 = vector.shape_cast %10 : vector<1x128xf32> to vector<1x128xf32>
    %12 = vector.broadcast %11 : vector<1x128xf32> to vector<8x128xf32>
    %c10 = arith.constant 10 : index
    %c0_10 = arith.constant 0 : index
    %13 = vector.load %arg1[%c10, %c0_10] : memref<16x384xf32, #tpu.memory_space<vmem>>, vector<1x384xf32>
    %14 = vector.shape_cast %13 : vector<1x384xf32> to vector<1x384xf32>
    %15 = vector.broadcast %14 : vector<1x384xf32> to vector<8x384xf32>
    %c11 = arith.constant 11 : index
    %c256_11 = arith.constant 256 : index
    %16 = vector.load %arg1[%c11, %c256_11] : memref<16x384xf32, #tpu.memory_space<vmem>>, vector<1x128xf32>
    %17 = vector.shape_cast %16 : vector<1x128xf32> to vector<1x128xf32>
    %18 = vector.broadcast %17 : vector<1x128xf32> to vector<8x128xf32>
    %cst_12 = arith.constant 0.000000e+00 : f32
    %19 = vector.broadcast %cst_12 : f32 to vector<8x32xf32>
    %cst_13 = arith.constant 0.000000e+00 : f32
    %20 = vector.broadcast %cst_13 : f32 to vector<8x8xf32>
    %c0_14 = arith.constant 0 : index
    %c0_15 = arith.constant 0 : index
    %21 = vector.load %arg4[%c0_14, %c0_15] : memref<64x384xf32, #tpu.memory_space<vmem>>, vector<8x384xf32>
    %22 = arith.truncf %19 : vector<8x32xf32> to vector<8x32xbf16>
    %cst_16 = arith.constant dense<0.000000e+00> : vector<8x384xf32>
    %23 = tpu.matmul %22, %7, %cst_16 {dimension_numbers = #tpu.dot_dimension_numbers<[1], [0], [0], [1], [0, 0, 1, 1], [], []>} : vector<8x32xbf16>, vector<32x384xbf16>, vector<8x384xf32> -> vector<8x384xf32>
    %24 = vector.extract_strided_slice %21 {offsets = [0, 0], sizes = [8, 256], strides = [1, 1]} : vector<8x384xf32> to vector<8x256xf32>
    %25 = vector.extract_strided_slice %23 {offsets = [0, 0], sizes = [8, 256], strides = [1, 1]} : vector<8x384xf32> to vector<8x256xf32>
    %26 = arith.addf %24, %25 : vector<8x256xf32>
    %27 = vector.extract_strided_slice %26 {offsets = [0, 0], sizes = [8, 128], strides = [1, 1]} : vector<8x256xf32> to vector<8x128xf32>
    %28 = arith.negf %27 : vector<8x128xf32>
    %29 = math.exp %28 : vector<8x128xf32>
    %cst_17 = arith.constant 1.000000e+00 : f32
    %30 = vector.broadcast %cst_17 : f32 to vector<8x128xf32>
    %31 = arith.addf %30, %29 : vector<8x128xf32>
    %32 = arith.divf %30, %31 : vector<8x128xf32>
    %33 = vector.extract_strided_slice %26 {offsets = [0, 128], sizes = [8, 128], strides = [1, 1]} : vector<8x256xf32> to vector<8x128xf32>
    %34 = arith.negf %33 : vector<8x128xf32>
    %35 = math.exp %34 : vector<8x128xf32>
    %cst_18 = arith.constant 1.000000e+00 : f32
    %36 = vector.broadcast %cst_18 : f32 to vector<8x128xf32>
    %37 = arith.addf %36, %35 : vector<8x128xf32>
    %38 = arith.divf %36, %37 : vector<8x128xf32>
    %39 = vector.extract_strided_slice %21 {offsets = [0, 256], sizes = [8, 128], strides = [1, 1]} : vector<8x384xf32> to vector<8x128xf32>
    %40 = vector.extract_strided_slice %23 {offsets = [0, 256], sizes = [8, 128], strides = [1, 1]} : vector<8x384xf32> to vector<8x128xf32>
    %41 = arith.addf %40, %12 : vector<8x128xf32>
    %42 = arith.mulf %32, %41 : vector<8x128xf32>
    %43 = arith.addf %39, %42 : vector<8x128xf32>
    %44 = math.tanh %43 : vector<8x128xf32>
    %45 = vector.extract_strided_slice %38 {offsets = [0, 0], sizes = [8, 32], strides = [1, 1]} : vector<8x128xf32> to vector<8x32xf32>
    %46 = vector.extract_strided_slice %44 {offsets = [0, 0], sizes = [8, 32], strides = [1, 1]} : vector<8x128xf32> to vector<8x32xf32>
    %cst_19 = arith.constant 1.000000e+00 : f32
    %47 = vector.broadcast %cst_19 : f32 to vector<8x32xf32>
    %48 = arith.subf %47, %45 : vector<8x32xf32>
    %49 = arith.mulf %48, %46 : vector<8x32xf32>
    %50 = arith.mulf %45, %19 : vector<8x32xf32>
    %51 = arith.addf %49, %50 : vector<8x32xf32>
    %52 = arith.truncf %51 : vector<8x32xf32> to vector<8x32xbf16>
    %cst_20 = arith.constant dense<0.000000e+00> : vector<8x384xf32>
    %53 = tpu.matmul %52, %8, %cst_20 {dimension_numbers = #tpu.dot_dimension_numbers<[1], [0], [0], [1], [0, 0, 1, 1], [], []>} : vector<8x32xbf16>, vector<32x384xbf16>, vector<8x384xf32> -> vector<8x384xf32>
    %54 = arith.addf %53, %15 : vector<8x384xf32>
    %55 = arith.truncf %20 : vector<8x8xf32> to vector<8x8xbf16>
    %cst_21 = arith.constant dense<0.000000e+00> : vector<8x384xf32>
    %56 = tpu.matmul %55, %9, %cst_21 {dimension_numbers = #tpu.dot_dimension_numbers<[1], [0], [0], [1], [0, 0, 1, 1], [], []>} : vector<8x8xbf16>, vector<8x384xbf16>, vector<8x384xf32> -> vector<8x384xf32>
    %57 = vector.extract_strided_slice %54 {offsets = [0, 0], sizes = [8, 256], strides = [1, 1]} : vector<8x384xf32> to vector<8x256xf32>
    %58 = vector.extract_strided_slice %56 {offsets = [0, 0], sizes = [8, 256], strides = [1, 1]} : vector<8x384xf32> to vector<8x256xf32>
    %59 = arith.addf %57, %58 : vector<8x256xf32>
    %60 = vector.extract_strided_slice %59 {offsets = [0, 0], sizes = [8, 128], strides = [1, 1]} : vector<8x256xf32> to vector<8x128xf32>
    %61 = arith.negf %60 : vector<8x128xf32>
    %62 = math.exp %61 : vector<8x128xf32>
    %cst_22 = arith.constant 1.000000e+00 : f32
    %63 = vector.broadcast %cst_22 : f32 to vector<8x128xf32>
    %64 = arith.addf %63, %62 : vector<8x128xf32>
    %65 = arith.divf %63, %64 : vector<8x128xf32>
    %66 = vector.extract_strided_slice %59 {offsets = [0, 128], sizes = [8, 128], strides = [1, 1]} : vector<8x256xf32> to vector<8x128xf32>
    %67 = arith.negf %66 : vector<8x128xf32>
    %68 = math.exp %67 : vector<8x128xf32>
    %cst_23 = arith.constant 1.000000e+00 : f32
    %69 = vector.broadcast %cst_23 : f32 to vector<8x128xf32>
    %70 = arith.addf %69, %68 : vector<8x128xf32>
    %71 = arith.divf %69, %70 : vector<8x128xf32>
    %72 = vector.extract_strided_slice %54 {offsets = [0, 256], sizes = [8, 128], strides = [1, 1]} : vector<8x384xf32> to vector<8x128xf32>
    %73 = vector.extract_strided_slice %56 {offsets = [0, 256], sizes = [8, 128], strides = [1, 1]} : vector<8x384xf32> to vector<8x128xf32>
    %74 = arith.addf %73, %18 : vector<8x128xf32>
    %75 = arith.mulf %65, %74 : vector<8x128xf32>
    %76 = arith.addf %72, %75 : vector<8x128xf32>
    %77 = math.tanh %76 : vector<8x128xf32>
    %78 = vector.extract_strided_slice %71 {offsets = [0, 0], sizes = [8, 8], strides = [1, 1]} : vector<8x128xf32> to vector<8x8xf32>
    %79 = vector.extract_strided_slice %77 {offsets = [0, 0], sizes = [8, 8], strides = [1, 1]} : vector<8x128xf32> to vector<8x8xf32>
    %cst_24 = arith.constant 1.000000e+00 : f32
    %80 = vector.broadcast %cst_24 : f32 to vector<8x8xf32>
    %81 = arith.subf %80, %78 : vector<8x8xf32>
    %82 = arith.mulf %81, %79 : vector<8x8xf32>
    %83 = arith.mulf %78, %20 : vector<8x8xf32>
    %84 = arith.addf %82, %83 : vector<8x8xf32>
    %c8_25 = arith.constant 8 : index
    %c0_26 = arith.constant 0 : index
    %85 = vector.load %arg4[%c8_25, %c0_26] : memref<64x384xf32, #tpu.memory_space<vmem>>, vector<8x384xf32>
    %86 = arith.truncf %51 : vector<8x32xf32> to vector<8x32xbf16>
    %cst_27 = arith.constant dense<0.000000e+00> : vector<8x384xf32>
    %87 = tpu.matmul %86, %7, %cst_27 {dimension_numbers = #tpu.dot_dimension_numbers<[1], [0], [0], [1], [0, 0, 1, 1], [], []>} : vector<8x32xbf16>, vector<32x384xbf16>, vector<8x384xf32> -> vector<8x384xf32>
    %88 = vector.extract_strided_slice %85 {offsets = [0, 0], sizes = [8, 256], strides = [1, 1]} : vector<8x384xf32> to vector<8x256xf32>
    %89 = vector.extract_strided_slice %87 {offsets = [0, 0], sizes = [8, 256], strides = [1, 1]} : vector<8x384xf32> to vector<8x256xf32>
    %90 = arith.addf %88, %89 : vector<8x256xf32>
    %91 = vector.extract_strided_slice %90 {offsets = [0, 0], sizes = [8, 128], strides = [1, 1]} : vector<8x256xf32> to vector<8x128xf32>
    %92 = arith.negf %91 : vector<8x128xf32>
    %93 = math.exp %92 : vector<8x128xf32>
    %cst_28 = arith.constant 1.000000e+00 : f32
    %94 = vector.broadcast %cst_28 : f32 to vector<8x128xf32>
    %95 = arith.addf %94, %93 : vector<8x128xf32>
    %96 = arith.divf %94, %95 : vector<8x128xf32>
    %97 = vector.extract_strided_slice %90 {offsets = [0, 128], sizes = [8, 128], strides = [1, 1]} : vector<8x256xf32> to vector<8x128xf32>
    %98 = arith.negf %97 : vector<8x128xf32>
    %99 = math.exp %98 : vector<8x128xf32>
    %cst_29 = arith.constant 1.000000e+00 : f32
    %100 = vector.broadcast %cst_29 : f32 to vector<8x128xf32>
    %101 = arith.addf %100, %99 : vector<8x128xf32>
    %102 = arith.divf %100, %101 : vector<8x128xf32>
    %103 = vector.extract_strided_slice %85 {offsets = [0, 256], sizes = [8, 128], strides = [1, 1]} : vector<8x384xf32> to vector<8x128xf32>
    %104 = vector.extract_strided_slice %87 {offsets = [0, 256], sizes = [8, 128], strides = [1, 1]} : vector<8x384xf32> to vector<8x128xf32>
    %105 = arith.addf %104, %12 : vector<8x128xf32>
    %106 = arith.mulf %96, %105 : vector<8x128xf32>
    %107 = arith.addf %103, %106 : vector<8x128xf32>
    %108 = math.tanh %107 : vector<8x128xf32>
    %109 = vector.extract_strided_slice %102 {offsets = [0, 0], sizes = [8, 32], strides = [1, 1]} : vector<8x128xf32> to vector<8x32xf32>
    %110 = vector.extract_strided_slice %108 {offsets = [0, 0], sizes = [8, 32], strides = [1, 1]} : vector<8x128xf32> to vector<8x32xf32>
    %cst_30 = arith.constant 1.000000e+00 : f32
    %111 = vector.broadcast %cst_30 : f32 to vector<8x32xf32>
    %112 = arith.subf %111, %109 : vector<8x32xf32>
    %113 = arith.mulf %112, %110 : vector<8x32xf32>
    %114 = arith.mulf %109, %51 : vector<8x32xf32>
    %115 = arith.addf %113, %114 : vector<8x32xf32>
    %116 = arith.truncf %115 : vector<8x32xf32> to vector<8x32xbf16>
    %cst_31 = arith.constant dense<0.000000e+00> : vector<8x384xf32>
    %117 = tpu.matmul %116, %8, %cst_31 {dimension_numbers = #tpu.dot_dimension_numbers<[1], [0], [0], [1], [0, 0, 1, 1], [], []>} : vector<8x32xbf16>, vector<32x384xbf16>, vector<8x384xf32> -> vector<8x384xf32>
    %118 = arith.addf %117, %15 : vector<8x384xf32>
    %119 = arith.truncf %84 : vector<8x8xf32> to vector<8x8xbf16>
    %cst_32 = arith.constant dense<0.000000e+00> : vector<8x384xf32>
    %120 = tpu.matmul %119, %9, %cst_32 {dimension_numbers = #tpu.dot_dimension_numbers<[1], [0], [0], [1], [0, 0, 1, 1], [], []>} : vector<8x8xbf16>, vector<8x384xbf16>, vector<8x384xf32> -> vector<8x384xf32>
    %121 = vector.extract_strided_slice %118 {offsets = [0, 0], sizes = [8, 256], strides = [1, 1]} : vector<8x384xf32> to vector<8x256xf32>
    %122 = vector.extract_strided_slice %120 {offsets = [0, 0], sizes = [8, 256], strides = [1, 1]} : vector<8x384xf32> to vector<8x256xf32>
    %123 = arith.addf %121, %122 : vector<8x256xf32>
    %124 = vector.extract_strided_slice %123 {offsets = [0, 0], sizes = [8, 128], strides = [1, 1]} : vector<8x256xf32> to vector<8x128xf32>
    %125 = arith.negf %124 : vector<8x128xf32>
    %126 = math.exp %125 : vector<8x128xf32>
    %cst_33 = arith.constant 1.000000e+00 : f32
    %127 = vector.broadcast %cst_33 : f32 to vector<8x128xf32>
    %128 = arith.addf %127, %126 : vector<8x128xf32>
    %129 = arith.divf %127, %128 : vector<8x128xf32>
    %130 = vector.extract_strided_slice %123 {offsets = [0, 128], sizes = [8, 128], strides = [1, 1]} : vector<8x256xf32> to vector<8x128xf32>
    %131 = arith.negf %130 : vector<8x128xf32>
    %132 = math.exp %131 : vector<8x128xf32>
    %cst_34 = arith.constant 1.000000e+00 : f32
    %133 = vector.broadcast %cst_34 : f32 to vector<8x128xf32>
    %134 = arith.addf %133, %132 : vector<8x128xf32>
    %135 = arith.divf %133, %134 : vector<8x128xf32>
    %136 = vector.extract_strided_slice %118 {offsets = [0, 256], sizes = [8, 128], strides = [1, 1]} : vector<8x384xf32> to vector<8x128xf32>
    %137 = vector.extract_strided_slice %120 {offsets = [0, 256], sizes = [8, 128], strides = [1, 1]} : vector<8x384xf32> to vector<8x128xf32>
    %138 = arith.addf %137, %18 : vector<8x128xf32>
    %139 = arith.mulf %129, %138 : vector<8x128xf32>
    %140 = arith.addf %136, %139 : vector<8x128xf32>
    %141 = math.tanh %140 : vector<8x128xf32>
    %142 = vector.extract_strided_slice %135 {offsets = [0, 0], sizes = [8, 8], strides = [1, 1]} : vector<8x128xf32> to vector<8x8xf32>
    %143 = vector.extract_strided_slice %141 {offsets = [0, 0], sizes = [8, 8], strides = [1, 1]} : vector<8x128xf32> to vector<8x8xf32>
    %cst_35 = arith.constant 1.000000e+00 : f32
    %144 = vector.broadcast %cst_35 : f32 to vector<8x8xf32>
    %145 = arith.subf %144, %142 : vector<8x8xf32>
    %146 = arith.mulf %145, %143 : vector<8x8xf32>
    %147 = arith.mulf %142, %84 : vector<8x8xf32>
    %148 = arith.addf %146, %147 : vector<8x8xf32>
    %c16 = arith.constant 16 : index
    %c0_36 = arith.constant 0 : index
    %149 = vector.load %arg4[%c16, %c0_36] : memref<64x384xf32, #tpu.memory_space<vmem>>, vector<8x384xf32>
    %150 = arith.truncf %115 : vector<8x32xf32> to vector<8x32xbf16>
    %cst_37 = arith.constant dense<0.000000e+00> : vector<8x384xf32>
    %151 = tpu.matmul %150, %7, %cst_37 {dimension_numbers = #tpu.dot_dimension_numbers<[1], [0], [0], [1], [0, 0, 1, 1], [], []>} : vector<8x32xbf16>, vector<32x384xbf16>, vector<8x384xf32> -> vector<8x384xf32>
    %152 = vector.extract_strided_slice %149 {offsets = [0, 0], sizes = [8, 256], strides = [1, 1]} : vector<8x384xf32> to vector<8x256xf32>
    %153 = vector.extract_strided_slice %151 {offsets = [0, 0], sizes = [8, 256], strides = [1, 1]} : vector<8x384xf32> to vector<8x256xf32>
    %154 = arith.addf %152, %153 : vector<8x256xf32>
    %155 = vector.extract_strided_slice %154 {offsets = [0, 0], sizes = [8, 128], strides = [1, 1]} : vector<8x256xf32> to vector<8x128xf32>
    %156 = arith.negf %155 : vector<8x128xf32>
    %157 = math.exp %156 : vector<8x128xf32>
    %cst_38 = arith.constant 1.000000e+00 : f32
    %158 = vector.broadcast %cst_38 : f32 to vector<8x128xf32>
    %159 = arith.addf %158, %157 : vector<8x128xf32>
    %160 = arith.divf %158, %159 : vector<8x128xf32>
    %161 = vector.extract_strided_slice %154 {offsets = [0, 128], sizes = [8, 128], strides = [1, 1]} : vector<8x256xf32> to vector<8x128xf32>
    %162 = arith.negf %161 : vector<8x128xf32>
    %163 = math.exp %162 : vector<8x128xf32>
    %cst_39 = arith.constant 1.000000e+00 : f32
    %164 = vector.broadcast %cst_39 : f32 to vector<8x128xf32>
    %165 = arith.addf %164, %163 : vector<8x128xf32>
    %166 = arith.divf %164, %165 : vector<8x128xf32>
    %167 = vector.extract_strided_slice %149 {offsets = [0, 256], sizes = [8, 128], strides = [1, 1]} : vector<8x384xf32> to vector<8x128xf32>
    %168 = vector.extract_strided_slice %151 {offsets = [0, 256], sizes = [8, 128], strides = [1, 1]} : vector<8x384xf32> to vector<8x128xf32>
    %169 = arith.addf %168, %12 : vector<8x128xf32>
    %170 = arith.mulf %160, %169 : vector<8x128xf32>
    %171 = arith.addf %167, %170 : vector<8x128xf32>
    %172 = math.tanh %171 : vector<8x128xf32>
    %173 = vector.extract_strided_slice %166 {offsets = [0, 0], sizes = [8, 32], strides = [1, 1]} : vector<8x128xf32> to vector<8x32xf32>
    %174 = vector.extract_strided_slice %172 {offsets = [0, 0], sizes = [8, 32], strides = [1, 1]} : vector<8x128xf32> to vector<8x32xf32>
    %cst_40 = arith.constant 1.000000e+00 : f32
    %175 = vector.broadcast %cst_40 : f32 to vector<8x32xf32>
    %176 = arith.subf %175, %173 : vector<8x32xf32>
    %177 = arith.mulf %176, %174 : vector<8x32xf32>
    %178 = arith.mulf %173, %115 : vector<8x32xf32>
    %179 = arith.addf %177, %178 : vector<8x32xf32>
    %180 = arith.truncf %179 : vector<8x32xf32> to vector<8x32xbf16>
    %cst_41 = arith.constant dense<0.000000e+00> : vector<8x384xf32>
    %181 = tpu.matmul %180, %8, %cst_41 {dimension_numbers = #tpu.dot_dimension_numbers<[1], [0], [0], [1], [0, 0, 1, 1], [], []>} : vector<8x32xbf16>, vector<32x384xbf16>, vector<8x384xf32> -> vector<8x384xf32>
    %182 = arith.addf %181, %15 : vector<8x384xf32>
    %183 = arith.truncf %148 : vector<8x8xf32> to vector<8x8xbf16>
    %cst_42 = arith.constant dense<0.000000e+00> : vector<8x384xf32>
    %184 = tpu.matmul %183, %9, %cst_42 {dimension_numbers = #tpu.dot_dimension_numbers<[1], [0], [0], [1], [0, 0, 1, 1], [], []>} : vector<8x8xbf16>, vector<8x384xbf16>, vector<8x384xf32> -> vector<8x384xf32>
    %185 = vector.extract_strided_slice %182 {offsets = [0, 0], sizes = [8, 256], strides = [1, 1]} : vector<8x384xf32> to vector<8x256xf32>
    %186 = vector.extract_strided_slice %184 {offsets = [0, 0], sizes = [8, 256], strides = [1, 1]} : vector<8x384xf32> to vector<8x256xf32>
    %187 = arith.addf %185, %186 : vector<8x256xf32>
    %188 = vector.extract_strided_slice %187 {offsets = [0, 0], sizes = [8, 128], strides = [1, 1]} : vector<8x256xf32> to vector<8x128xf32>
    %189 = arith.negf %188 : vector<8x128xf32>
    %190 = math.exp %189 : vector<8x128xf32>
    %cst_43 = arith.constant 1.000000e+00 : f32
    %191 = vector.broadcast %cst_43 : f32 to vector<8x128xf32>
    %192 = arith.addf %191, %190 : vector<8x128xf32>
    %193 = arith.divf %191, %192 : vector<8x128xf32>
    %194 = vector.extract_strided_slice %187 {offsets = [0, 128], sizes = [8, 128], strides = [1, 1]} : vector<8x256xf32> to vector<8x128xf32>
    %195 = arith.negf %194 : vector<8x128xf32>
    %196 = math.exp %195 : vector<8x128xf32>
    %cst_44 = arith.constant 1.000000e+00 : f32
    %197 = vector.broadcast %cst_44 : f32 to vector<8x128xf32>
    %198 = arith.addf %197, %196 : vector<8x128xf32>
    %199 = arith.divf %197, %198 : vector<8x128xf32>
    %200 = vector.extract_strided_slice %182 {offsets = [0, 256], sizes = [8, 128], strides = [1, 1]} : vector<8x384xf32> to vector<8x128xf32>
    %201 = vector.extract_strided_slice %184 {offsets = [0, 256], sizes = [8, 128], strides = [1, 1]} : vector<8x384xf32> to vector<8x128xf32>
    %202 = arith.addf %201, %18 : vector<8x128xf32>
    %203 = arith.mulf %193, %202 : vector<8x128xf32>
    %204 = arith.addf %200, %203 : vector<8x128xf32>
    %205 = math.tanh %204 : vector<8x128xf32>
    %206 = vector.extract_strided_slice %199 {offsets = [0, 0], sizes = [8, 8], strides = [1, 1]} : vector<8x128xf32> to vector<8x8xf32>
    %207 = vector.extract_strided_slice %205 {offsets = [0, 0], sizes = [8, 8], strides = [1, 1]} : vector<8x128xf32> to vector<8x8xf32>
    %cst_45 = arith.constant 1.000000e+00 : f32
    %208 = vector.broadcast %cst_45 : f32 to vector<8x8xf32>
    %209 = arith.subf %208, %206 : vector<8x8xf32>
    %210 = arith.mulf %209, %207 : vector<8x8xf32>
    %211 = arith.mulf %206, %148 : vector<8x8xf32>
    %212 = arith.addf %210, %211 : vector<8x8xf32>
    %c24 = arith.constant 24 : index
    %c0_46 = arith.constant 0 : index
    %213 = vector.load %arg4[%c24, %c0_46] : memref<64x384xf32, #tpu.memory_space<vmem>>, vector<8x384xf32>
    %214 = arith.truncf %179 : vector<8x32xf32> to vector<8x32xbf16>
    %cst_47 = arith.constant dense<0.000000e+00> : vector<8x384xf32>
    %215 = tpu.matmul %214, %7, %cst_47 {dimension_numbers = #tpu.dot_dimension_numbers<[1], [0], [0], [1], [0, 0, 1, 1], [], []>} : vector<8x32xbf16>, vector<32x384xbf16>, vector<8x384xf32> -> vector<8x384xf32>
    %216 = vector.extract_strided_slice %213 {offsets = [0, 0], sizes = [8, 256], strides = [1, 1]} : vector<8x384xf32> to vector<8x256xf32>
    %217 = vector.extract_strided_slice %215 {offsets = [0, 0], sizes = [8, 256], strides = [1, 1]} : vector<8x384xf32> to vector<8x256xf32>
    %218 = arith.addf %216, %217 : vector<8x256xf32>
    %219 = vector.extract_strided_slice %218 {offsets = [0, 0], sizes = [8, 128], strides = [1, 1]} : vector<8x256xf32> to vector<8x128xf32>
    %220 = arith.negf %219 : vector<8x128xf32>
    %221 = math.exp %220 : vector<8x128xf32>
    %cst_48 = arith.constant 1.000000e+00 : f32
    %222 = vector.broadcast %cst_48 : f32 to vector<8x128xf32>
    %223 = arith.addf %222, %221 : vector<8x128xf32>
    %224 = arith.divf %222, %223 : vector<8x128xf32>
    %225 = vector.extract_strided_slice %218 {offsets = [0, 128], sizes = [8, 128], strides = [1, 1]} : vector<8x256xf32> to vector<8x128xf32>
    %226 = arith.negf %225 : vector<8x128xf32>
    %227 = math.exp %226 : vector<8x128xf32>
    %cst_49 = arith.constant 1.000000e+00 : f32
    %228 = vector.broadcast %cst_49 : f32 to vector<8x128xf32>
    %229 = arith.addf %228, %227 : vector<8x128xf32>
    %230 = arith.divf %228, %229 : vector<8x128xf32>
    %231 = vector.extract_strided_slice %213 {offsets = [0, 256], sizes = [8, 128], strides = [1, 1]} : vector<8x384xf32> to vector<8x128xf32>
    %232 = vector.extract_strided_slice %215 {offsets = [0, 256], sizes = [8, 128], strides = [1, 1]} : vector<8x384xf32> to vector<8x128xf32>
    %233 = arith.addf %232, %12 : vector<8x128xf32>
    %234 = arith.mulf %224, %233 : vector<8x128xf32>
    %235 = arith.addf %231, %234 : vector<8x128xf32>
    %236 = math.tanh %235 : vector<8x128xf32>
    %237 = vector.extract_strided_slice %230 {offsets = [0, 0], sizes = [8, 32], strides = [1, 1]} : vector<8x128xf32> to vector<8x32xf32>
    %238 = vector.extract_strided_slice %236 {offsets = [0, 0], sizes = [8, 32], strides = [1, 1]} : vector<8x128xf32> to vector<8x32xf32>
    %cst_50 = arith.constant 1.000000e+00 : f32
    %239 = vector.broadcast %cst_50 : f32 to vector<8x32xf32>
    %240 = arith.subf %239, %237 : vector<8x32xf32>
    %241 = arith.mulf %240, %238 : vector<8x32xf32>
    %242 = arith.mulf %237, %179 : vector<8x32xf32>
    %243 = arith.addf %241, %242 : vector<8x32xf32>
    %244 = arith.truncf %243 : vector<8x32xf32> to vector<8x32xbf16>
    %cst_51 = arith.constant dense<0.000000e+00> : vector<8x384xf32>
    %245 = tpu.matmul %244, %8, %cst_51 {dimension_numbers = #tpu.dot_dimension_numbers<[1], [0], [0], [1], [0, 0, 1, 1], [], []>} : vector<8x32xbf16>, vector<32x384xbf16>, vector<8x384xf32> -> vector<8x384xf32>
    %246 = arith.addf %245, %15 : vector<8x384xf32>
    %247 = arith.truncf %212 : vector<8x8xf32> to vector<8x8xbf16>
    %cst_52 = arith.constant dense<0.000000e+00> : vector<8x384xf32>
    %248 = tpu.matmul %247, %9, %cst_52 {dimension_numbers = #tpu.dot_dimension_numbers<[1], [0], [0], [1], [0, 0, 1, 1], [], []>} : vector<8x8xbf16>, vector<8x384xbf16>, vector<8x384xf32> -> vector<8x384xf32>
    %249 = vector.extract_strided_slice %246 {offsets = [0, 0], sizes = [8, 256], strides = [1, 1]} : vector<8x384xf32> to vector<8x256xf32>
    %250 = vector.extract_strided_slice %248 {offsets = [0, 0], sizes = [8, 256], strides = [1, 1]} : vector<8x384xf32> to vector<8x256xf32>
    %251 = arith.addf %249, %250 : vector<8x256xf32>
    %252 = vector.extract_strided_slice %251 {offsets = [0, 0], sizes = [8, 128], strides = [1, 1]} : vector<8x256xf32> to vector<8x128xf32>
    %253 = arith.negf %252 : vector<8x128xf32>
    %254 = math.exp %253 : vector<8x128xf32>
    %cst_53 = arith.constant 1.000000e+00 : f32
    %255 = vector.broadcast %cst_53 : f32 to vector<8x128xf32>
    %256 = arith.addf %255, %254 : vector<8x128xf32>
    %257 = arith.divf %255, %256 : vector<8x128xf32>
    %258 = vector.extract_strided_slice %251 {offsets = [0, 128], sizes = [8, 128], strides = [1, 1]} : vector<8x256xf32> to vector<8x128xf32>
    %259 = arith.negf %258 : vector<8x128xf32>
    %260 = math.exp %259 : vector<8x128xf32>
    %cst_54 = arith.constant 1.000000e+00 : f32
    %261 = vector.broadcast %cst_54 : f32 to vector<8x128xf32>
    %262 = arith.addf %261, %260 : vector<8x128xf32>
    %263 = arith.divf %261, %262 : vector<8x128xf32>
    %264 = vector.extract_strided_slice %246 {offsets = [0, 256], sizes = [8, 128], strides = [1, 1]} : vector<8x384xf32> to vector<8x128xf32>
    %265 = vector.extract_strided_slice %248 {offsets = [0, 256], sizes = [8, 128], strides = [1, 1]} : vector<8x384xf32> to vector<8x128xf32>
    %266 = arith.addf %265, %18 : vector<8x128xf32>
    %267 = arith.mulf %257, %266 : vector<8x128xf32>
    %268 = arith.addf %264, %267 : vector<8x128xf32>
    %269 = math.tanh %268 : vector<8x128xf32>
    %270 = vector.extract_strided_slice %263 {offsets = [0, 0], sizes = [8, 8], strides = [1, 1]} : vector<8x128xf32> to vector<8x8xf32>
    %271 = vector.extract_strided_slice %269 {offsets = [0, 0], sizes = [8, 8], strides = [1, 1]} : vector<8x128xf32> to vector<8x8xf32>
    %cst_55 = arith.constant 1.000000e+00 : f32
    %272 = vector.broadcast %cst_55 : f32 to vector<8x8xf32>
    %273 = arith.subf %272, %270 : vector<8x8xf32>
    %274 = arith.mulf %273, %271 : vector<8x8xf32>
    %275 = arith.mulf %270, %212 : vector<8x8xf32>
    %276 = arith.addf %274, %275 : vector<8x8xf32>
    %c32_56 = arith.constant 32 : index
    %c0_57 = arith.constant 0 : index
    %277 = vector.load %arg4[%c32_56, %c0_57] : memref<64x384xf32, #tpu.memory_space<vmem>>, vector<8x384xf32>
    %278 = arith.truncf %243 : vector<8x32xf32> to vector<8x32xbf16>
    %cst_58 = arith.constant dense<0.000000e+00> : vector<8x384xf32>
    %279 = tpu.matmul %278, %7, %cst_58 {dimension_numbers = #tpu.dot_dimension_numbers<[1], [0], [0], [1], [0, 0, 1, 1], [], []>} : vector<8x32xbf16>, vector<32x384xbf16>, vector<8x384xf32> -> vector<8x384xf32>
    %280 = vector.extract_strided_slice %277 {offsets = [0, 0], sizes = [8, 256], strides = [1, 1]} : vector<8x384xf32> to vector<8x256xf32>
    %281 = vector.extract_strided_slice %279 {offsets = [0, 0], sizes = [8, 256], strides = [1, 1]} : vector<8x384xf32> to vector<8x256xf32>
    %282 = arith.addf %280, %281 : vector<8x256xf32>
    %283 = vector.extract_strided_slice %282 {offsets = [0, 0], sizes = [8, 128], strides = [1, 1]} : vector<8x256xf32> to vector<8x128xf32>
    %284 = arith.negf %283 : vector<8x128xf32>
    %285 = math.exp %284 : vector<8x128xf32>
    %cst_59 = arith.constant 1.000000e+00 : f32
    %286 = vector.broadcast %cst_59 : f32 to vector<8x128xf32>
    %287 = arith.addf %286, %285 : vector<8x128xf32>
    %288 = arith.divf %286, %287 : vector<8x128xf32>
    %289 = vector.extract_strided_slice %282 {offsets = [0, 128], sizes = [8, 128], strides = [1, 1]} : vector<8x256xf32> to vector<8x128xf32>
    %290 = arith.negf %289 : vector<8x128xf32>
    %291 = math.exp %290 : vector<8x128xf32>
    %cst_60 = arith.constant 1.000000e+00 : f32
    %292 = vector.broadcast %cst_60 : f32 to vector<8x128xf32>
    %293 = arith.addf %292, %291 : vector<8x128xf32>
    %294 = arith.divf %292, %293 : vector<8x128xf32>
    %295 = vector.extract_strided_slice %277 {offsets = [0, 256], sizes = [8, 128], strides = [1, 1]} : vector<8x384xf32> to vector<8x128xf32>
    %296 = vector.extract_strided_slice %279 {offsets = [0, 256], sizes = [8, 128], strides = [1, 1]} : vector<8x384xf32> to vector<8x128xf32>
    %297 = arith.addf %296, %12 : vector<8x128xf32>
    %298 = arith.mulf %288, %297 : vector<8x128xf32>
    %299 = arith.addf %295, %298 : vector<8x128xf32>
    %300 = math.tanh %299 : vector<8x128xf32>
    %301 = vector.extract_strided_slice %294 {offsets = [0, 0], sizes = [8, 32], strides = [1, 1]} : vector<8x128xf32> to vector<8x32xf32>
    %302 = vector.extract_strided_slice %300 {offsets = [0, 0], sizes = [8, 32], strides = [1, 1]} : vector<8x128xf32> to vector<8x32xf32>
    %cst_61 = arith.constant 1.000000e+00 : f32
    %303 = vector.broadcast %cst_61 : f32 to vector<8x32xf32>
    %304 = arith.subf %303, %301 : vector<8x32xf32>
    %305 = arith.mulf %304, %302 : vector<8x32xf32>
    %306 = arith.mulf %301, %243 : vector<8x32xf32>
    %307 = arith.addf %305, %306 : vector<8x32xf32>
    %308 = arith.truncf %307 : vector<8x32xf32> to vector<8x32xbf16>
    %cst_62 = arith.constant dense<0.000000e+00> : vector<8x384xf32>
    %309 = tpu.matmul %308, %8, %cst_62 {dimension_numbers = #tpu.dot_dimension_numbers<[1], [0], [0], [1], [0, 0, 1, 1], [], []>} : vector<8x32xbf16>, vector<32x384xbf16>, vector<8x384xf32> -> vector<8x384xf32>
    %310 = arith.addf %309, %15 : vector<8x384xf32>
    %311 = arith.truncf %276 : vector<8x8xf32> to vector<8x8xbf16>
    %cst_63 = arith.constant dense<0.000000e+00> : vector<8x384xf32>
    %312 = tpu.matmul %311, %9, %cst_63 {dimension_numbers = #tpu.dot_dimension_numbers<[1], [0], [0], [1], [0, 0, 1, 1], [], []>} : vector<8x8xbf16>, vector<8x384xbf16>, vector<8x384xf32> -> vector<8x384xf32>
    %313 = vector.extract_strided_slice %310 {offsets = [0, 0], sizes = [8, 256], strides = [1, 1]} : vector<8x384xf32> to vector<8x256xf32>
    %314 = vector.extract_strided_slice %312 {offsets = [0, 0], sizes = [8, 256], strides = [1, 1]} : vector<8x384xf32> to vector<8x256xf32>
    %315 = arith.addf %313, %314 : vector<8x256xf32>
    %316 = vector.extract_strided_slice %315 {offsets = [0, 0], sizes = [8, 128], strides = [1, 1]} : vector<8x256xf32> to vector<8x128xf32>
    %317 = arith.negf %316 : vector<8x128xf32>
    %318 = math.exp %317 : vector<8x128xf32>
    %cst_64 = arith.constant 1.000000e+00 : f32
    %319 = vector.broadcast %cst_64 : f32 to vector<8x128xf32>
    %320 = arith.addf %319, %318 : vector<8x128xf32>
    %321 = arith.divf %319, %320 : vector<8x128xf32>
    %322 = vector.extract_strided_slice %315 {offsets = [0, 128], sizes = [8, 128], strides = [1, 1]} : vector<8x256xf32> to vector<8x128xf32>
    %323 = arith.negf %322 : vector<8x128xf32>
    %324 = math.exp %323 : vector<8x128xf32>
    %cst_65 = arith.constant 1.000000e+00 : f32
    %325 = vector.broadcast %cst_65 : f32 to vector<8x128xf32>
    %326 = arith.addf %325, %324 : vector<8x128xf32>
    %327 = arith.divf %325, %326 : vector<8x128xf32>
    %328 = vector.extract_strided_slice %310 {offsets = [0, 256], sizes = [8, 128], strides = [1, 1]} : vector<8x384xf32> to vector<8x128xf32>
    %329 = vector.extract_strided_slice %312 {offsets = [0, 256], sizes = [8, 128], strides = [1, 1]} : vector<8x384xf32> to vector<8x128xf32>
    %330 = arith.addf %329, %18 : vector<8x128xf32>
    %331 = arith.mulf %321, %330 : vector<8x128xf32>
    %332 = arith.addf %328, %331 : vector<8x128xf32>
    %333 = math.tanh %332 : vector<8x128xf32>
    %334 = vector.extract_strided_slice %327 {offsets = [0, 0], sizes = [8, 8], strides = [1, 1]} : vector<8x128xf32> to vector<8x8xf32>
    %335 = vector.extract_strided_slice %333 {offsets = [0, 0], sizes = [8, 8], strides = [1, 1]} : vector<8x128xf32> to vector<8x8xf32>
    %cst_66 = arith.constant 1.000000e+00 : f32
    %336 = vector.broadcast %cst_66 : f32 to vector<8x8xf32>
    %337 = arith.subf %336, %334 : vector<8x8xf32>
    %338 = arith.mulf %337, %335 : vector<8x8xf32>
    %339 = arith.mulf %334, %276 : vector<8x8xf32>
    %340 = arith.addf %338, %339 : vector<8x8xf32>
    %c40 = arith.constant 40 : index
    %c0_67 = arith.constant 0 : index
    %341 = vector.load %arg4[%c40, %c0_67] : memref<64x384xf32, #tpu.memory_space<vmem>>, vector<8x384xf32>
    %342 = arith.truncf %307 : vector<8x32xf32> to vector<8x32xbf16>
    %cst_68 = arith.constant dense<0.000000e+00> : vector<8x384xf32>
    %343 = tpu.matmul %342, %7, %cst_68 {dimension_numbers = #tpu.dot_dimension_numbers<[1], [0], [0], [1], [0, 0, 1, 1], [], []>} : vector<8x32xbf16>, vector<32x384xbf16>, vector<8x384xf32> -> vector<8x384xf32>
    %344 = vector.extract_strided_slice %341 {offsets = [0, 0], sizes = [8, 256], strides = [1, 1]} : vector<8x384xf32> to vector<8x256xf32>
    %345 = vector.extract_strided_slice %343 {offsets = [0, 0], sizes = [8, 256], strides = [1, 1]} : vector<8x384xf32> to vector<8x256xf32>
    %346 = arith.addf %344, %345 : vector<8x256xf32>
    %347 = vector.extract_strided_slice %346 {offsets = [0, 0], sizes = [8, 128], strides = [1, 1]} : vector<8x256xf32> to vector<8x128xf32>
    %348 = arith.negf %347 : vector<8x128xf32>
    %349 = math.exp %348 : vector<8x128xf32>
    %cst_69 = arith.constant 1.000000e+00 : f32
    %350 = vector.broadcast %cst_69 : f32 to vector<8x128xf32>
    %351 = arith.addf %350, %349 : vector<8x128xf32>
    %352 = arith.divf %350, %351 : vector<8x128xf32>
    %353 = vector.extract_strided_slice %346 {offsets = [0, 128], sizes = [8, 128], strides = [1, 1]} : vector<8x256xf32> to vector<8x128xf32>
    %354 = arith.negf %353 : vector<8x128xf32>
    %355 = math.exp %354 : vector<8x128xf32>
    %cst_70 = arith.constant 1.000000e+00 : f32
    %356 = vector.broadcast %cst_70 : f32 to vector<8x128xf32>
    %357 = arith.addf %356, %355 : vector<8x128xf32>
    %358 = arith.divf %356, %357 : vector<8x128xf32>
    %359 = vector.extract_strided_slice %341 {offsets = [0, 256], sizes = [8, 128], strides = [1, 1]} : vector<8x384xf32> to vector<8x128xf32>
    %360 = vector.extract_strided_slice %343 {offsets = [0, 256], sizes = [8, 128], strides = [1, 1]} : vector<8x384xf32> to vector<8x128xf32>
    %361 = arith.addf %360, %12 : vector<8x128xf32>
    %362 = arith.mulf %352, %361 : vector<8x128xf32>
    %363 = arith.addf %359, %362 : vector<8x128xf32>
    %364 = math.tanh %363 : vector<8x128xf32>
    %365 = vector.extract_strided_slice %358 {offsets = [0, 0], sizes = [8, 32], strides = [1, 1]} : vector<8x128xf32> to vector<8x32xf32>
    %366 = vector.extract_strided_slice %364 {offsets = [0, 0], sizes = [8, 32], strides = [1, 1]} : vector<8x128xf32> to vector<8x32xf32>
    %cst_71 = arith.constant 1.000000e+00 : f32
    %367 = vector.broadcast %cst_71 : f32 to vector<8x32xf32>
    %368 = arith.subf %367, %365 : vector<8x32xf32>
    %369 = arith.mulf %368, %366 : vector<8x32xf32>
    %370 = arith.mulf %365, %307 : vector<8x32xf32>
    %371 = arith.addf %369, %370 : vector<8x32xf32>
    %372 = arith.truncf %371 : vector<8x32xf32> to vector<8x32xbf16>
    %cst_72 = arith.constant dense<0.000000e+00> : vector<8x384xf32>
    %373 = tpu.matmul %372, %8, %cst_72 {dimension_numbers = #tpu.dot_dimension_numbers<[1], [0], [0], [1], [0, 0, 1, 1], [], []>} : vector<8x32xbf16>, vector<32x384xbf16>, vector<8x384xf32> -> vector<8x384xf32>
    %374 = arith.addf %373, %15 : vector<8x384xf32>
    %375 = arith.truncf %340 : vector<8x8xf32> to vector<8x8xbf16>
    %cst_73 = arith.constant dense<0.000000e+00> : vector<8x384xf32>
    %376 = tpu.matmul %375, %9, %cst_73 {dimension_numbers = #tpu.dot_dimension_numbers<[1], [0], [0], [1], [0, 0, 1, 1], [], []>} : vector<8x8xbf16>, vector<8x384xbf16>, vector<8x384xf32> -> vector<8x384xf32>
    %377 = vector.extract_strided_slice %374 {offsets = [0, 0], sizes = [8, 256], strides = [1, 1]} : vector<8x384xf32> to vector<8x256xf32>
    %378 = vector.extract_strided_slice %376 {offsets = [0, 0], sizes = [8, 256], strides = [1, 1]} : vector<8x384xf32> to vector<8x256xf32>
    %379 = arith.addf %377, %378 : vector<8x256xf32>
    %380 = vector.extract_strided_slice %379 {offsets = [0, 0], sizes = [8, 128], strides = [1, 1]} : vector<8x256xf32> to vector<8x128xf32>
    %381 = arith.negf %380 : vector<8x128xf32>
    %382 = math.exp %381 : vector<8x128xf32>
    %cst_74 = arith.constant 1.000000e+00 : f32
    %383 = vector.broadcast %cst_74 : f32 to vector<8x128xf32>
    %384 = arith.addf %383, %382 : vector<8x128xf32>
    %385 = arith.divf %383, %384 : vector<8x128xf32>
    %386 = vector.extract_strided_slice %379 {offsets = [0, 128], sizes = [8, 128], strides = [1, 1]} : vector<8x256xf32> to vector<8x128xf32>
    %387 = arith.negf %386 : vector<8x128xf32>
    %388 = math.exp %387 : vector<8x128xf32>
    %cst_75 = arith.constant 1.000000e+00 : f32
    %389 = vector.broadcast %cst_75 : f32 to vector<8x128xf32>
    %390 = arith.addf %389, %388 : vector<8x128xf32>
    %391 = arith.divf %389, %390 : vector<8x128xf32>
    %392 = vector.extract_strided_slice %374 {offsets = [0, 256], sizes = [8, 128], strides = [1, 1]} : vector<8x384xf32> to vector<8x128xf32>
    %393 = vector.extract_strided_slice %376 {offsets = [0, 256], sizes = [8, 128], strides = [1, 1]} : vector<8x384xf32> to vector<8x128xf32>
    %394 = arith.addf %393, %18 : vector<8x128xf32>
    %395 = arith.mulf %385, %394 : vector<8x128xf32>
    %396 = arith.addf %392, %395 : vector<8x128xf32>
    %397 = math.tanh %396 : vector<8x128xf32>
    %398 = vector.extract_strided_slice %391 {offsets = [0, 0], sizes = [8, 8], strides = [1, 1]} : vector<8x128xf32> to vector<8x8xf32>
    %399 = vector.extract_strided_slice %397 {offsets = [0, 0], sizes = [8, 8], strides = [1, 1]} : vector<8x128xf32> to vector<8x8xf32>
    %cst_76 = arith.constant 1.000000e+00 : f32
    %400 = vector.broadcast %cst_76 : f32 to vector<8x8xf32>
    %401 = arith.subf %400, %398 : vector<8x8xf32>
    %402 = arith.mulf %401, %399 : vector<8x8xf32>
    %403 = arith.mulf %398, %340 : vector<8x8xf32>
    %404 = arith.addf %402, %403 : vector<8x8xf32>
    %c48 = arith.constant 48 : index
    %c0_77 = arith.constant 0 : index
    %405 = vector.load %arg4[%c48, %c0_77] : memref<64x384xf32, #tpu.memory_space<vmem>>, vector<8x384xf32>
    %406 = arith.truncf %371 : vector<8x32xf32> to vector<8x32xbf16>
    %cst_78 = arith.constant dense<0.000000e+00> : vector<8x384xf32>
    %407 = tpu.matmul %406, %7, %cst_78 {dimension_numbers = #tpu.dot_dimension_numbers<[1], [0], [0], [1], [0, 0, 1, 1], [], []>} : vector<8x32xbf16>, vector<32x384xbf16>, vector<8x384xf32> -> vector<8x384xf32>
    %408 = vector.extract_strided_slice %405 {offsets = [0, 0], sizes = [8, 256], strides = [1, 1]} : vector<8x384xf32> to vector<8x256xf32>
    %409 = vector.extract_strided_slice %407 {offsets = [0, 0], sizes = [8, 256], strides = [1, 1]} : vector<8x384xf32> to vector<8x256xf32>
    %410 = arith.addf %408, %409 : vector<8x256xf32>
    %411 = vector.extract_strided_slice %410 {offsets = [0, 0], sizes = [8, 128], strides = [1, 1]} : vector<8x256xf32> to vector<8x128xf32>
    %412 = arith.negf %411 : vector<8x128xf32>
    %413 = math.exp %412 : vector<8x128xf32>
    %cst_79 = arith.constant 1.000000e+00 : f32
    %414 = vector.broadcast %cst_79 : f32 to vector<8x128xf32>
    %415 = arith.addf %414, %413 : vector<8x128xf32>
    %416 = arith.divf %414, %415 : vector<8x128xf32>
    %417 = vector.extract_strided_slice %410 {offsets = [0, 128], sizes = [8, 128], strides = [1, 1]} : vector<8x256xf32> to vector<8x128xf32>
    %418 = arith.negf %417 : vector<8x128xf32>
    %419 = math.exp %418 : vector<8x128xf32>
    %cst_80 = arith.constant 1.000000e+00 : f32
    %420 = vector.broadcast %cst_80 : f32 to vector<8x128xf32>
    %421 = arith.addf %420, %419 : vector<8x128xf32>
    %422 = arith.divf %420, %421 : vector<8x128xf32>
    %423 = vector.extract_strided_slice %405 {offsets = [0, 256], sizes = [8, 128], strides = [1, 1]} : vector<8x384xf32> to vector<8x128xf32>
    %424 = vector.extract_strided_slice %407 {offsets = [0, 256], sizes = [8, 128], strides = [1, 1]} : vector<8x384xf32> to vector<8x128xf32>
    %425 = arith.addf %424, %12 : vector<8x128xf32>
    %426 = arith.mulf %416, %425 : vector<8x128xf32>
    %427 = arith.addf %423, %426 : vector<8x128xf32>
    %428 = math.tanh %427 : vector<8x128xf32>
    %429 = vector.extract_strided_slice %422 {offsets = [0, 0], sizes = [8, 32], strides = [1, 1]} : vector<8x128xf32> to vector<8x32xf32>
    %430 = vector.extract_strided_slice %428 {offsets = [0, 0], sizes = [8, 32], strides = [1, 1]} : vector<8x128xf32> to vector<8x32xf32>
    %cst_81 = arith.constant 1.000000e+00 : f32
    %431 = vector.broadcast %cst_81 : f32 to vector<8x32xf32>
    %432 = arith.subf %431, %429 : vector<8x32xf32>
    %433 = arith.mulf %432, %430 : vector<8x32xf32>
    %434 = arith.mulf %429, %371 : vector<8x32xf32>
    %435 = arith.addf %433, %434 : vector<8x32xf32>
    %436 = arith.truncf %435 : vector<8x32xf32> to vector<8x32xbf16>
    %cst_82 = arith.constant dense<0.000000e+00> : vector<8x384xf32>
    %437 = tpu.matmul %436, %8, %cst_82 {dimension_numbers = #tpu.dot_dimension_numbers<[1], [0], [0], [1], [0, 0, 1, 1], [], []>} : vector<8x32xbf16>, vector<32x384xbf16>, vector<8x384xf32> -> vector<8x384xf32>
    %438 = arith.addf %437, %15 : vector<8x384xf32>
    %439 = arith.truncf %404 : vector<8x8xf32> to vector<8x8xbf16>
    %cst_83 = arith.constant dense<0.000000e+00> : vector<8x384xf32>
    %440 = tpu.matmul %439, %9, %cst_83 {dimension_numbers = #tpu.dot_dimension_numbers<[1], [0], [0], [1], [0, 0, 1, 1], [], []>} : vector<8x8xbf16>, vector<8x384xbf16>, vector<8x384xf32> -> vector<8x384xf32>
    %441 = vector.extract_strided_slice %438 {offsets = [0, 0], sizes = [8, 256], strides = [1, 1]} : vector<8x384xf32> to vector<8x256xf32>
    %442 = vector.extract_strided_slice %440 {offsets = [0, 0], sizes = [8, 256], strides = [1, 1]} : vector<8x384xf32> to vector<8x256xf32>
    %443 = arith.addf %441, %442 : vector<8x256xf32>
    %444 = vector.extract_strided_slice %443 {offsets = [0, 0], sizes = [8, 128], strides = [1, 1]} : vector<8x256xf32> to vector<8x128xf32>
    %445 = arith.negf %444 : vector<8x128xf32>
    %446 = math.exp %445 : vector<8x128xf32>
    %cst_84 = arith.constant 1.000000e+00 : f32
    %447 = vector.broadcast %cst_84 : f32 to vector<8x128xf32>
    %448 = arith.addf %447, %446 : vector<8x128xf32>
    %449 = arith.divf %447, %448 : vector<8x128xf32>
    %450 = vector.extract_strided_slice %443 {offsets = [0, 128], sizes = [8, 128], strides = [1, 1]} : vector<8x256xf32> to vector<8x128xf32>
    %451 = arith.negf %450 : vector<8x128xf32>
    %452 = math.exp %451 : vector<8x128xf32>
    %cst_85 = arith.constant 1.000000e+00 : f32
    %453 = vector.broadcast %cst_85 : f32 to vector<8x128xf32>
    %454 = arith.addf %453, %452 : vector<8x128xf32>
    %455 = arith.divf %453, %454 : vector<8x128xf32>
    %456 = vector.extract_strided_slice %438 {offsets = [0, 256], sizes = [8, 128], strides = [1, 1]} : vector<8x384xf32> to vector<8x128xf32>
    %457 = vector.extract_strided_slice %440 {offsets = [0, 256], sizes = [8, 128], strides = [1, 1]} : vector<8x384xf32> to vector<8x128xf32>
    %458 = arith.addf %457, %18 : vector<8x128xf32>
    %459 = arith.mulf %449, %458 : vector<8x128xf32>
    %460 = arith.addf %456, %459 : vector<8x128xf32>
    %461 = math.tanh %460 : vector<8x128xf32>
    %462 = vector.extract_strided_slice %455 {offsets = [0, 0], sizes = [8, 8], strides = [1, 1]} : vector<8x128xf32> to vector<8x8xf32>
    %463 = vector.extract_strided_slice %461 {offsets = [0, 0], sizes = [8, 8], strides = [1, 1]} : vector<8x128xf32> to vector<8x8xf32>
    %cst_86 = arith.constant 1.000000e+00 : f32
    %464 = vector.broadcast %cst_86 : f32 to vector<8x8xf32>
    %465 = arith.subf %464, %462 : vector<8x8xf32>
    %466 = arith.mulf %465, %463 : vector<8x8xf32>
    %467 = arith.mulf %462, %404 : vector<8x8xf32>
    %468 = arith.addf %466, %467 : vector<8x8xf32>
    %c56 = arith.constant 56 : index
    %c0_87 = arith.constant 0 : index
    %469 = vector.load %arg4[%c56, %c0_87] : memref<64x384xf32, #tpu.memory_space<vmem>>, vector<8x384xf32>
    %470 = arith.truncf %435 : vector<8x32xf32> to vector<8x32xbf16>
    %cst_88 = arith.constant dense<0.000000e+00> : vector<8x384xf32>
    %471 = tpu.matmul %470, %7, %cst_88 {dimension_numbers = #tpu.dot_dimension_numbers<[1], [0], [0], [1], [0, 0, 1, 1], [], []>} : vector<8x32xbf16>, vector<32x384xbf16>, vector<8x384xf32> -> vector<8x384xf32>
    %472 = vector.extract_strided_slice %469 {offsets = [0, 0], sizes = [8, 256], strides = [1, 1]} : vector<8x384xf32> to vector<8x256xf32>
    %473 = vector.extract_strided_slice %471 {offsets = [0, 0], sizes = [8, 256], strides = [1, 1]} : vector<8x384xf32> to vector<8x256xf32>
    %474 = arith.addf %472, %473 : vector<8x256xf32>
    %475 = vector.extract_strided_slice %474 {offsets = [0, 0], sizes = [8, 128], strides = [1, 1]} : vector<8x256xf32> to vector<8x128xf32>
    %476 = arith.negf %475 : vector<8x128xf32>
    %477 = math.exp %476 : vector<8x128xf32>
    %cst_89 = arith.constant 1.000000e+00 : f32
    %478 = vector.broadcast %cst_89 : f32 to vector<8x128xf32>
    %479 = arith.addf %478, %477 : vector<8x128xf32>
    %480 = arith.divf %478, %479 : vector<8x128xf32>
    %481 = vector.extract_strided_slice %474 {offsets = [0, 128], sizes = [8, 128], strides = [1, 1]} : vector<8x256xf32> to vector<8x128xf32>
    %482 = arith.negf %481 : vector<8x128xf32>
    %483 = math.exp %482 : vector<8x128xf32>
    %cst_90 = arith.constant 1.000000e+00 : f32
    %484 = vector.broadcast %cst_90 : f32 to vector<8x128xf32>
    %485 = arith.addf %484, %483 : vector<8x128xf32>
    %486 = arith.divf %484, %485 : vector<8x128xf32>
    %487 = vector.extract_strided_slice %469 {offsets = [0, 256], sizes = [8, 128], strides = [1, 1]} : vector<8x384xf32> to vector<8x128xf32>
    %488 = vector.extract_strided_slice %471 {offsets = [0, 256], sizes = [8, 128], strides = [1, 1]} : vector<8x384xf32> to vector<8x128xf32>
    %489 = arith.addf %488, %12 : vector<8x128xf32>
    %490 = arith.mulf %480, %489 : vector<8x128xf32>
    %491 = arith.addf %487, %490 : vector<8x128xf32>
    %492 = math.tanh %491 : vector<8x128xf32>
    %493 = vector.extract_strided_slice %486 {offsets = [0, 0], sizes = [8, 32], strides = [1, 1]} : vector<8x128xf32> to vector<8x32xf32>
    %494 = vector.extract_strided_slice %492 {offsets = [0, 0], sizes = [8, 32], strides = [1, 1]} : vector<8x128xf32> to vector<8x32xf32>
    %cst_91 = arith.constant 1.000000e+00 : f32
    %495 = vector.broadcast %cst_91 : f32 to vector<8x32xf32>
    %496 = arith.subf %495, %493 : vector<8x32xf32>
    %497 = arith.mulf %496, %494 : vector<8x32xf32>
    %498 = arith.mulf %493, %435 : vector<8x32xf32>
    %499 = arith.addf %497, %498 : vector<8x32xf32>
    %500 = arith.truncf %499 : vector<8x32xf32> to vector<8x32xbf16>
    %cst_92 = arith.constant dense<0.000000e+00> : vector<8x384xf32>
    %501 = tpu.matmul %500, %8, %cst_92 {dimension_numbers = #tpu.dot_dimension_numbers<[1], [0], [0], [1], [0, 0, 1, 1], [], []>} : vector<8x32xbf16>, vector<32x384xbf16>, vector<8x384xf32> -> vector<8x384xf32>
    %502 = arith.addf %501, %15 : vector<8x384xf32>
    %503 = arith.truncf %468 : vector<8x8xf32> to vector<8x8xbf16>
    %cst_93 = arith.constant dense<0.000000e+00> : vector<8x384xf32>
    %504 = tpu.matmul %503, %9, %cst_93 {dimension_numbers = #tpu.dot_dimension_numbers<[1], [0], [0], [1], [0, 0, 1, 1], [], []>} : vector<8x8xbf16>, vector<8x384xbf16>, vector<8x384xf32> -> vector<8x384xf32>
    %505 = vector.extract_strided_slice %502 {offsets = [0, 0], sizes = [8, 256], strides = [1, 1]} : vector<8x384xf32> to vector<8x256xf32>
    %506 = vector.extract_strided_slice %504 {offsets = [0, 0], sizes = [8, 256], strides = [1, 1]} : vector<8x384xf32> to vector<8x256xf32>
    %507 = arith.addf %505, %506 : vector<8x256xf32>
    %508 = vector.extract_strided_slice %507 {offsets = [0, 0], sizes = [8, 128], strides = [1, 1]} : vector<8x256xf32> to vector<8x128xf32>
    %509 = arith.negf %508 : vector<8x128xf32>
    %510 = math.exp %509 : vector<8x128xf32>
    %cst_94 = arith.constant 1.000000e+00 : f32
    %511 = vector.broadcast %cst_94 : f32 to vector<8x128xf32>
    %512 = arith.addf %511, %510 : vector<8x128xf32>
    %513 = arith.divf %511, %512 : vector<8x128xf32>
    %514 = vector.extract_strided_slice %507 {offsets = [0, 128], sizes = [8, 128], strides = [1, 1]} : vector<8x256xf32> to vector<8x128xf32>
    %515 = arith.negf %514 : vector<8x128xf32>
    %516 = math.exp %515 : vector<8x128xf32>
    %cst_95 = arith.constant 1.000000e+00 : f32
    %517 = vector.broadcast %cst_95 : f32 to vector<8x128xf32>
    %518 = arith.addf %517, %516 : vector<8x128xf32>
    %519 = arith.divf %517, %518 : vector<8x128xf32>
    %520 = vector.extract_strided_slice %502 {offsets = [0, 256], sizes = [8, 128], strides = [1, 1]} : vector<8x384xf32> to vector<8x128xf32>
    %521 = vector.extract_strided_slice %504 {offsets = [0, 256], sizes = [8, 128], strides = [1, 1]} : vector<8x384xf32> to vector<8x128xf32>
    %522 = arith.addf %521, %18 : vector<8x128xf32>
    %523 = arith.mulf %513, %522 : vector<8x128xf32>
    %524 = arith.addf %520, %523 : vector<8x128xf32>
    %525 = math.tanh %524 : vector<8x128xf32>
    %526 = vector.extract_strided_slice %519 {offsets = [0, 0], sizes = [8, 8], strides = [1, 1]} : vector<8x128xf32> to vector<8x8xf32>
    %527 = vector.extract_strided_slice %525 {offsets = [0, 0], sizes = [8, 8], strides = [1, 1]} : vector<8x128xf32> to vector<8x8xf32>
    %cst_96 = arith.constant 1.000000e+00 : f32
    %528 = vector.broadcast %cst_96 : f32 to vector<8x8xf32>
    %529 = arith.subf %528, %526 : vector<8x8xf32>
    %530 = arith.mulf %529, %527 : vector<8x8xf32>
    %531 = arith.mulf %526, %468 : vector<8x8xf32>
    %532 = arith.addf %530, %531 : vector<8x8xf32>
    %533 = vector.extract_strided_slice %532 {offsets = [0, 0], sizes = [2, 8], strides = [1, 1]} : vector<8x8xf32> to vector<2x8xf32>
    %c0_97 = arith.constant 0 : index
    %c0_98 = arith.constant 0 : index
    %534 = vector.load %arg3[%c0_97, %c0_98] : memref<2x8xf32, #tpu.memory_space<vmem>>, vector<2x8xf32>
    tpu.vector_store %arg3[%c0_97, %c0_98], %533 {strides = array<i32>} : memref<2x8xf32, #tpu.memory_space<vmem>>, vector<2x8xf32>,
    return
  }
}

</mosaic_0001>

<llo_original>
// kernel: simple_classifier_forward.2
$region0: #{simple_classifier_forward.2}
  #allocation0 [shape = 'u32[]', space=smem, size = 0x4, offset = 0x4, fixed_abs, tag = 'smem constant byte address 0x4 - core index']
  #allocation1 [shape = 'u32[72,128]{1,0:T(1,128)}', space=vmem, size = 0x9000, scoped, tag = 'internal scratch']
  #allocation2 [shape = 'f32[64,384]{1,0:T(8,128)}', space=vmem, size = 0x18000, scoped, tag = 'scratch operand']
  #allocation3 [shape = 'u32[2048]{0}', space=vmem, size = 0x2000, scoped, tag = 'scoped memory for simple_classifier_forward.2']
  #allocation4 [shape = 'u32[2048]{0}', space=vmem, size = 0x2000, scoped, tag = 'scoped memory for simple_classifier_forward.2']
  #allocation5 [shape = 'u32[2048]{0}', space=vmem, size = 0x2000, scoped, tag = 'scoped memory for simple_classifier_forward.2']
  #allocation6 [shape = 'u32[2048]{0}', space=vmem, size = 0x2000, scoped, tag = 'scoped memory for simple_classifier_forward.2']
  #allocation7 [shape = 'u32[2048]{0}', space=vmem, size = 0x2000, scoped, tag = 'scoped memory for simple_classifier_forward.2']
  %s0 = inlined_call_operand.hbm [shape: f32[16,384], index: 0, kind: input, shape index: {}]
  %s1 = inlined_call_operand.hbm [shape: bf16[72,384], index: 1, kind: input, shape index: {}]
  %s2 = inlined_call_operand.vmem [shape: f32[8,2,4], index: 2, kind: input, shape index: {}]
  %s3 = inlined_call_operand.<no memory space> [shape: f32[], index: 3, kind: input, shape index: {}]
  %s4 = inlined_call_operand.hbm [shape: f32[2,8], index: 4, kind: output, shape index: {}]
  %s5 = sld [smem:[#allocation0]]
  $region30: #{simple_classifier_forward.2} parent=0
    _
  %s7 = ssub.s32 1, %s5
  %s8 = scalar_select 0, %s7, %s5
  %v9 = vstv %s3
  $region1: #{simple_classifier_forward.2} parent=0
    #allocation8 [shape = 'u8[24576]{0}', space=vmem, size = 0x6000, scoped, tag = 'input window, operand 1, single buffered']
    #allocation9 [shape = 's32[1]{0}', space=sflag, size = 0x4, scoped, tag = 'scoped memory for simple_classifier_forward.2']
    #allocation10 [shape = 's32[1]{0}', space=sflag, size = 0x4, scoped, tag = 'scoped memory for simple_classifier_forward.2']
    #allocation11 [shape = 'u8[55296]{0}', space=vmem, size = 0xd800, scoped, tag = 'input window, operand 2, single buffered']
    #allocation12 [shape = 's32[1]{0}', space=sflag, size = 0x4, scoped, tag = 'scoped memory for simple_classifier_forward.2']
    #allocation13 [shape = 'u8[1024]{0}', space=vmem, size = 0x400, scoped, tag = 'output window, operand 0, single buffered']
    #allocation14 [shape = 'u8[32768]{0}', space=vmem, size = 0x8000, dematerialized = true, scoped, tag = 'FusionAdapter Buffer %pad_bitcast_fusion.1 = f32[64,8]{1,0:T(8,128)} fusion(%param_2.1, %param_3), kind=kLoop, calls=%fused_computation.clone.clone, metadata={op_name="jit(simple_classifier_forward)/reshape" stack_frame_id=9}']
    %10 = vsyncpa [#allocation9], 0
    %11 = vsyncpa [#allocation12], 0
    %12 = vsyncpa [#allocation10], 0
    // Predicated region
    $region2: #{simple_classifier_forward.2} parent=1 // pred_check
      _
    $region3: #{simple_classifier_forward.2} parent=1 // pred_check_branch
      %14 = sbr.rel (0) target = $region5
    $region4: #{simple_classifier_forward.2} parent=1 // pred_region
      _
    $region5: #{simple_classifier_forward.2} parent=1 // pred_fallthru
      _
    // Predicated region
    $region6: #{simple_classifier_forward.2} parent=1 // pred_check
      _
    $region7: #{simple_classifier_forward.2} parent=1 // pred_check_branch
      %16 = sbr.rel (0) target = $region9
    $region8: #{simple_classifier_forward.2} parent=1 // pred_region
      %18 = vsyncadd [#allocation9], 0
      %s19 = sshll.u32 %s0, 4
      %s20 = int_to_ptr.hbm [resolvable:$true] %s19
      %s21 = sshll.u32 [#allocation8], 4
      %s22 = int_to_ptr.vmem [resolvable:$true] %s21
      %27 = dma.hbm_to_vmem [thread:$0]  %s20, 768, %s22, [#allocation9], 384, 384, 24
    $region9: #{simple_classifier_forward.2} parent=1 // pred_fallthru
      _
    // Predicated region
    $region10: #{simple_classifier_forward.2} parent=1 // pred_check
      _
    $region11: #{simple_classifier_forward.2} parent=1 // pred_check_branch
      %29 = sbr.rel (0) target = $region13
    $region12: #{simple_classifier_forward.2} parent=1 // pred_region
      %31 = vsyncadd [#allocation12], 0
      %s32 = sshll.u32 %s1, 4
      %s33 = int_to_ptr.hbm [resolvable:$true] %s32
      %s34 = sshll.u32 [#allocation11], 4
      %s35 = int_to_ptr.vmem [resolvable:$true] %s34
      %40 = dma.hbm_to_vmem [thread:$0]  %s33, 1728, %s35, [#allocation12], 192, 192, 12
    $region13: #{simple_classifier_forward.2} parent=1 // pred_fallthru
      _
    // Predicated region
    $region14: #{simple_classifier_forward.2} parent=1 // pred_check
      _
    $region15: #{simple_classifier_forward.2} parent=1 // pred_check_branch
      %42 = sbr.rel (0) target = $region17
    $region16: #{simple_classifier_forward.2} parent=1 // pred_region
      %44 = dma.done [#allocation9], 768
    $region17: #{simple_classifier_forward.2} parent=1 // pred_fallthru
      _
    // Predicated region
    $region18: #{simple_classifier_forward.2} parent=1 // pred_check
      _
    $region19: #{simple_classifier_forward.2} parent=1 // pred_check_branch
      %46 = sbr.rel (0) target = $region21
    $region20: #{simple_classifier_forward.2} parent=1 // pred_region
      %48 = dma.done [#allocation12], 1728
    $region21: #{simple_classifier_forward.2} parent=1 // pred_fallthru
      _
    %v49 = vld [vmem:[%s2] sm:$0x3]
    %v50 = vlaneseq
    %v51 = vshrl.u32 %v50, 7
    %vm53 = vcmp.lt.s32.totalorder %v51, 2
    %v54 = vsel %vm53, %v49, %v9
    %v55 = vlaneseq
    %v56 = vand.u32 %v55, 127
    %vm58 = vcmp.lt.s32.totalorder %v56, 4
    %v59 = vsel %vm58, %v54, %v9
    %s61 = ssub.s32 256, 1
    %62 = vst [vmem:[#allocation14] sm:%s61] %v59
    %s63 = scalar_lea.vmem %s2, 2
    %v64 = vld [vmem:[%s63] sm:$0x3]
    %v65 = vlaneseq
    %v66 = vshrl.u32 %v65, 7
    %vm68 = vcmp.lt.s32.totalorder %v66, 2
    %v69 = vsel %vm68, %v64, %v9
    %v70 = vlaneseq
    %v71 = vand.u32 %v70, 127
    %vm73 = vcmp.lt.s32.totalorder %v71, 4
    %v74 = vsel %vm73, %v69, %v9
    %s75 = scalar_lea.vmem [#allocation14], 8
    %s77 = ssub.s32 256, 1
    %78 = vst [vmem:[%s75] sm:%s77] %v74
    %s79 = scalar_lea.vmem %s2, 4
    %v80 = vld [vmem:[%s79] sm:$0x3]
    %v81 = vlaneseq
    %v82 = vshrl.u32 %v81, 7
    %vm84 = vcmp.lt.s32.totalorder %v82, 2
    %v85 = vsel %vm84, %v80, %v9
    %v86 = vlaneseq
    %v87 = vand.u32 %v86, 127
    %vm89 = vcmp.lt.s32.totalorder %v87, 4
    %v90 = vsel %vm89, %v85, %v9
    %s91 = scalar_lea.vmem [#allocation14], 16
    %s93 = ssub.s32 256, 1
    %94 = vst [vmem:[%s91] sm:%s93] %v90
    %s95 = scalar_lea.vmem %s2, 6
    %v96 = vld [vmem:[%s95] sm:$0x3]
    %v97 = vlaneseq
    %v98 = vshrl.u32 %v97, 7
    %vm100 = vcmp.lt.s32.totalorder %v98, 2
    %v101 = vsel %vm100, %v96, %v9
    %v102 = vlaneseq
    %v103 = vand.u32 %v102, 127
    %vm105 = vcmp.lt.s32.totalorder %v103, 4
    %v106 = vsel %vm105, %v101, %v9
    %s107 = scalar_lea.vmem [#allocation14], 24
    %s109 = ssub.s32 256, 1
    %110 = vst [vmem:[%s107] sm:%s109] %v106
    %s111 = scalar_lea.vmem %s2, 8
    %v112 = vld [vmem:[%s111] sm:$0x3]
    %v113 = vlaneseq
    %v114 = vshrl.u32 %v113, 7
    %vm116 = vcmp.lt.s32.totalorder %v114, 2
    %v117 = vsel %vm116, %v112, %v9
    %v118 = vlaneseq
    %v119 = vand.u32 %v118, 127
    %vm121 = vcmp.lt.s32.totalorder %v119, 4
    %v122 = vsel %vm121, %v117, %v9
    %s123 = scalar_lea.vmem [#allocation14], 32
    %s125 = ssub.s32 256, 1
    %126 = vst [vmem:[%s123] sm:%s125] %v122
    %s127 = scalar_lea.vmem %s2, 10
    %v128 = vld [vmem:[%s127] sm:$0x3]
    %v129 = vlaneseq
    %v130 = vshrl.u32 %v129, 7
    %vm132 = vcmp.lt.s32.totalorder %v130, 2
    %v133 = vsel %vm132, %v128, %v9
    %v134 = vlaneseq
    %v135 = vand.u32 %v134, 127
    %vm137 = vcmp.lt.s32.totalorder %v135, 4
    %v138 = vsel %vm137, %v133, %v9
    %s139 = scalar_lea.vmem [#allocation14], 40
    %s141 = ssub.s32 256, 1
    %142 = vst [vmem:[%s139] sm:%s141] %v138
    %s143 = scalar_lea.vmem %s2, 12
    %v144 = vld [vmem:[%s143] sm:$0x3]
    %v145 = vlaneseq
    %v146 = vshrl.u32 %v145, 7
    %vm148 = vcmp.lt.s32.totalorder %v146, 2
    %v149 = vsel %vm148, %v144, %v9
    %v150 = vlaneseq
    %v151 = vand.u32 %v150, 127
    %vm153 = vcmp.lt.s32.totalorder %v151, 4
    %v154 = vsel %vm153, %v149, %v9
    %s155 = scalar_lea.vmem [#allocation14], 48
    %s157 = ssub.s32 256, 1
    %158 = vst [vmem:[%s155] sm:%s157] %v154
    %s159 = scalar_lea.vmem %s2, 14
    %v160 = vld [vmem:[%s159] sm:$0x3]
    %v161 = vlaneseq
    %v162 = vshrl.u32 %v161, 7
    %vm164 = vcmp.lt.s32.totalorder %v162, 2
    %v165 = vsel %vm164, %v160, %v9
    %v166 = vlaneseq
    %v167 = vand.u32 %v166, 127
    %vm169 = vcmp.lt.s32.totalorder %v167, 4
    %v170 = vsel %vm169, %v165, %v9
    %s171 = scalar_lea.vmem [#allocation14], 56
    %s173 = ssub.s32 256, 1
    %174 = vst [vmem:[%s171] sm:%s173] %v170
    %v176 = vld [vmem:[#allocation14] sm:$0xff]
    %v177 = vld [vmem:[#allocation14 + $0x8] sm:$0xff]
    %v178 = vld [vmem:[#allocation14 + $0x10] sm:$0xff]
    %v179 = vld [vmem:[#allocation14 + $0x18] sm:$0xff]
    %v180 = vld [vmem:[#allocation14 + $0x20] sm:$0xff]
    %v181 = vld [vmem:[#allocation14 + $0x28] sm:$0xff]
    %v182 = vld [vmem:[#allocation14 + $0x30] sm:$0xff]
    %v183 = vld [vmem:[#allocation14 + $0x38] sm:$0xff]
    %v184 = vld [vmem:[#allocation8] sm:$0xff]
    %v185 = vld [vmem:[#allocation8 + $0x8] sm:$0xff]
    %v186 = vld [vmem:[#allocation8 + $0x10] sm:$0xff]
    %s187 = scalar_lea.vmem [#allocation8], 24
    %v188 = vld [vmem:[%s187] ss:$8 sm:$0x7]
    %v190 = vperm.slane %v188, 0
    %v191 = vperm.slane %v188, 1
    %v192 = vperm.slane %v188, 2
    %vm196 = vcmask 64512
    %v198 = vsel %vm196, %v176, 0
    %v201 = vsel %vm196, %v177, 0
    %v204 = vsel %vm196, %v178, 0
    %v207 = vsel %vm196, %v179, 0
    %v210 = vsel %vm196, %v180, 0
    %v213 = vsel %vm196, %v181, 0
    %v216 = vsel %vm196, %v182, 0
    %v219 = vsel %vm196, %v183, 0
    %221 = vmatpush.msra.mxu0 0.0
    %222 = vmatpush.msra.mxu0 0.0
    %223 = vmatpush.msra.mxu0 0.0
    %224 = vmatpush.msra.mxu0 0.0
    %225 = vmatpush.msra.mxu0 0.0
    %226 = vmatpush.msra.mxu0 0.0
    %227 = vmatpush.msra.mxu0 0.0
    %228 = vmatpush.msra.mxu0 0.0
    %229 = vmatpush.msra.mxu0 0.0
    %230 = vmatpush.msra.mxu0 0.0
    %231 = vmatpush.msra.mxu0 0.0
    %232 = vmatpush.msra.mxu0 0.0
    %233 = vmatpush.msra.mxu0 0.0
    %234 = vmatpush.msra.mxu0 0.0
    %235 = vmatpush.msra.mxu0 0.0
    %236 = vmatpush.msra.mxu0 %v184
    %237 = vmatmul.f32.gmra.mxu0 %v198
    %v238 = vpop.f32.mrf.mxu0
    %v239 = vadd.f32 %v190, %v238
    %240 = vmatmul.f32.gmra.mxu0 %v201
    %v241 = vpop.f32.mrf.mxu0
    %v242 = vadd.f32 %v190, %v241
    %243 = vmatmul.f32.gmra.mxu0 %v204
    %v244 = vpop.f32.mrf.mxu0
    %v245 = vadd.f32 %v190, %v244
    %246 = vmatmul.f32.gmra.mxu0 %v207
    %v247 = vpop.f32.mrf.mxu0
    %v248 = vadd.f32 %v190, %v247
    %249 = vmatmul.f32.gmra.mxu0 %v210
    %v250 = vpop.f32.mrf.mxu0
    %v251 = vadd.f32 %v190, %v250
    %252 = vmatmul.f32.gmra.mxu0 %v213
    %v253 = vpop.f32.mrf.mxu0
    %v254 = vadd.f32 %v190, %v253
    %255 = vmatmul.f32.gmra.mxu0 %v216
    %v256 = vpop.f32.mrf.mxu0
    %v257 = vadd.f32 %v190, %v256
    %258 = vmatmul.f32.gmra.mxu0 %v219
    %v259 = vpop.f32.mrf.mxu0
    %v260 = vadd.f32 %v190, %v259
    %261 = vdwg.mxu0
    %262 = vmatpush.msra.mxu0 0.0
    %263 = vmatpush.msra.mxu0 0.0
    %264 = vmatpush.msra.mxu0 0.0
    %265 = vmatpush.msra.mxu0 0.0
    %266 = vmatpush.msra.mxu0 0.0
    %267 = vmatpush.msra.mxu0 0.0
    %268 = vmatpush.msra.mxu0 0.0
    %269 = vmatpush.msra.mxu0 0.0
    %270 = vmatpush.msra.mxu0 0.0
    %271 = vmatpush.msra.mxu0 0.0
    %272 = vmatpush.msra.mxu0 0.0
    %273 = vmatpush.msra.mxu0 0.0
    %274 = vmatpush.msra.mxu0 0.0
    %275 = vmatpush.msra.mxu0 0.0
    %276 = vmatpush.msra.mxu0 0.0
    %277 = vmatpush.msra.mxu0 %v185
    %278 = vmatmul.f32.gmra.mxu0 %v198
    %v279 = vpop.f32.mrf.mxu0
    %v280 = vadd.f32 %v191, %v279
    %281 = vmatmul.f32.gmra.mxu0 %v201
    %v282 = vpop.f32.mrf.mxu0
    %v283 = vadd.f32 %v191, %v282
    %284 = vmatmul.f32.gmra.mxu0 %v204
    %v285 = vpop.f32.mrf.mxu0
    %v286 = vadd.f32 %v191, %v285
    %287 = vmatmul.f32.gmra.mxu0 %v207
    %v288 = vpop.f32.mrf.mxu0
    %v289 = vadd.f32 %v191, %v288
    %290 = vmatmul.f32.gmra.mxu0 %v210
    %v291 = vpop.f32.mrf.mxu0
    %v292 = vadd.f32 %v191, %v291
    %293 = vmatmul.f32.gmra.mxu0 %v213
    %v294 = vpop.f32.mrf.mxu0
    %v295 = vadd.f32 %v191, %v294
    %296 = vmatmul.f32.gmra.mxu0 %v216
    %v297 = vpop.f32.mrf.mxu0
    %v298 = vadd.f32 %v191, %v297
    %299 = vmatmul.f32.gmra.mxu0 %v219
    %v300 = vpop.f32.mrf.mxu0
    %v301 = vadd.f32 %v191, %v300
    %302 = vdwg.mxu0
    %303 = vmatpush.msra.mxu0 0.0
    %304 = vmatpush.msra.mxu0 0.0
    %305 = vmatpush.msra.mxu0 0.0
    %306 = vmatpush.msra.mxu0 0.0
    %307 = vmatpush.msra.mxu0 0.0
    %308 = vmatpush.msra.mxu0 0.0
    %309 = vmatpush.msra.mxu0 0.0
    %310 = vmatpush.msra.mxu0 0.0
    %311 = vmatpush.msra.mxu0 0.0
    %312 = vmatpush.msra.mxu0 0.0
    %313 = vmatpush.msra.mxu0 0.0
    %314 = vmatpush.msra.mxu0 0.0
    %315 = vmatpush.msra.mxu0 0.0
    %316 = vmatpush.msra.mxu0 0.0
    %317 = vmatpush.msra.mxu0 0.0
    %318 = vmatpush.msra.mxu0 %v186
    %319 = vmatmul.f32.gmra.mxu0 %v198
    %v320 = vpop.f32.mrf.mxu0
    %v321 = vadd.f32 %v192, %v320
    %322 = vmatmul.f32.gmra.mxu0 %v201
    %v323 = vpop.f32.mrf.mxu0
    %v324 = vadd.f32 %v192, %v323
    %325 = vmatmul.f32.gmra.mxu0 %v204
    %v326 = vpop.f32.mrf.mxu0
    %v327 = vadd.f32 %v192, %v326
    %328 = vmatmul.f32.gmra.mxu0 %v207
    %v329 = vpop.f32.mrf.mxu0
    %v330 = vadd.f32 %v192, %v329
    %331 = vmatmul.f32.gmra.mxu0 %v210
    %v332 = vpop.f32.mrf.mxu0
    %v333 = vadd.f32 %v192, %v332
    %334 = vmatmul.f32.gmra.mxu0 %v213
    %v335 = vpop.f32.mrf.mxu0
    %v336 = vadd.f32 %v192, %v335
    %337 = vmatmul.f32.gmra.mxu0 %v216
    %v338 = vpop.f32.mrf.mxu0
    %v339 = vadd.f32 %v192, %v338
    %340 = vmatmul.f32.gmra.mxu0 %v219
    %v341 = vpop.f32.mrf.mxu0
    %v342 = vadd.f32 %v192, %v341
    %343 = vdwg.mxu0
    %344 = vst [vmem:[#allocation2] sm:$0xff] %v239
    %345 = vst [vmem:[#allocation2 + $0x8] sm:$0xff] %v280
    %346 = vst [vmem:[#allocation2 + $0x10] sm:$0xff] %v321
    %347 = vst [vmem:[#allocation2 + $0x18] sm:$0xff] %v242
    %348 = vst [vmem:[#allocation2 + $0x20] sm:$0xff] %v283
    %349 = vst [vmem:[#allocation2 + $0x28] sm:$0xff] %v324
    %350 = vst [vmem:[#allocation2 + $0x30] sm:$0xff] %v245
    %351 = vst [vmem:[#allocation2 + $0x38] sm:$0xff] %v286
    %352 = vst [vmem:[#allocation2 + $0x40] sm:$0xff] %v327
    %353 = vst [vmem:[#allocation2 + $0x48] sm:$0xff] %v248
    %354 = vst [vmem:[#allocation2 + $0x50] sm:$0xff] %v289
    %355 = vst [vmem:[#allocation2 + $0x58] sm:$0xff] %v330
    %356 = vst [vmem:[#allocation2 + $0x60] sm:$0xff] %v251
    %357 = vst [vmem:[#allocation2 + $0x68] sm:$0xff] %v292
    %358 = vst [vmem:[#allocation2 + $0x70] sm:$0xff] %v333
    %359 = vst [vmem:[#allocation2 + $0x78] sm:$0xff] %v254
    %360 = vst [vmem:[#allocation2 + $0x80] sm:$0xff] %v295
    %361 = vst [vmem:[#allocation2 + $0x88] sm:$0xff] %v336
    %362 = vst [vmem:[#allocation2 + $0x90] sm:$0xff] %v257
    %363 = vst [vmem:[#allocation2 + $0x98] sm:$0xff] %v298
    %364 = vst [vmem:[#allocation2 + $0xa0] sm:$0xff] %v339
    %365 = vst [vmem:[#allocation2 + $0xa8] sm:$0xff] %v260
    %366 = vst [vmem:[#allocation2 + $0xb0] sm:$0xff] %v301
    %367 = vst [vmem:[#allocation2 + $0xb8] sm:$0xff] %v342
    %v368 = vld [vmem:[#allocation11] sm:$0xff]
    %v369 = vld [vmem:[#allocation11 + $0x8] sm:$0xf]
    %v370 = vld [vmem:[#allocation11 + $0xc] sm:$0xff]
    %v371 = vld [vmem:[#allocation11 + $0x14] sm:$0xf]
    %v372 = vld [vmem:[#allocation11 + $0x18] sm:$0xff]
    %v373 = vld [vmem:[#allocation11 + $0x20] sm:$0xf]
    %v374 = vld [vmem:[#allocation11 + $0x24] sm:$0xff]
    %v375 = vld [vmem:[#allocation11 + $0x2c] sm:$0xf]
    %v376 = vld [vmem:[#allocation11 + $0x30] sm:$0xff]
    %v377 = vld [vmem:[#allocation11 + $0x38] sm:$0xf]
    %v378 = vld [vmem:[#allocation11 + $0x3c] sm:$0xff]
    %v379 = vld [vmem:[#allocation11 + $0x44] sm:$0xf]
    %v380 = vld [vmem:[#allocation11 + $0x48] sm:$0xff]
    %v381 = vld [vmem:[#allocation11 + $0x50] sm:$0xf]
    %v382 = vld [vmem:[#allocation11 + $0x54] sm:$0xff]
    %v383 = vld [vmem:[#allocation11 + $0x5c] sm:$0xf]
    %v384 = vld [vmem:[#allocation11 + $0x60] sm:$0xff]
    %v385 = vld [vmem:[#allocation11 + $0x68] sm:$0xf]
    %v386 = vld [vmem:[#allocation8 + $0x29] ss:$0 sm:$0xff]
    %s387 = scalar_lea.vmem [#allocation8], 26
    %v388 = vld [vmem:[%s387] ss:$8 sm:$0x7]
    %v390 = vperm.slane %v388, 0
    %v391 = vperm.slane %v388, 1
    %v392 = vperm.slane %v388, 2
    %v396 = vld [vmem:[#allocation8 + $0x2b] ss:$0 sm:$0xff]
    %v397 = vld [vmem:[#allocation2] sm:$0xff]
    %v398 = vld [vmem:[#allocation2 + $0x8] sm:$0xff]
    %v399 = vld [vmem:[#allocation2 + $0x10] sm:$0xff]
    %v408 = vunpack.c.l.b16 %v368
    %v409 = vunpack.c.h.b16 %v368
    %v410 = vunpack.c.l.b16 %v369
    %v411 = vunpack.c.l.b16 %v370
    %v412 = vunpack.c.h.b16 %v370
    %v413 = vunpack.c.l.b16 %v371
    %v414 = vunpack.c.l.b16 %v372
    %v415 = vunpack.c.h.b16 %v372
    %v416 = vunpack.c.l.b16 %v373
    %v417 = vunpack.c.l.b16 %v374
    %v418 = vunpack.c.h.b16 %v374
    %v419 = vunpack.c.l.b16 %v375
    %v420 = vpack.c.b16 %v411, %v408
    %v421 = vpack.c.b16 %v412, %v409
    %v422 = vpack.c.b16 %v413, %v410
    %v423 = vpack.c.b16 %v417, %v414
    %v424 = vpack.c.b16 %v418, %v415
    %v425 = vpack.c.b16 %v419, %v416
    %vm432 = vcmask 261120
    %v434 = vsel %vm432, 0, 0
    %436 = vmatpush.bf16.msra.mxu0 0
    %437 = vmatpush.bf16.msra.mxu0 0
    %438 = vmatpush.bf16.msra.mxu0 0
    %439 = vmatpush.bf16.msra.mxu0 0
    %440 = vmatpush.bf16.msra.mxu0 0
    %441 = vmatpush.bf16.msra.mxu0 0
    %442 = vmatpush.bf16.msra.mxu0 %v423
    %443 = vmatpush.bf16.msra.mxu0 %v420
    %444 = vmatmul.bf16.gmra.mxu0 %v434
    %v445 = vpop.f32.mrf.mxu0
    %v446 = vadd.f32 0.0, %v445
    %v447 = vpop.f32.mrf.mxu0
    %448 = vdwg.mxu0
    %449 = vmatpush.bf16.msra.mxu0 0
    %450 = vmatpush.bf16.msra.mxu0 0
    %451 = vmatpush.bf16.msra.mxu0 0
    %452 = vmatpush.bf16.msra.mxu0 0
    %453 = vmatpush.bf16.msra.mxu0 0
    %454 = vmatpush.bf16.msra.mxu0 0
    %455 = vmatpush.bf16.msra.mxu0 %v424
    %456 = vmatpush.bf16.msra.mxu0 %v421
    %457 = vmatmul.bf16.gmra.mxu0 %v434
    %v458 = vpop.f32.mrf.mxu0
    %v459 = vadd.f32 0.0, %v458
    %v460 = vpop.f32.mrf.mxu0
    %461 = vdwg.mxu0
    %462 = vmatpush.bf16.msra.mxu0 0
    %463 = vmatpush.bf16.msra.mxu0 0
    %464 = vmatpush.bf16.msra.mxu0 0
    %465 = vmatpush.bf16.msra.mxu0 0
    %466 = vmatpush.bf16.msra.mxu0 0
    %467 = vmatpush.bf16.msra.mxu0 0
    %468 = vmatpush.bf16.msra.mxu0 %v425
    %469 = vmatpush.bf16.msra.mxu0 %v422
    %470 = vmatmul.bf16.gmra.mxu0 %v434
    %v471 = vpop.f32.mrf.mxu0
    %v472 = vadd.f32 0.0, %v471
    %v473 = vpop.f32.mrf.mxu0
    %474 = vdwg.mxu0
    %v475 = vadd.f32 %v397, %v446
    %v476 = vadd.f32 %v398, %v459
    %v477 = vxor.u32 %v475, 2147483648
    %v478 = vmul.f32 %v477, 1.442695
    %v479 = vpow.pop %v478
    %v480 = vadd.f32 %v479, 1.0
    %v481 = vrcp.pop %v480
    %v482 = vmul.f32 %v480, %v481
    %v483 = vsub.f32 1.0, %v482
    %v484 = vmul.f32 %v481, %v483
    %v485 = vadd.f32 %v481, %v484
    %vm486 = vweird.f32 %v480
    %vm487 = vweird.f32 %v481
    %vm488 = vmor %vm486, %vm487
    %v489 = vsel %vm488, %v481, %v485
    %v490 = vand.u32 2147483647, %v480
    %vm491 = vcmp.eq.f32.partialorder %v490, 8.507059e+37
    %v492 = vand.u32 %v480, 2147483648
    %v493 = vor.u32 1.1754944e-38, %v492
    %v494 = vsel %vm491, %v493, %v489
    %v495 = vmul.f32 1.0, %v494
    %v496 = vxor.u32 %v476, 2147483648
    %v497 = vmul.f32 %v496, 1.442695
    %v498 = vpow.pop %v497
    %v499 = vadd.f32 %v498, 1.0
    %v500 = vrcp.pop %v499
    %v501 = vmul.f32 %v499, %v500
    %v502 = vsub.f32 1.0, %v501
    %v503 = vmul.f32 %v500, %v502
    %v504 = vadd.f32 %v500, %v503
    %vm505 = vweird.f32 %v499
    %vm506 = vweird.f32 %v500
    %vm507 = vmor %vm505, %vm506
    %v508 = vsel %vm507, %v500, %v504
    %v509 = vand.u32 2147483647, %v499
    %vm510 = vcmp.eq.f32.partialorder %v509, 8.507059e+37
    %v511 = vand.u32 %v499, 2147483648
    %v512 = vor.u32 1.1754944e-38, %v511
    %v513 = vsel %vm510, %v512, %v508
    %v514 = vmul.f32 1.0, %v513
    %v515 = vadd.f32 %v472, %v386
    %v516 = vmul.f32 %v495, %v515
    %v517 = vadd.f32 %v399, %v516
    %v518 = vtanh.pop %v517
    %v519 = vsub.f32 1.0, %v514
    %v520 = vmul.f32 %v519, %v518
    %v521 = vmul.f32 %v514, 0.0
    %v522 = vadd.f32 %v520, %v521
    %v523 = vpack.c.bf16 %v522, %v522
    %v532 = vunpack.c.l.b16 %v376
    %v533 = vunpack.c.h.b16 %v376
    %v534 = vunpack.c.l.b16 %v377
    %v535 = vunpack.c.l.b16 %v378
    %v536 = vunpack.c.h.b16 %v378
    %v537 = vunpack.c.l.b16 %v379
    %v538 = vunpack.c.l.b16 %v380
    %v539 = vunpack.c.h.b16 %v380
    %v540 = vunpack.c.l.b16 %v381
    %v541 = vunpack.c.l.b16 %v382
    %v542 = vunpack.c.h.b16 %v382
    %v543 = vunpack.c.l.b16 %v383
    %v544 = vpack.c.b16 %v535, %v532
    %v545 = vpack.c.b16 %v536, %v533
    %v546 = vpack.c.b16 %v537, %v534
    %v547 = vpack.c.b16 %v541, %v538
    %v548 = vpack.c.b16 %v542, %v539
    %v549 = vpack.c.b16 %v543, %v540
    %v557 = vsel %vm432, %v523, 0
    %559 = vmatpush.bf16.msra.mxu0 0
    %560 = vmatpush.bf16.msra.mxu0 0
    %561 = vmatpush.bf16.msra.mxu0 0
    %562 = vmatpush.bf16.msra.mxu0 0
    %563 = vmatpush.bf16.msra.mxu0 0
    %564 = vmatpush.bf16.msra.mxu0 0
    %565 = vmatpush.bf16.msra.mxu0 %v547
    %566 = vmatpush.bf16.msra.mxu0 %v544
    %567 = vmatmul.bf16.gmra.mxu0 %v557
    %v568 = vpop.f32.mrf.mxu0
    %v569 = vadd.f32 %v390, %v568
    %v570 = vpop.f32.mrf.mxu0
    %571 = vdwg.mxu0
    %572 = vmatpush.bf16.msra.mxu0 0
    %573 = vmatpush.bf16.msra.mxu0 0
    %574 = vmatpush.bf16.msra.mxu0 0
    %575 = vmatpush.bf16.msra.mxu0 0
    %576 = vmatpush.bf16.msra.mxu0 0
    %577 = vmatpush.bf16.msra.mxu0 0
    %578 = vmatpush.bf16.msra.mxu0 %v548
    %579 = vmatpush.bf16.msra.mxu0 %v545
    %580 = vmatmul.bf16.gmra.mxu0 %v557
    %v581 = vpop.f32.mrf.mxu0
    %v582 = vadd.f32 %v391, %v581
    %v583 = vpop.f32.mrf.mxu0
    %584 = vdwg.mxu0
    %585 = vmatpush.bf16.msra.mxu0 0
    %586 = vmatpush.bf16.msra.mxu0 0
    %587 = vmatpush.bf16.msra.mxu0 0
    %588 = vmatpush.bf16.msra.mxu0 0
    %589 = vmatpush.bf16.msra.mxu0 0
    %590 = vmatpush.bf16.msra.mxu0 0
    %591 = vmatpush.bf16.msra.mxu0 %v549
    %592 = vmatpush.bf16.msra.mxu0 %v546
    %593 = vmatmul.bf16.gmra.mxu0 %v557
    %v594 = vpop.f32.mrf.mxu0
    %v595 = vadd.f32 %v392, %v594
    %v596 = vpop.f32.mrf.mxu0
    %597 = vdwg.mxu0
    %v600 = vunpack.c.l.b16 %v384
    %v601 = vunpack.c.h.b16 %v384
    %v602 = vunpack.c.l.b16 %v385
    %v603 = vpack.c.b16 %v600, %v600
    %v604 = vpack.c.b16 %v601, %v601
    %v605 = vpack.c.b16 %v602, %v602
    %v606 = vsel %vm196, 0, 0
    %vm608 = vcmask 1043456
    %v610 = vsel %vm608, %v603, 0
    %v613 = vsel %vm608, %v604, 0
    %v616 = vsel %vm608, %v605, 0
    %618 = vmatpush.bf16.msra.mxu0 0
    %619 = vmatpush.bf16.msra.mxu0 0
    %620 = vmatpush.bf16.msra.mxu0 0
    %621 = vmatpush.bf16.msra.mxu0 0
    %622 = vmatpush.bf16.msra.mxu0 0
    %623 = vmatpush.bf16.msra.mxu0 0
    %624 = vmatpush.bf16.msra.mxu0 0
    %625 = vmatpush.bf16.msra.mxu0 %v610
    %626 = vmatmul.bf16.gmra.mxu0 %v606
    %v627 = vpop.f32.mrf.mxu0
    %v628 = vadd.f32 0.0, %v627
    %v629 = vpop.f32.mrf.mxu0
    %630 = vdwg.mxu0
    %631 = vmatpush.bf16.msra.mxu0 0
    %632 = vmatpush.bf16.msra.mxu0 0
    %633 = vmatpush.bf16.msra.mxu0 0
    %634 = vmatpush.bf16.msra.mxu0 0
    %635 = vmatpush.bf16.msra.mxu0 0
    %636 = vmatpush.bf16.msra.mxu0 0
    %637 = vmatpush.bf16.msra.mxu0 0
    %638 = vmatpush.bf16.msra.mxu0 %v613
    %639 = vmatmul.bf16.gmra.mxu0 %v606
    %v640 = vpop.f32.mrf.mxu0
    %v641 = vadd.f32 0.0, %v640
    %v642 = vpop.f32.mrf.mxu0
    %643 = vdwg.mxu0
    %644 = vmatpush.bf16.msra.mxu0 0
    %645 = vmatpush.bf16.msra.mxu0 0
    %646 = vmatpush.bf16.msra.mxu0 0
    %647 = vmatpush.bf16.msra.mxu0 0
    %648 = vmatpush.bf16.msra.mxu0 0
    %649 = vmatpush.bf16.msra.mxu0 0
    %650 = vmatpush.bf16.msra.mxu0 0
    %651 = vmatpush.bf16.msra.mxu0 %v616
    %652 = vmatmul.bf16.gmra.mxu0 %v606
    %v653 = vpop.f32.mrf.mxu0
    %v654 = vadd.f32 0.0, %v653
    %v655 = vpop.f32.mrf.mxu0
    %656 = vdwg.mxu0
    %v657 = vadd.f32 %v569, %v628
    %v658 = vadd.f32 %v582, %v641
    %v659 = vxor.u32 %v657, 2147483648
    %v660 = vmul.f32 %v659, 1.442695
    %v661 = vpow.pop %v660
    %v662 = vadd.f32 %v661, 1.0
    %v663 = vrcp.pop %v662
    %v664 = vmul.f32 %v662, %v663
    %v665 = vsub.f32 1.0, %v664
    %v666 = vmul.f32 %v663, %v665
    %v667 = vadd.f32 %v663, %v666
    %vm668 = vweird.f32 %v662
    %vm669 = vweird.f32 %v663
    %vm670 = vmor %vm668, %vm669
    %v671 = vsel %vm670, %v663, %v667
    %v672 = vand.u32 2147483647, %v662
    %vm673 = vcmp.eq.f32.partialorder %v672, 8.507059e+37
    %v674 = vand.u32 %v662, 2147483648
    %v675 = vor.u32 1.1754944e-38, %v674
    %v676 = vsel %vm673, %v675, %v671
    %v677 = vmul.f32 1.0, %v676
    %v678 = vxor.u32 %v658, 2147483648
    %v679 = vmul.f32 %v678, 1.442695
    %v680 = vpow.pop %v679
    %v681 = vadd.f32 %v680, 1.0
    %v682 = vrcp.pop %v681
    %v683 = vmul.f32 %v681, %v682
    %v684 = vsub.f32 1.0, %v683
    %v685 = vmul.f32 %v682, %v684
    %v686 = vadd.f32 %v682, %v685
    %vm687 = vweird.f32 %v681
    %vm688 = vweird.f32 %v682
    %vm689 = vmor %vm687, %vm688
    %v690 = vsel %vm689, %v682, %v686
    %v691 = vand.u32 2147483647, %v681
    %vm692 = vcmp.eq.f32.partialorder %v691, 8.507059e+37
    %v693 = vand.u32 %v681, 2147483648
    %v694 = vor.u32 1.1754944e-38, %v693
    %v695 = vsel %vm692, %v694, %v690
    %v696 = vmul.f32 1.0, %v695
    %v697 = vadd.f32 %v654, %v396
    %v698 = vmul.f32 %v677, %v697
    %v699 = vadd.f32 %v595, %v698
    %v700 = vtanh.pop %v699
    %v701 = vsub.f32 1.0, %v696
    %v702 = vmul.f32 %v701, %v700
    %v703 = vmul.f32 %v696, 0.0
    %v704 = vadd.f32 %v702, %v703
    %v705 = vld [vmem:[#allocation2 + $0x18] sm:$0xff]
    %v706 = vld [vmem:[#allocation2 + $0x20] sm:$0xff]
    %v707 = vld [vmem:[#allocation2 + $0x28] sm:$0xff]
    %708 = vmatpush.bf16.msra.mxu0 0
    %709 = vmatpush.bf16.msra.mxu0 0
    %710 = vmatpush.bf16.msra.mxu0 0
    %711 = vmatpush.bf16.msra.mxu0 0
    %712 = vmatpush.bf16.msra.mxu0 0
    %713 = vmatpush.bf16.msra.mxu0 0
    %714 = vmatpush.bf16.msra.mxu0 %v423
    %715 = vmatpush.bf16.msra.mxu0 %v420
    %716 = vmatmul.bf16.gmra.mxu0 %v557
    %v717 = vpop.f32.mrf.mxu0
    %v718 = vadd.f32 0.0, %v717
    %v719 = vpop.f32.mrf.mxu0
    %720 = vdwg.mxu0
    %721 = vmatpush.bf16.msra.mxu0 0
    %722 = vmatpush.bf16.msra.mxu0 0
    %723 = vmatpush.bf16.msra.mxu0 0
    %724 = vmatpush.bf16.msra.mxu0 0
    %725 = vmatpush.bf16.msra.mxu0 0
    %726 = vmatpush.bf16.msra.mxu0 0
    %727 = vmatpush.bf16.msra.mxu0 %v424
    %728 = vmatpush.bf16.msra.mxu0 %v421
    %729 = vmatmul.bf16.gmra.mxu0 %v557
    %v730 = vpop.f32.mrf.mxu0
    %v731 = vadd.f32 0.0, %v730
    %v732 = vpop.f32.mrf.mxu0
    %733 = vdwg.mxu0
    %734 = vmatpush.bf16.msra.mxu0 0
    %735 = vmatpush.bf16.msra.mxu0 0
    %736 = vmatpush.bf16.msra.mxu0 0
    %737 = vmatpush.bf16.msra.mxu0 0
    %738 = vmatpush.bf16.msra.mxu0 0
    %739 = vmatpush.bf16.msra.mxu0 0
    %740 = vmatpush.bf16.msra.mxu0 %v425
    %741 = vmatpush.bf16.msra.mxu0 %v422
    %742 = vmatmul.bf16.gmra.mxu0 %v557
    %v743 = vpop.f32.mrf.mxu0
    %v744 = vadd.f32 0.0, %v743
    %v745 = vpop.f32.mrf.mxu0
    %746 = vdwg.mxu0
    %v747 = vadd.f32 %v705, %v718
    %v748 = vadd.f32 %v706, %v731
    %v749 = vxor.u32 %v747, 2147483648
    %v750 = vmul.f32 %v749, 1.442695
    %v751 = vpow.pop %v750
    %v752 = vadd.f32 %v751, 1.0
    %v753 = vrcp.pop %v752
    %v754 = vmul.f32 %v752, %v753
    %v755 = vsub.f32 1.0, %v754
    %v756 = vmul.f32 %v753, %v755
    %v757 = vadd.f32 %v753, %v756
    %vm758 = vweird.f32 %v752
    %vm759 = vweird.f32 %v753
    %vm760 = vmor %vm758, %vm759
    %v761 = vsel %vm760, %v753, %v757
    %v762 = vand.u32 2147483647, %v752
    %vm763 = vcmp.eq.f32.partialorder %v762, 8.507059e+37
    %v764 = vand.u32 %v752, 2147483648
    %v765 = vor.u32 1.1754944e-38, %v764
    %v766 = vsel %vm763, %v765, %v761
    %v767 = vmul.f32 1.0, %v766
    %v768 = vxor.u32 %v748, 2147483648
    %v769 = vmul.f32 %v768, 1.442695
    %v770 = vpow.pop %v769
    %v771 = vadd.f32 %v770, 1.0
    %v772 = vrcp.pop %v771
    %v773 = vmul.f32 %v771, %v772
    %v774 = vsub.f32 1.0, %v773
    %v775 = vmul.f32 %v772, %v774
    %v776 = vadd.f32 %v772, %v775
    %vm777 = vweird.f32 %v771
    %vm778 = vweird.f32 %v772
    %vm779 = vmor %vm777, %vm778
    %v780 = vsel %vm779, %v772, %v776
    %v781 = vand.u32 2147483647, %v771
    %vm782 = vcmp.eq.f32.partialorder %v781, 8.507059e+37
    %v783 = vand.u32 %v771, 2147483648
    %v784 = vor.u32 1.1754944e-38, %v783
    %v785 = vsel %vm782, %v784, %v780
    %v786 = vmul.f32 1.0, %v785
    %v787 = vadd.f32 %v744, %v386
    %v788 = vmul.f32 %v767, %v787
    %v789 = vadd.f32 %v707, %v788
    %v790 = vtanh.pop %v789
    %v791 = vsub.f32 1.0, %v786
    %v792 = vmul.f32 %v791, %v790
    %v793 = vmul.f32 %v786, %v522
    %v794 = vadd.f32 %v792, %v793
    %v795 = vpack.c.bf16 %v794, %v794
    %v797 = vsel %vm432, %v795, 0
    %799 = vmatpush.bf16.msra.mxu0 0
    %800 = vmatpush.bf16.msra.mxu0 0
    %801 = vmatpush.bf16.msra.mxu0 0
    %802 = vmatpush.bf16.msra.mxu0 0
    %803 = vmatpush.bf16.msra.mxu0 0
    %804 = vmatpush.bf16.msra.mxu0 0
    %805 = vmatpush.bf16.msra.mxu0 %v547
    %806 = vmatpush.bf16.msra.mxu0 %v544
    %807 = vmatmul.bf16.gmra.mxu0 %v797
    %v808 = vpop.f32.mrf.mxu0
    %v809 = vadd.f32 %v390, %v808
    %v810 = vpop.f32.mrf.mxu0
    %811 = vdwg.mxu0
    %812 = vmatpush.bf16.msra.mxu0 0
    %813 = vmatpush.bf16.msra.mxu0 0
    %814 = vmatpush.bf16.msra.mxu0 0
    %815 = vmatpush.bf16.msra.mxu0 0
    %816 = vmatpush.bf16.msra.mxu0 0
    %817 = vmatpush.bf16.msra.mxu0 0
    %818 = vmatpush.bf16.msra.mxu0 %v548
    %819 = vmatpush.bf16.msra.mxu0 %v545
    %820 = vmatmul.bf16.gmra.mxu0 %v797
    %v821 = vpop.f32.mrf.mxu0
    %v822 = vadd.f32 %v391, %v821
    %v823 = vpop.f32.mrf.mxu0
    %824 = vdwg.mxu0
    %825 = vmatpush.bf16.msra.mxu0 0
    %826 = vmatpush.bf16.msra.mxu0 0
    %827 = vmatpush.bf16.msra.mxu0 0
    %828 = vmatpush.bf16.msra.mxu0 0
    %829 = vmatpush.bf16.msra.mxu0 0
    %830 = vmatpush.bf16.msra.mxu0 0
    %831 = vmatpush.bf16.msra.mxu0 %v549
    %832 = vmatpush.bf16.msra.mxu0 %v546
    %833 = vmatmul.bf16.gmra.mxu0 %v797
    %v834 = vpop.f32.mrf.mxu0
    %v835 = vadd.f32 %v392, %v834
    %v836 = vpop.f32.mrf.mxu0
    %837 = vdwg.mxu0
    %v838 = vpack.c.bf16 %v704, %v704
    %v840 = vsel %vm196, %v838, 0
    %842 = vmatpush.bf16.msra.mxu0 0
    %843 = vmatpush.bf16.msra.mxu0 0
    %844 = vmatpush.bf16.msra.mxu0 0
    %845 = vmatpush.bf16.msra.mxu0 0
    %846 = vmatpush.bf16.msra.mxu0 0
    %847 = vmatpush.bf16.msra.mxu0 0
    %848 = vmatpush.bf16.msra.mxu0 0
    %849 = vmatpush.bf16.msra.mxu0 %v610
    %850 = vmatmul.bf16.gmra.mxu0 %v840
    %v851 = vpop.f32.mrf.mxu0
    %v852 = vadd.f32 0.0, %v851
    %v853 = vpop.f32.mrf.mxu0
    %854 = vdwg.mxu0
    %855 = vmatpush.bf16.msra.mxu0 0
    %856 = vmatpush.bf16.msra.mxu0 0
    %857 = vmatpush.bf16.msra.mxu0 0
    %858 = vmatpush.bf16.msra.mxu0 0
    %859 = vmatpush.bf16.msra.mxu0 0
    %860 = vmatpush.bf16.msra.mxu0 0
    %861 = vmatpush.bf16.msra.mxu0 0
    %862 = vmatpush.bf16.msra.mxu0 %v613
    %863 = vmatmul.bf16.gmra.mxu0 %v840
    %v864 = vpop.f32.mrf.mxu0
    %v865 = vadd.f32 0.0, %v864
    %v866 = vpop.f32.mrf.mxu0
    %867 = vdwg.mxu0
    %868 = vmatpush.bf16.msra.mxu0 0
    %869 = vmatpush.bf16.msra.mxu0 0
    %870 = vmatpush.bf16.msra.mxu0 0
    %871 = vmatpush.bf16.msra.mxu0 0
    %872 = vmatpush.bf16.msra.mxu0 0
    %873 = vmatpush.bf16.msra.mxu0 0
    %874 = vmatpush.bf16.msra.mxu0 0
    %875 = vmatpush.bf16.msra.mxu0 %v616
    %876 = vmatmul.bf16.gmra.mxu0 %v840
    %v877 = vpop.f32.mrf.mxu0
    %v878 = vadd.f32 0.0, %v877
    %v879 = vpop.f32.mrf.mxu0
    %880 = vdwg.mxu0
    %v881 = vadd.f32 %v809, %v852
    %v882 = vadd.f32 %v822, %v865
    %v883 = vxor.u32 %v881, 2147483648
    %v884 = vmul.f32 %v883, 1.442695
    %v885 = vpow.pop %v884
    %v886 = vadd.f32 %v885, 1.0
    %v887 = vrcp.pop %v886
    %v888 = vmul.f32 %v886, %v887
    %v889 = vsub.f32 1.0, %v888
    %v890 = vmul.f32 %v887, %v889
    %v891 = vadd.f32 %v887, %v890
    %vm892 = vweird.f32 %v886
    %vm893 = vweird.f32 %v887
    %vm894 = vmor %vm892, %vm893
    %v895 = vsel %vm894, %v887, %v891
    %v896 = vand.u32 2147483647, %v886
    %vm897 = vcmp.eq.f32.partialorder %v896, 8.507059e+37
    %v898 = vand.u32 %v886, 2147483648
    %v899 = vor.u32 1.1754944e-38, %v898
    %v900 = vsel %vm897, %v899, %v895
    %v901 = vmul.f32 1.0, %v900
    %v902 = vxor.u32 %v882, 2147483648
    %v903 = vmul.f32 %v902, 1.442695
    %v904 = vpow.pop %v903
    %v905 = vadd.f32 %v904, 1.0
    %v906 = vrcp.pop %v905
    %v907 = vmul.f32 %v905, %v906
    %v908 = vsub.f32 1.0, %v907
    %v909 = vmul.f32 %v906, %v908
    %v910 = vadd.f32 %v906, %v909
    %vm911 = vweird.f32 %v905
    %vm912 = vweird.f32 %v906
    %vm913 = vmor %vm911, %vm912
    %v914 = vsel %vm913, %v906, %v910
    %v915 = vand.u32 2147483647, %v905
    %vm916 = vcmp.eq.f32.partialorder %v915, 8.507059e+37
    %v917 = vand.u32 %v905, 2147483648
    %v918 = vor.u32 1.1754944e-38, %v917
    %v919 = vsel %vm916, %v918, %v914
    %v920 = vmul.f32 1.0, %v919
    %v921 = vadd.f32 %v878, %v396
    %v922 = vmul.f32 %v901, %v921
    %v923 = vadd.f32 %v835, %v922
    %v924 = vtanh.pop %v923
    %v925 = vsub.f32 1.0, %v920
    %v926 = vmul.f32 %v925, %v924
    %v927 = vmul.f32 %v920, %v704
    %v928 = vadd.f32 %v926, %v927
    %v929 = vld [vmem:[#allocation2 + $0x30] sm:$0xff]
    %v930 = vld [vmem:[#allocation2 + $0x38] sm:$0xff]
    %v931 = vld [vmem:[#allocation2 + $0x40] sm:$0xff]
    %932 = vmatpush.bf16.msra.mxu0 0
    %933 = vmatpush.bf16.msra.mxu0 0
    %934 = vmatpush.bf16.msra.mxu0 0
    %935 = vmatpush.bf16.msra.mxu0 0
    %936 = vmatpush.bf16.msra.mxu0 0
    %937 = vmatpush.bf16.msra.mxu0 0
    %938 = vmatpush.bf16.msra.mxu0 %v423
    %939 = vmatpush.bf16.msra.mxu0 %v420
    %940 = vmatmul.bf16.gmra.mxu0 %v797
    %v941 = vpop.f32.mrf.mxu0
    %v942 = vadd.f32 0.0, %v941
    %v943 = vpop.f32.mrf.mxu0
    %944 = vdwg.mxu0
    %945 = vmatpush.bf16.msra.mxu0 0
    %946 = vmatpush.bf16.msra.mxu0 0
    %947 = vmatpush.bf16.msra.mxu0 0
    %948 = vmatpush.bf16.msra.mxu0 0
    %949 = vmatpush.bf16.msra.mxu0 0
    %950 = vmatpush.bf16.msra.mxu0 0
    %951 = vmatpush.bf16.msra.mxu0 %v424
    %952 = vmatpush.bf16.msra.mxu0 %v421
    %953 = vmatmul.bf16.gmra.mxu0 %v797
    %v954 = vpop.f32.mrf.mxu0
    %v955 = vadd.f32 0.0, %v954
    %v956 = vpop.f32.mrf.mxu0
    %957 = vdwg.mxu0
    %958 = vmatpush.bf16.msra.mxu0 0
    %959 = vmatpush.bf16.msra.mxu0 0
    %960 = vmatpush.bf16.msra.mxu0 0
    %961 = vmatpush.bf16.msra.mxu0 0
    %962 = vmatpush.bf16.msra.mxu0 0
    %963 = vmatpush.bf16.msra.mxu0 0
    %964 = vmatpush.bf16.msra.mxu0 %v425
    %965 = vmatpush.bf16.msra.mxu0 %v422
    %966 = vmatmul.bf16.gmra.mxu0 %v797
    %v967 = vpop.f32.mrf.mxu0
    %v968 = vadd.f32 0.0, %v967
    %v969 = vpop.f32.mrf.mxu0
    %970 = vdwg.mxu0
    %v971 = vadd.f32 %v929, %v942
    %v972 = vadd.f32 %v930, %v955
    %v973 = vxor.u32 %v971, 2147483648
    %v974 = vmul.f32 %v973, 1.442695
    %v975 = vpow.pop %v974
    %v976 = vadd.f32 %v975, 1.0
    %v977 = vrcp.pop %v976
    %v978 = vmul.f32 %v976, %v977
    %v979 = vsub.f32 1.0, %v978
    %v980 = vmul.f32 %v977, %v979
    %v981 = vadd.f32 %v977, %v980
    %vm982 = vweird.f32 %v976
    %vm983 = vweird.f32 %v977
    %vm984 = vmor %vm982, %vm983
    %v985 = vsel %vm984, %v977, %v981
    %v986 = vand.u32 2147483647, %v976
    %vm987 = vcmp.eq.f32.partialorder %v986, 8.507059e+37
    %v988 = vand.u32 %v976, 2147483648
    %v989 = vor.u32 1.1754944e-38, %v988
    %v990 = vsel %vm987, %v989, %v985
    %v991 = vmul.f32 1.0, %v990
    %v992 = vxor.u32 %v972, 2147483648
    %v993 = vmul.f32 %v992, 1.442695
    %v994 = vpow.pop %v993
    %v995 = vadd.f32 %v994, 1.0
    %v996 = vrcp.pop %v995
    %v997 = vmul.f32 %v995, %v996
    %v998 = vsub.f32 1.0, %v997
    %v999 = vmul.f32 %v996, %v998
    %v1000 = vadd.f32 %v996, %v999
    %vm1001 = vweird.f32 %v995
    %vm1002 = vweird.f32 %v996
    %vm1003 = vmor %vm1001, %vm1002
    %v1004 = vsel %vm1003, %v996, %v1000
    %v1005 = vand.u32 2147483647, %v995
    %vm1006 = vcmp.eq.f32.partialorder %v1005, 8.507059e+37
    %v1007 = vand.u32 %v995, 2147483648
    %v1008 = vor.u32 1.1754944e-38, %v1007
    %v1009 = vsel %vm1006, %v1008, %v1004
    %v1010 = vmul.f32 1.0, %v1009
    %v1011 = vadd.f32 %v968, %v386
    %v1012 = vmul.f32 %v991, %v1011
    %v1013 = vadd.f32 %v931, %v1012
    %v1014 = vtanh.pop %v1013
    %v1015 = vsub.f32 1.0, %v1010
    %v1016 = vmul.f32 %v1015, %v1014
    %v1017 = vmul.f32 %v1010, %v794
    %v1018 = vadd.f32 %v1016, %v1017
    %v1019 = vpack.c.bf16 %v1018, %v1018
    %v1021 = vsel %vm432, %v1019, 0
    %1023 = vmatpush.bf16.msra.mxu0 0
    %1024 = vmatpush.bf16.msra.mxu0 0
    %1025 = vmatpush.bf16.msra.mxu0 0
    %1026 = vmatpush.bf16.msra.mxu0 0
    %1027 = vmatpush.bf16.msra.mxu0 0
    %1028 = vmatpush.bf16.msra.mxu0 0
    %1029 = vmatpush.bf16.msra.mxu0 %v547
    %1030 = vmatpush.bf16.msra.mxu0 %v544
    %1031 = vmatmul.bf16.gmra.mxu0 %v1021
    %v1032 = vpop.f32.mrf.mxu0
    %v1033 = vadd.f32 %v390, %v1032
    %v1034 = vpop.f32.mrf.mxu0
    %1035 = vdwg.mxu0
    %1036 = vmatpush.bf16.msra.mxu0 0
    %1037 = vmatpush.bf16.msra.mxu0 0
    %1038 = vmatpush.bf16.msra.mxu0 0
    %1039 = vmatpush.bf16.msra.mxu0 0
    %1040 = vmatpush.bf16.msra.mxu0 0
    %1041 = vmatpush.bf16.msra.mxu0 0
    %1042 = vmatpush.bf16.msra.mxu0 %v548
    %1043 = vmatpush.bf16.msra.mxu0 %v545
    %1044 = vmatmul.bf16.gmra.mxu0 %v1021
    %v1045 = vpop.f32.mrf.mxu0
    %v1046 = vadd.f32 %v391, %v1045
    %v1047 = vpop.f32.mrf.mxu0
    %1048 = vdwg.mxu0
    %1049 = vmatpush.bf16.msra.mxu0 0
    %1050 = vmatpush.bf16.msra.mxu0 0
    %1051 = vmatpush.bf16.msra.mxu0 0
    %1052 = vmatpush.bf16.msra.mxu0 0
    %1053 = vmatpush.bf16.msra.mxu0 0
    %1054 = vmatpush.bf16.msra.mxu0 0
    %1055 = vmatpush.bf16.msra.mxu0 %v549
    %1056 = vmatpush.bf16.msra.mxu0 %v546
    %1057 = vmatmul.bf16.gmra.mxu0 %v1021
    %v1058 = vpop.f32.mrf.mxu0
    %v1059 = vadd.f32 %v392, %v1058
    %v1060 = vpop.f32.mrf.mxu0
    %1061 = vdwg.mxu0
    %v1062 = vpack.c.bf16 %v928, %v928
    %v1064 = vsel %vm196, %v1062, 0
    %1066 = vmatpush.bf16.msra.mxu0 0
    %1067 = vmatpush.bf16.msra.mxu0 0
    %1068 = vmatpush.bf16.msra.mxu0 0
    %1069 = vmatpush.bf16.msra.mxu0 0
    %1070 = vmatpush.bf16.msra.mxu0 0
    %1071 = vmatpush.bf16.msra.mxu0 0
    %1072 = vmatpush.bf16.msra.mxu0 0
    %1073 = vmatpush.bf16.msra.mxu0 %v610
    %1074 = vmatmul.bf16.gmra.mxu0 %v1064
    %v1075 = vpop.f32.mrf.mxu0
    %v1076 = vadd.f32 0.0, %v1075
    %v1077 = vpop.f32.mrf.mxu0
    %1078 = vdwg.mxu0
    %1079 = vmatpush.bf16.msra.mxu0 0
    %1080 = vmatpush.bf16.msra.mxu0 0
    %1081 = vmatpush.bf16.msra.mxu0 0
    %1082 = vmatpush.bf16.msra.mxu0 0
    %1083 = vmatpush.bf16.msra.mxu0 0
    %1084 = vmatpush.bf16.msra.mxu0 0
    %1085 = vmatpush.bf16.msra.mxu0 0
    %1086 = vmatpush.bf16.msra.mxu0 %v613
    %1087 = vmatmul.bf16.gmra.mxu0 %v1064
    %v1088 = vpop.f32.mrf.mxu0
    %v1089 = vadd.f32 0.0, %v1088
    %v1090 = vpop.f32.mrf.mxu0
    %1091 = vdwg.mxu0
    %1092 = vmatpush.bf16.msra.mxu0 0
    %1093 = vmatpush.bf16.msra.mxu0 0
    %1094 = vmatpush.bf16.msra.mxu0 0
    %1095 = vmatpush.bf16.msra.mxu0 0
    %1096 = vmatpush.bf16.msra.mxu0 0
    %1097 = vmatpush.bf16.msra.mxu0 0
    %1098 = vmatpush.bf16.msra.mxu0 0
    %1099 = vmatpush.bf16.msra.mxu0 %v616
    %1100 = vmatmul.bf16.gmra.mxu0 %v1064
    %v1101 = vpop.f32.mrf.mxu0
    %v1102 = vadd.f32 0.0, %v1101
    %v1103 = vpop.f32.mrf.mxu0
    %1104 = vdwg.mxu0
    %v1105 = vadd.f32 %v1033, %v1076
    %v1106 = vadd.f32 %v1046, %v1089
    %v1107 = vxor.u32 %v1105, 2147483648
    %v1108 = vmul.f32 %v1107, 1.442695
    %v1109 = vpow.pop %v1108
    %v1110 = vadd.f32 %v1109, 1.0
    %v1111 = vrcp.pop %v1110
    %v1112 = vmul.f32 %v1110, %v1111
    %v1113 = vsub.f32 1.0, %v1112
    %v1114 = vmul.f32 %v1111, %v1113
    %v1115 = vadd.f32 %v1111, %v1114
    %vm1116 = vweird.f32 %v1110
    %vm1117 = vweird.f32 %v1111
    %vm1118 = vmor %vm1116, %vm1117
    %v1119 = vsel %vm1118, %v1111, %v1115
    %v1120 = vand.u32 2147483647, %v1110
    %vm1121 = vcmp.eq.f32.partialorder %v1120, 8.507059e+37
    %v1122 = vand.u32 %v1110, 2147483648
    %v1123 = vor.u32 1.1754944e-38, %v1122
    %v1124 = vsel %vm1121, %v1123, %v1119
    %v1125 = vmul.f32 1.0, %v1124
    %v1126 = vxor.u32 %v1106, 2147483648
    %v1127 = vmul.f32 %v1126, 1.442695
    %v1128 = vpow.pop %v1127
    %v1129 = vadd.f32 %v1128, 1.0
    %v1130 = vrcp.pop %v1129
    %v1131 = vmul.f32 %v1129, %v1130
    %v1132 = vsub.f32 1.0, %v1131
    %v1133 = vmul.f32 %v1130, %v1132
    %v1134 = vadd.f32 %v1130, %v1133
    %vm1135 = vweird.f32 %v1129
    %vm1136 = vweird.f32 %v1130
    %vm1137 = vmor %vm1135, %vm1136
    %v1138 = vsel %vm1137, %v1130, %v1134
    %v1139 = vand.u32 2147483647, %v1129
    %vm1140 = vcmp.eq.f32.partialorder %v1139, 8.507059e+37
    %v1141 = vand.u32 %v1129, 2147483648
    %v1142 = vor.u32 1.1754944e-38, %v1141
    %v1143 = vsel %vm1140, %v1142, %v1138
    %v1144 = vmul.f32 1.0, %v1143
    %v1145 = vadd.f32 %v1102, %v396
    %v1146 = vmul.f32 %v1125, %v1145
    %v1147 = vadd.f32 %v1059, %v1146
    %v1148 = vtanh.pop %v1147
    %v1149 = vsub.f32 1.0, %v1144
    %v1150 = vmul.f32 %v1149, %v1148
    %v1151 = vmul.f32 %v1144, %v928
    %v1152 = vadd.f32 %v1150, %v1151
    %v1153 = vld [vmem:[#allocation2 + $0x48] sm:$0xff]
    %v1154 = vld [vmem:[#allocation2 + $0x50] sm:$0xff]
    %v1155 = vld [vmem:[#allocation2 + $0x58] sm:$0xff]
    %1156 = vmatpush.bf16.msra.mxu0 0
    %1157 = vmatpush.bf16.msra.mxu0 0
    %1158 = vmatpush.bf16.msra.mxu0 0
    %1159 = vmatpush.bf16.msra.mxu0 0
    %1160 = vmatpush.bf16.msra.mxu0 0
    %1161 = vmatpush.bf16.msra.mxu0 0
    %1162 = vmatpush.bf16.msra.mxu0 %v423
    %1163 = vmatpush.bf16.msra.mxu0 %v420
    %1164 = vmatmul.bf16.gmra.mxu0 %v1021
    %v1165 = vpop.f32.mrf.mxu0
    %v1166 = vadd.f32 0.0, %v1165
    %v1167 = vpop.f32.mrf.mxu0
    %1168 = vdwg.mxu0
    %1169 = vmatpush.bf16.msra.mxu0 0
    %1170 = vmatpush.bf16.msra.mxu0 0
    %1171 = vmatpush.bf16.msra.mxu0 0
    %1172 = vmatpush.bf16.msra.mxu0 0
    %1173 = vmatpush.bf16.msra.mxu0 0
    %1174 = vmatpush.bf16.msra.mxu0 0
    %1175 = vmatpush.bf16.msra.mxu0 %v424
    %1176 = vmatpush.bf16.msra.mxu0 %v421
    %1177 = vmatmul.bf16.gmra.mxu0 %v1021
    %v1178 = vpop.f32.mrf.mxu0
    %v1179 = vadd.f32 0.0, %v1178
    %v1180 = vpop.f32.mrf.mxu0
    %1181 = vdwg.mxu0
    %1182 = vmatpush.bf16.msra.mxu0 0
    %1183 = vmatpush.bf16.msra.mxu0 0
    %1184 = vmatpush.bf16.msra.mxu0 0
    %1185 = vmatpush.bf16.msra.mxu0 0
    %1186 = vmatpush.bf16.msra.mxu0 0
    %1187 = vmatpush.bf16.msra.mxu0 0
    %1188 = vmatpush.bf16.msra.mxu0 %v425
    %1189 = vmatpush.bf16.msra.mxu0 %v422
    %1190 = vmatmul.bf16.gmra.mxu0 %v1021
    %v1191 = vpop.f32.mrf.mxu0
    %v1192 = vadd.f32 0.0, %v1191
    %v1193 = vpop.f32.mrf.mxu0
    %1194 = vdwg.mxu0
    %v1195 = vadd.f32 %v1153, %v1166
    %v1196 = vadd.f32 %v1154, %v1179
    %v1197 = vxor.u32 %v1195, 2147483648
    %v1198 = vmul.f32 %v1197, 1.442695
    %v1199 = vpow.pop %v1198
    %v1200 = vadd.f32 %v1199, 1.0
    %v1201 = vrcp.pop %v1200
    %v1202 = vmul.f32 %v1200, %v1201
    %v1203 = vsub.f32 1.0, %v1202
    %v1204 = vmul.f32 %v1201, %v1203
    %v1205 = vadd.f32 %v1201, %v1204
    %vm1206 = vweird.f32 %v1200
    %vm1207 = vweird.f32 %v1201
    %vm1208 = vmor %vm1206, %vm1207
    %v1209 = vsel %vm1208, %v1201, %v1205
    %v1210 = vand.u32 2147483647, %v1200
    %vm1211 = vcmp.eq.f32.partialorder %v1210, 8.507059e+37
    %v1212 = vand.u32 %v1200, 2147483648
    %v1213 = vor.u32 1.1754944e-38, %v1212
    %v1214 = vsel %vm1211, %v1213, %v1209
    %v1215 = vmul.f32 1.0, %v1214
    %v1216 = vxor.u32 %v1196, 2147483648
    %v1217 = vmul.f32 %v1216, 1.442695
    %v1218 = vpow.pop %v1217
    %v1219 = vadd.f32 %v1218, 1.0
    %v1220 = vrcp.pop %v1219
    %v1221 = vmul.f32 %v1219, %v1220
    %v1222 = vsub.f32 1.0, %v1221
    %v1223 = vmul.f32 %v1220, %v1222
    %v1224 = vadd.f32 %v1220, %v1223
    %vm1225 = vweird.f32 %v1219
    %vm1226 = vweird.f32 %v1220
    %vm1227 = vmor %vm1225, %vm1226
    %v1228 = vsel %vm1227, %v1220, %v1224
    %v1229 = vand.u32 2147483647, %v1219
    %vm1230 = vcmp.eq.f32.partialorder %v1229, 8.507059e+37
    %v1231 = vand.u32 %v1219, 2147483648
    %v1232 = vor.u32 1.1754944e-38, %v1231
    %v1233 = vsel %vm1230, %v1232, %v1228
    %v1234 = vmul.f32 1.0, %v1233
    %v1235 = vadd.f32 %v1192, %v386
    %v1236 = vmul.f32 %v1215, %v1235
    %v1237 = vadd.f32 %v1155, %v1236
    %v1238 = vtanh.pop %v1237
    %v1239 = vsub.f32 1.0, %v1234
    %v1240 = vmul.f32 %v1239, %v1238
    %v1241 = vmul.f32 %v1234, %v1018
    %v1242 = vadd.f32 %v1240, %v1241
    %v1243 = vpack.c.bf16 %v1242, %v1242
    %v1245 = vsel %vm432, %v1243, 0
    %1247 = vmatpush.bf16.msra.mxu0 0
    %1248 = vmatpush.bf16.msra.mxu0 0
    %1249 = vmatpush.bf16.msra.mxu0 0
    %1250 = vmatpush.bf16.msra.mxu0 0
    %1251 = vmatpush.bf16.msra.mxu0 0
    %1252 = vmatpush.bf16.msra.mxu0 0
    %1253 = vmatpush.bf16.msra.mxu0 %v547
    %1254 = vmatpush.bf16.msra.mxu0 %v544
    %1255 = vmatmul.bf16.gmra.mxu0 %v1245
    %v1256 = vpop.f32.mrf.mxu0
    %v1257 = vadd.f32 %v390, %v1256
    %v1258 = vpop.f32.mrf.mxu0
    %1259 = vdwg.mxu0
    %1260 = vmatpush.bf16.msra.mxu0 0
    %1261 = vmatpush.bf16.msra.mxu0 0
    %1262 = vmatpush.bf16.msra.mxu0 0
    %1263 = vmatpush.bf16.msra.mxu0 0
    %1264 = vmatpush.bf16.msra.mxu0 0
    %1265 = vmatpush.bf16.msra.mxu0 0
    %1266 = vmatpush.bf16.msra.mxu0 %v548
    %1267 = vmatpush.bf16.msra.mxu0 %v545
    %1268 = vmatmul.bf16.gmra.mxu0 %v1245
    %v1269 = vpop.f32.mrf.mxu0
    %v1270 = vadd.f32 %v391, %v1269
    %v1271 = vpop.f32.mrf.mxu0
    %1272 = vdwg.mxu0
    %1273 = vmatpush.bf16.msra.mxu0 0
    %1274 = vmatpush.bf16.msra.mxu0 0
    %1275 = vmatpush.bf16.msra.mxu0 0
    %1276 = vmatpush.bf16.msra.mxu0 0
    %1277 = vmatpush.bf16.msra.mxu0 0
    %1278 = vmatpush.bf16.msra.mxu0 0
    %1279 = vmatpush.bf16.msra.mxu0 %v549
    %1280 = vmatpush.bf16.msra.mxu0 %v546
    %1281 = vmatmul.bf16.gmra.mxu0 %v1245
    %v1282 = vpop.f32.mrf.mxu0
    %v1283 = vadd.f32 %v392, %v1282
    %v1284 = vpop.f32.mrf.mxu0
    %1285 = vdwg.mxu0
    %v1286 = vpack.c.bf16 %v1152, %v1152
    %v1288 = vsel %vm196, %v1286, 0
    %1290 = vmatpush.bf16.msra.mxu0 0
    %1291 = vmatpush.bf16.msra.mxu0 0
    %1292 = vmatpush.bf16.msra.mxu0 0
    %1293 = vmatpush.bf16.msra.mxu0 0
    %1294 = vmatpush.bf16.msra.mxu0 0
    %1295 = vmatpush.bf16.msra.mxu0 0
    %1296 = vmatpush.bf16.msra.mxu0 0
    %1297 = vmatpush.bf16.msra.mxu0 %v610
    %1298 = vmatmul.bf16.gmra.mxu0 %v1288
    %v1299 = vpop.f32.mrf.mxu0
    %v1300 = vadd.f32 0.0, %v1299
    %v1301 = vpop.f32.mrf.mxu0
    %1302 = vdwg.mxu0
    %1303 = vmatpush.bf16.msra.mxu0 0
    %1304 = vmatpush.bf16.msra.mxu0 0
    %1305 = vmatpush.bf16.msra.mxu0 0
    %1306 = vmatpush.bf16.msra.mxu0 0
    %1307 = vmatpush.bf16.msra.mxu0 0
    %1308 = vmatpush.bf16.msra.mxu0 0
    %1309 = vmatpush.bf16.msra.mxu0 0
    %1310 = vmatpush.bf16.msra.mxu0 %v613
    %1311 = vmatmul.bf16.gmra.mxu0 %v1288
    %v1312 = vpop.f32.mrf.mxu0
    %v1313 = vadd.f32 0.0, %v1312
    %v1314 = vpop.f32.mrf.mxu0
    %1315 = vdwg.mxu0
    %1316 = vmatpush.bf16.msra.mxu0 0
    %1317 = vmatpush.bf16.msra.mxu0 0
    %1318 = vmatpush.bf16.msra.mxu0 0
    %1319 = vmatpush.bf16.msra.mxu0 0
    %1320 = vmatpush.bf16.msra.mxu0 0
    %1321 = vmatpush.bf16.msra.mxu0 0
    %1322 = vmatpush.bf16.msra.mxu0 0
    %1323 = vmatpush.bf16.msra.mxu0 %v616
    %1324 = vmatmul.bf16.gmra.mxu0 %v1288
    %v1325 = vpop.f32.mrf.mxu0
    %v1326 = vadd.f32 0.0, %v1325
    %v1327 = vpop.f32.mrf.mxu0
    %1328 = vdwg.mxu0
    %v1329 = vadd.f32 %v1257, %v1300
    %v1330 = vadd.f32 %v1270, %v1313
    %v1331 = vxor.u32 %v1329, 2147483648
    %v1332 = vmul.f32 %v1331, 1.442695
    %v1333 = vpow.pop %v1332
    %v1334 = vadd.f32 %v1333, 1.0
    %v1335 = vrcp.pop %v1334
    %v1336 = vmul.f32 %v1334, %v1335
    %v1337 = vsub.f32 1.0, %v1336
    %v1338 = vmul.f32 %v1335, %v1337
    %v1339 = vadd.f32 %v1335, %v1338
    %vm1340 = vweird.f32 %v1334
    %vm1341 = vweird.f32 %v1335
    %vm1342 = vmor %vm1340, %vm1341
    %v1343 = vsel %vm1342, %v1335, %v1339
    %v1344 = vand.u32 2147483647, %v1334
    %vm1345 = vcmp.eq.f32.partialorder %v1344, 8.507059e+37
    %v1346 = vand.u32 %v1334, 2147483648
    %v1347 = vor.u32 1.1754944e-38, %v1346
    %v1348 = vsel %vm1345, %v1347, %v1343
    %v1349 = vmul.f32 1.0, %v1348
    %v1350 = vxor.u32 %v1330, 2147483648
    %v1351 = vmul.f32 %v1350, 1.442695
    %v1352 = vpow.pop %v1351
    %v1353 = vadd.f32 %v1352, 1.0
    %v1354 = vrcp.pop %v1353
    %v1355 = vmul.f32 %v1353, %v1354
    %v1356 = vsub.f32 1.0, %v1355
    %v1357 = vmul.f32 %v1354, %v1356
    %v1358 = vadd.f32 %v1354, %v1357
    %vm1359 = vweird.f32 %v1353
    %vm1360 = vweird.f32 %v1354
    %vm1361 = vmor %vm1359, %vm1360
    %v1362 = vsel %vm1361, %v1354, %v1358
    %v1363 = vand.u32 2147483647, %v1353
    %vm1364 = vcmp.eq.f32.partialorder %v1363, 8.507059e+37
    %v1365 = vand.u32 %v1353, 2147483648
    %v1366 = vor.u32 1.1754944e-38, %v1365
    %v1367 = vsel %vm1364, %v1366, %v1362
    %v1368 = vmul.f32 1.0, %v1367
    %v1369 = vadd.f32 %v1326, %v396
    %v1370 = vmul.f32 %v1349, %v1369
    %v1371 = vadd.f32 %v1283, %v1370
    %v1372 = vtanh.pop %v1371
    %v1373 = vsub.f32 1.0, %v1368
    %v1374 = vmul.f32 %v1373, %v1372
    %v1375 = vmul.f32 %v1368, %v1152
    %v1376 = vadd.f32 %v1374, %v1375
    %v1377 = vld [vmem:[#allocation2 + $0x60] sm:$0xff]
    %v1378 = vld [vmem:[#allocation2 + $0x68] sm:$0xff]
    %v1379 = vld [vmem:[#allocation2 + $0x70] sm:$0xff]
    %1380 = vmatpush.bf16.msra.mxu0 0
    %1381 = vmatpush.bf16.msra.mxu0 0
    %1382 = vmatpush.bf16.msra.mxu0 0
    %1383 = vmatpush.bf16.msra.mxu0 0
    %1384 = vmatpush.bf16.msra.mxu0 0
    %1385 = vmatpush.bf16.msra.mxu0 0
    %1386 = vmatpush.bf16.msra.mxu0 %v423
    %1387 = vmatpush.bf16.msra.mxu0 %v420
    %1388 = vmatmul.bf16.gmra.mxu0 %v1245
    %v1389 = vpop.f32.mrf.mxu0
    %v1390 = vadd.f32 0.0, %v1389
    %v1391 = vpop.f32.mrf.mxu0
    %1392 = vdwg.mxu0
    %1393 = vmatpush.bf16.msra.mxu0 0
    %1394 = vmatpush.bf16.msra.mxu0 0
    %1395 = vmatpush.bf16.msra.mxu0 0
    %1396 = vmatpush.bf16.msra.mxu0 0
    %1397 = vmatpush.bf16.msra.mxu0 0
    %1398 = vmatpush.bf16.msra.mxu0 0
    %1399 = vmatpush.bf16.msra.mxu0 %v424
    %1400 = vmatpush.bf16.msra.mxu0 %v421
    %1401 = vmatmul.bf16.gmra.mxu0 %v1245
    %v1402 = vpop.f32.mrf.mxu0
    %v1403 = vadd.f32 0.0, %v1402
    %v1404 = vpop.f32.mrf.mxu0
    %1405 = vdwg.mxu0
    %1406 = vmatpush.bf16.msra.mxu0 0
    %1407 = vmatpush.bf16.msra.mxu0 0
    %1408 = vmatpush.bf16.msra.mxu0 0
    %1409 = vmatpush.bf16.msra.mxu0 0
    %1410 = vmatpush.bf16.msra.mxu0 0
    %1411 = vmatpush.bf16.msra.mxu0 0
    %1412 = vmatpush.bf16.msra.mxu0 %v425
    %1413 = vmatpush.bf16.msra.mxu0 %v422
    %1414 = vmatmul.bf16.gmra.mxu0 %v1245
    %v1415 = vpop.f32.mrf.mxu0
    %v1416 = vadd.f32 0.0, %v1415
    %v1417 = vpop.f32.mrf.mxu0
    %1418 = vdwg.mxu0
    %v1419 = vadd.f32 %v1377, %v1390
    %v1420 = vadd.f32 %v1378, %v1403
    %v1421 = vxor.u32 %v1419, 2147483648
    %v1422 = vmul.f32 %v1421, 1.442695
    %v1423 = vpow.pop %v1422
    %v1424 = vadd.f32 %v1423, 1.0
    %v1425 = vrcp.pop %v1424
    %v1426 = vmul.f32 %v1424, %v1425
    %v1427 = vsub.f32 1.0, %v1426
    %v1428 = vmul.f32 %v1425, %v1427
    %v1429 = vadd.f32 %v1425, %v1428
    %vm1430 = vweird.f32 %v1424
    %vm1431 = vweird.f32 %v1425
    %vm1432 = vmor %vm1430, %vm1431
    %v1433 = vsel %vm1432, %v1425, %v1429
    %v1434 = vand.u32 2147483647, %v1424
    %vm1435 = vcmp.eq.f32.partialorder %v1434, 8.507059e+37
    %v1436 = vand.u32 %v1424, 2147483648
    %v1437 = vor.u32 1.1754944e-38, %v1436
    %v1438 = vsel %vm1435, %v1437, %v1433
    %v1439 = vmul.f32 1.0, %v1438
    %v1440 = vxor.u32 %v1420, 2147483648
    %v1441 = vmul.f32 %v1440, 1.442695
    %v1442 = vpow.pop %v1441
    %v1443 = vadd.f32 %v1442, 1.0
    %v1444 = vrcp.pop %v1443
    %v1445 = vmul.f32 %v1443, %v1444
    %v1446 = vsub.f32 1.0, %v1445
    %v1447 = vmul.f32 %v1444, %v1446
    %v1448 = vadd.f32 %v1444, %v1447
    %vm1449 = vweird.f32 %v1443
    %vm1450 = vweird.f32 %v1444
    %vm1451 = vmor %vm1449, %vm1450
    %v1452 = vsel %vm1451, %v1444, %v1448
    %v1453 = vand.u32 2147483647, %v1443
    %vm1454 = vcmp.eq.f32.partialorder %v1453, 8.507059e+37
    %v1455 = vand.u32 %v1443, 2147483648
    %v1456 = vor.u32 1.1754944e-38, %v1455
    %v1457 = vsel %vm1454, %v1456, %v1452
    %v1458 = vmul.f32 1.0, %v1457
    %v1459 = vadd.f32 %v1416, %v386
    %v1460 = vmul.f32 %v1439, %v1459
    %v1461 = vadd.f32 %v1379, %v1460
    %v1462 = vtanh.pop %v1461
    %v1463 = vsub.f32 1.0, %v1458
    %v1464 = vmul.f32 %v1463, %v1462
    %v1465 = vmul.f32 %v1458, %v1242
    %v1466 = vadd.f32 %v1464, %v1465
    %v1467 = vpack.c.bf16 %v1466, %v1466
    %v1469 = vsel %vm432, %v1467, 0
    %1471 = vmatpush.bf16.msra.mxu0 0
    %1472 = vmatpush.bf16.msra.mxu0 0
    %1473 = vmatpush.bf16.msra.mxu0 0
    %1474 = vmatpush.bf16.msra.mxu0 0
    %1475 = vmatpush.bf16.msra.mxu0 0
    %1476 = vmatpush.bf16.msra.mxu0 0
    %1477 = vmatpush.bf16.msra.mxu0 %v547
    %1478 = vmatpush.bf16.msra.mxu0 %v544
    %1479 = vmatmul.bf16.gmra.mxu0 %v1469
    %v1480 = vpop.f32.mrf.mxu0
    %v1481 = vadd.f32 %v390, %v1480
    %v1482 = vpop.f32.mrf.mxu0
    %1483 = vdwg.mxu0
    %1484 = vmatpush.bf16.msra.mxu0 0
    %1485 = vmatpush.bf16.msra.mxu0 0
    %1486 = vmatpush.bf16.msra.mxu0 0
    %1487 = vmatpush.bf16.msra.mxu0 0
    %1488 = vmatpush.bf16.msra.mxu0 0
    %1489 = vmatpush.bf16.msra.mxu0 0
    %1490 = vmatpush.bf16.msra.mxu0 %v548
    %1491 = vmatpush.bf16.msra.mxu0 %v545
    %1492 = vmatmul.bf16.gmra.mxu0 %v1469
    %v1493 = vpop.f32.mrf.mxu0
    %v1494 = vadd.f32 %v391, %v1493
    %v1495 = vpop.f32.mrf.mxu0
    %1496 = vdwg.mxu0
    %1497 = vmatpush.bf16.msra.mxu0 0
    %1498 = vmatpush.bf16.msra.mxu0 0
    %1499 = vmatpush.bf16.msra.mxu0 0
    %1500 = vmatpush.bf16.msra.mxu0 0
    %1501 = vmatpush.bf16.msra.mxu0 0
    %1502 = vmatpush.bf16.msra.mxu0 0
    %1503 = vmatpush.bf16.msra.mxu0 %v549
    %1504 = vmatpush.bf16.msra.mxu0 %v546
    %1505 = vmatmul.bf16.gmra.mxu0 %v1469
    %v1506 = vpop.f32.mrf.mxu0
    %v1507 = vadd.f32 %v392, %v1506
    %v1508 = vpop.f32.mrf.mxu0
    %1509 = vdwg.mxu0
    %v1510 = vpack.c.bf16 %v1376, %v1376
    %v1512 = vsel %vm196, %v1510, 0
    %1514 = vmatpush.bf16.msra.mxu0 0
    %1515 = vmatpush.bf16.msra.mxu0 0
    %1516 = vmatpush.bf16.msra.mxu0 0
    %1517 = vmatpush.bf16.msra.mxu0 0
    %1518 = vmatpush.bf16.msra.mxu0 0
    %1519 = vmatpush.bf16.msra.mxu0 0
    %1520 = vmatpush.bf16.msra.mxu0 0
    %1521 = vmatpush.bf16.msra.mxu0 %v610
    %1522 = vmatmul.bf16.gmra.mxu0 %v1512
    %v1523 = vpop.f32.mrf.mxu0
    %v1524 = vadd.f32 0.0, %v1523
    %v1525 = vpop.f32.mrf.mxu0
    %1526 = vdwg.mxu0
    %1527 = vmatpush.bf16.msra.mxu0 0
    %1528 = vmatpush.bf16.msra.mxu0 0
    %1529 = vmatpush.bf16.msra.mxu0 0
    %1530 = vmatpush.bf16.msra.mxu0 0
    %1531 = vmatpush.bf16.msra.mxu0 0
    %1532 = vmatpush.bf16.msra.mxu0 0
    %1533 = vmatpush.bf16.msra.mxu0 0
    %1534 = vmatpush.bf16.msra.mxu0 %v613
    %1535 = vmatmul.bf16.gmra.mxu0 %v1512
    %v1536 = vpop.f32.mrf.mxu0
    %v1537 = vadd.f32 0.0, %v1536
    %v1538 = vpop.f32.mrf.mxu0
    %1539 = vdwg.mxu0
    %1540 = vmatpush.bf16.msra.mxu0 0
    %1541 = vmatpush.bf16.msra.mxu0 0
    %1542 = vmatpush.bf16.msra.mxu0 0
    %1543 = vmatpush.bf16.msra.mxu0 0
    %1544 = vmatpush.bf16.msra.mxu0 0
    %1545 = vmatpush.bf16.msra.mxu0 0
    %1546 = vmatpush.bf16.msra.mxu0 0
    %1547 = vmatpush.bf16.msra.mxu0 %v616
    %1548 = vmatmul.bf16.gmra.mxu0 %v1512
    %v1549 = vpop.f32.mrf.mxu0
    %v1550 = vadd.f32 0.0, %v1549
    %v1551 = vpop.f32.mrf.mxu0
    %1552 = vdwg.mxu0
    %v1553 = vadd.f32 %v1481, %v1524
    %v1554 = vadd.f32 %v1494, %v1537
    %v1555 = vxor.u32 %v1553, 2147483648
    %v1556 = vmul.f32 %v1555, 1.442695
    %v1557 = vpow.pop %v1556
    %v1558 = vadd.f32 %v1557, 1.0
    %v1559 = vrcp.pop %v1558
    %v1560 = vmul.f32 %v1558, %v1559
    %v1561 = vsub.f32 1.0, %v1560
    %v1562 = vmul.f32 %v1559, %v1561
    %v1563 = vadd.f32 %v1559, %v1562
    %vm1564 = vweird.f32 %v1558
    %vm1565 = vweird.f32 %v1559
    %vm1566 = vmor %vm1564, %vm1565
    %v1567 = vsel %vm1566, %v1559, %v1563
    %v1568 = vand.u32 2147483647, %v1558
    %vm1569 = vcmp.eq.f32.partialorder %v1568, 8.507059e+37
    %v1570 = vand.u32 %v1558, 2147483648
    %v1571 = vor.u32 1.1754944e-38, %v1570
    %v1572 = vsel %vm1569, %v1571, %v1567
    %v1573 = vmul.f32 1.0, %v1572
    %v1574 = vxor.u32 %v1554, 2147483648
    %v1575 = vmul.f32 %v1574, 1.442695
    %v1576 = vpow.pop %v1575
    %v1577 = vadd.f32 %v1576, 1.0
    %v1578 = vrcp.pop %v1577
    %v1579 = vmul.f32 %v1577, %v1578
    %v1580 = vsub.f32 1.0, %v1579
    %v1581 = vmul.f32 %v1578, %v1580
    %v1582 = vadd.f32 %v1578, %v1581
    %vm1583 = vweird.f32 %v1577
    %vm1584 = vweird.f32 %v1578
    %vm1585 = vmor %vm1583, %vm1584
    %v1586 = vsel %vm1585, %v1578, %v1582
    %v1587 = vand.u32 2147483647, %v1577
    %vm1588 = vcmp.eq.f32.partialorder %v1587, 8.507059e+37
    %v1589 = vand.u32 %v1577, 2147483648
    %v1590 = vor.u32 1.1754944e-38, %v1589
    %v1591 = vsel %vm1588, %v1590, %v1586
    %v1592 = vmul.f32 1.0, %v1591
    %v1593 = vadd.f32 %v1550, %v396
    %v1594 = vmul.f32 %v1573, %v1593
    %v1595 = vadd.f32 %v1507, %v1594
    %v1596 = vtanh.pop %v1595
    %v1597 = vsub.f32 1.0, %v1592
    %v1598 = vmul.f32 %v1597, %v1596
    %v1599 = vmul.f32 %v1592, %v1376
    %v1600 = vadd.f32 %v1598, %v1599
    %v1601 = vld [vmem:[#allocation2 + $0x78] sm:$0xff]
    %v1602 = vld [vmem:[#allocation2 + $0x80] sm:$0xff]
    %v1603 = vld [vmem:[#allocation2 + $0x88] sm:$0xff]
    %1604 = vmatpush.bf16.msra.mxu0 0
    %1605 = vmatpush.bf16.msra.mxu0 0
    %1606 = vmatpush.bf16.msra.mxu0 0
    %1607 = vmatpush.bf16.msra.mxu0 0
    %1608 = vmatpush.bf16.msra.mxu0 0
    %1609 = vmatpush.bf16.msra.mxu0 0
    %1610 = vmatpush.bf16.msra.mxu0 %v423
    %1611 = vmatpush.bf16.msra.mxu0 %v420
    %1612 = vmatmul.bf16.gmra.mxu0 %v1469
    %v1613 = vpop.f32.mrf.mxu0
    %v1614 = vadd.f32 0.0, %v1613
    %v1615 = vpop.f32.mrf.mxu0
    %1616 = vdwg.mxu0
    %1617 = vmatpush.bf16.msra.mxu0 0
    %1618 = vmatpush.bf16.msra.mxu0 0
    %1619 = vmatpush.bf16.msra.mxu0 0
    %1620 = vmatpush.bf16.msra.mxu0 0
    %1621 = vmatpush.bf16.msra.mxu0 0
    %1622 = vmatpush.bf16.msra.mxu0 0
    %1623 = vmatpush.bf16.msra.mxu0 %v424
    %1624 = vmatpush.bf16.msra.mxu0 %v421
    %1625 = vmatmul.bf16.gmra.mxu0 %v1469
    %v1626 = vpop.f32.mrf.mxu0
    %v1627 = vadd.f32 0.0, %v1626
    %v1628 = vpop.f32.mrf.mxu0
    %1629 = vdwg.mxu0
    %1630 = vmatpush.bf16.msra.mxu0 0
    %1631 = vmatpush.bf16.msra.mxu0 0
    %1632 = vmatpush.bf16.msra.mxu0 0
    %1633 = vmatpush.bf16.msra.mxu0 0
    %1634 = vmatpush.bf16.msra.mxu0 0
    %1635 = vmatpush.bf16.msra.mxu0 0
    %1636 = vmatpush.bf16.msra.mxu0 %v425
    %1637 = vmatpush.bf16.msra.mxu0 %v422
    %1638 = vmatmul.bf16.gmra.mxu0 %v1469
    %v1639 = vpop.f32.mrf.mxu0
    %v1640 = vadd.f32 0.0, %v1639
    %v1641 = vpop.f32.mrf.mxu0
    %1642 = vdwg.mxu0
    %v1643 = vadd.f32 %v1601, %v1614
    %v1644 = vadd.f32 %v1602, %v1627
    %v1645 = vxor.u32 %v1643, 2147483648
    %v1646 = vmul.f32 %v1645, 1.442695
    %v1647 = vpow.pop %v1646
    %v1648 = vadd.f32 %v1647, 1.0
    %v1649 = vrcp.pop %v1648
    %v1650 = vmul.f32 %v1648, %v1649
    %v1651 = vsub.f32 1.0, %v1650
    %v1652 = vmul.f32 %v1649, %v1651
    %v1653 = vadd.f32 %v1649, %v1652
    %vm1654 = vweird.f32 %v1648
    %vm1655 = vweird.f32 %v1649
    %vm1656 = vmor %vm1654, %vm1655
    %v1657 = vsel %vm1656, %v1649, %v1653
    %v1658 = vand.u32 2147483647, %v1648
    %vm1659 = vcmp.eq.f32.partialorder %v1658, 8.507059e+37
    %v1660 = vand.u32 %v1648, 2147483648
    %v1661 = vor.u32 1.1754944e-38, %v1660
    %v1662 = vsel %vm1659, %v1661, %v1657
    %v1663 = vmul.f32 1.0, %v1662
    %v1664 = vxor.u32 %v1644, 2147483648
    %v1665 = vmul.f32 %v1664, 1.442695
    %v1666 = vpow.pop %v1665
    %v1667 = vadd.f32 %v1666, 1.0
    %v1668 = vrcp.pop %v1667
    %v1669 = vmul.f32 %v1667, %v1668
    %v1670 = vsub.f32 1.0, %v1669
    %v1671 = vmul.f32 %v1668, %v1670
    %v1672 = vadd.f32 %v1668, %v1671
    %vm1673 = vweird.f32 %v1667
    %vm1674 = vweird.f32 %v1668
    %vm1675 = vmor %vm1673, %vm1674
    %v1676 = vsel %vm1675, %v1668, %v1672
    %v1677 = vand.u32 2147483647, %v1667
    %vm1678 = vcmp.eq.f32.partialorder %v1677, 8.507059e+37
    %v1679 = vand.u32 %v1667, 2147483648
    %v1680 = vor.u32 1.1754944e-38, %v1679
    %v1681 = vsel %vm1678, %v1680, %v1676
    %v1682 = vmul.f32 1.0, %v1681
    %v1683 = vadd.f32 %v1640, %v386
    %v1684 = vmul.f32 %v1663, %v1683
    %v1685 = vadd.f32 %v1603, %v1684
    %v1686 = vtanh.pop %v1685
    %v1687 = vsub.f32 1.0, %v1682
    %v1688 = vmul.f32 %v1687, %v1686
    %v1689 = vmul.f32 %v1682, %v1466
    %v1690 = vadd.f32 %v1688, %v1689
    %v1691 = vpack.c.bf16 %v1690, %v1690
    %v1693 = vsel %vm432, %v1691, 0
    %1695 = vmatpush.bf16.msra.mxu0 0
    %1696 = vmatpush.bf16.msra.mxu0 0
    %1697 = vmatpush.bf16.msra.mxu0 0
    %1698 = vmatpush.bf16.msra.mxu0 0
    %1699 = vmatpush.bf16.msra.mxu0 0
    %1700 = vmatpush.bf16.msra.mxu0 0
    %1701 = vmatpush.bf16.msra.mxu0 %v547
    %1702 = vmatpush.bf16.msra.mxu0 %v544
    %1703 = vmatmul.bf16.gmra.mxu0 %v1693
    %v1704 = vpop.f32.mrf.mxu0
    %v1705 = vadd.f32 %v390, %v1704
    %v1706 = vpop.f32.mrf.mxu0
    %1707 = vdwg.mxu0
    %1708 = vmatpush.bf16.msra.mxu0 0
    %1709 = vmatpush.bf16.msra.mxu0 0
    %1710 = vmatpush.bf16.msra.mxu0 0
    %1711 = vmatpush.bf16.msra.mxu0 0
    %1712 = vmatpush.bf16.msra.mxu0 0
    %1713 = vmatpush.bf16.msra.mxu0 0
    %1714 = vmatpush.bf16.msra.mxu0 %v548
    %1715 = vmatpush.bf16.msra.mxu0 %v545
    %1716 = vmatmul.bf16.gmra.mxu0 %v1693
    %v1717 = vpop.f32.mrf.mxu0
    %v1718 = vadd.f32 %v391, %v1717
    %v1719 = vpop.f32.mrf.mxu0
    %1720 = vdwg.mxu0
    %1721 = vmatpush.bf16.msra.mxu0 0
    %1722 = vmatpush.bf16.msra.mxu0 0
    %1723 = vmatpush.bf16.msra.mxu0 0
    %1724 = vmatpush.bf16.msra.mxu0 0
    %1725 = vmatpush.bf16.msra.mxu0 0
    %1726 = vmatpush.bf16.msra.mxu0 0
    %1727 = vmatpush.bf16.msra.mxu0 %v549
    %1728 = vmatpush.bf16.msra.mxu0 %v546
    %1729 = vmatmul.bf16.gmra.mxu0 %v1693
    %v1730 = vpop.f32.mrf.mxu0
    %v1731 = vadd.f32 %v392, %v1730
    %v1732 = vpop.f32.mrf.mxu0
    %1733 = vdwg.mxu0
    %v1734 = vpack.c.bf16 %v1600, %v1600
    %v1736 = vsel %vm196, %v1734, 0
    %1738 = vmatpush.bf16.msra.mxu0 0
    %1739 = vmatpush.bf16.msra.mxu0 0
    %1740 = vmatpush.bf16.msra.mxu0 0
    %1741 = vmatpush.bf16.msra.mxu0 0
    %1742 = vmatpush.bf16.msra.mxu0 0
    %1743 = vmatpush.bf16.msra.mxu0 0
    %1744 = vmatpush.bf16.msra.mxu0 0
    %1745 = vmatpush.bf16.msra.mxu0 %v610
    %1746 = vmatmul.bf16.gmra.mxu0 %v1736
    %v1747 = vpop.f32.mrf.mxu0
    %v1748 = vadd.f32 0.0, %v1747
    %v1749 = vpop.f32.mrf.mxu0
    %1750 = vdwg.mxu0
    %1751 = vmatpush.bf16.msra.mxu0 0
    %1752 = vmatpush.bf16.msra.mxu0 0
    %1753 = vmatpush.bf16.msra.mxu0 0
    %1754 = vmatpush.bf16.msra.mxu0 0
    %1755 = vmatpush.bf16.msra.mxu0 0
    %1756 = vmatpush.bf16.msra.mxu0 0
    %1757 = vmatpush.bf16.msra.mxu0 0
    %1758 = vmatpush.bf16.msra.mxu0 %v613
    %1759 = vmatmul.bf16.gmra.mxu0 %v1736
    %v1760 = vpop.f32.mrf.mxu0
    %v1761 = vadd.f32 0.0, %v1760
    %v1762 = vpop.f32.mrf.mxu0
    %1763 = vdwg.mxu0
    %1764 = vmatpush.bf16.msra.mxu0 0
    %1765 = vmatpush.bf16.msra.mxu0 0
    %1766 = vmatpush.bf16.msra.mxu0 0
    %1767 = vmatpush.bf16.msra.mxu0 0
    %1768 = vmatpush.bf16.msra.mxu0 0
    %1769 = vmatpush.bf16.msra.mxu0 0
    %1770 = vmatpush.bf16.msra.mxu0 0
    %1771 = vmatpush.bf16.msra.mxu0 %v616
    %1772 = vmatmul.bf16.gmra.mxu0 %v1736
    %v1773 = vpop.f32.mrf.mxu0
    %v1774 = vadd.f32 0.0, %v1773
    %v1775 = vpop.f32.mrf.mxu0
    %1776 = vdwg.mxu0
    %v1777 = vadd.f32 %v1705, %v1748
    %v1778 = vadd.f32 %v1718, %v1761
    %v1779 = vxor.u32 %v1777, 2147483648
    %v1780 = vmul.f32 %v1779, 1.442695
    %v1781 = vpow.pop %v1780
    %v1782 = vadd.f32 %v1781, 1.0
    %v1783 = vrcp.pop %v1782
    %v1784 = vmul.f32 %v1782, %v1783
    %v1785 = vsub.f32 1.0, %v1784
    %v1786 = vmul.f32 %v1783, %v1785
    %v1787 = vadd.f32 %v1783, %v1786
    %vm1788 = vweird.f32 %v1782
    %vm1789 = vweird.f32 %v1783
    %vm1790 = vmor %vm1788, %vm1789
    %v1791 = vsel %vm1790, %v1783, %v1787
    %v1792 = vand.u32 2147483647, %v1782
    %vm1793 = vcmp.eq.f32.partialorder %v1792, 8.507059e+37
    %v1794 = vand.u32 %v1782, 2147483648
    %v1795 = vor.u32 1.1754944e-38, %v1794
    %v1796 = vsel %vm1793, %v1795, %v1791
    %v1797 = vmul.f32 1.0, %v1796
    %v1798 = vxor.u32 %v1778, 2147483648
    %v1799 = vmul.f32 %v1798, 1.442695
    %v1800 = vpow.pop %v1799
    %v1801 = vadd.f32 %v1800, 1.0
    %v1802 = vrcp.pop %v1801
    %v1803 = vmul.f32 %v1801, %v1802
    %v1804 = vsub.f32 1.0, %v1803
    %v1805 = vmul.f32 %v1802, %v1804
    %v1806 = vadd.f32 %v1802, %v1805
    %vm1807 = vweird.f32 %v1801
    %vm1808 = vweird.f32 %v1802
    %vm1809 = vmor %vm1807, %vm1808
    %v1810 = vsel %vm1809, %v1802, %v1806
    %v1811 = vand.u32 2147483647, %v1801
    %vm1812 = vcmp.eq.f32.partialorder %v1811, 8.507059e+37
    %v1813 = vand.u32 %v1801, 2147483648
    %v1814 = vor.u32 1.1754944e-38, %v1813
    %v1815 = vsel %vm1812, %v1814, %v1810
    %v1816 = vmul.f32 1.0, %v1815
    %v1817 = vadd.f32 %v1774, %v396
    %v1818 = vmul.f32 %v1797, %v1817
    %v1819 = vadd.f32 %v1731, %v1818
    %v1820 = vtanh.pop %v1819
    %v1821 = vsub.f32 1.0, %v1816
    %v1822 = vmul.f32 %v1821, %v1820
    %v1823 = vmul.f32 %v1816, %v1600
    %v1824 = vadd.f32 %v1822, %v1823
    %v1825 = vld [vmem:[#allocation2 + $0x90] sm:$0xff]
    %v1826 = vld [vmem:[#allocation2 + $0x98] sm:$0xff]
    %v1827 = vld [vmem:[#allocation2 + $0xa0] sm:$0xff]
    %1828 = vmatpush.bf16.msra.mxu0 0
    %1829 = vmatpush.bf16.msra.mxu0 0
    %1830 = vmatpush.bf16.msra.mxu0 0
    %1831 = vmatpush.bf16.msra.mxu0 0
    %1832 = vmatpush.bf16.msra.mxu0 0
    %1833 = vmatpush.bf16.msra.mxu0 0
    %1834 = vmatpush.bf16.msra.mxu0 %v423
    %1835 = vmatpush.bf16.msra.mxu0 %v420
    %1836 = vmatmul.bf16.gmra.mxu0 %v1693
    %v1837 = vpop.f32.mrf.mxu0
    %v1838 = vadd.f32 0.0, %v1837
    %v1839 = vpop.f32.mrf.mxu0
    %1840 = vdwg.mxu0
    %1841 = vmatpush.bf16.msra.mxu0 0
    %1842 = vmatpush.bf16.msra.mxu0 0
    %1843 = vmatpush.bf16.msra.mxu0 0
    %1844 = vmatpush.bf16.msra.mxu0 0
    %1845 = vmatpush.bf16.msra.mxu0 0
    %1846 = vmatpush.bf16.msra.mxu0 0
    %1847 = vmatpush.bf16.msra.mxu0 %v424
    %1848 = vmatpush.bf16.msra.mxu0 %v421
    %1849 = vmatmul.bf16.gmra.mxu0 %v1693
    %v1850 = vpop.f32.mrf.mxu0
    %v1851 = vadd.f32 0.0, %v1850
    %v1852 = vpop.f32.mrf.mxu0
    %1853 = vdwg.mxu0
    %1854 = vmatpush.bf16.msra.mxu0 0
    %1855 = vmatpush.bf16.msra.mxu0 0
    %1856 = vmatpush.bf16.msra.mxu0 0
    %1857 = vmatpush.bf16.msra.mxu0 0
    %1858 = vmatpush.bf16.msra.mxu0 0
    %1859 = vmatpush.bf16.msra.mxu0 0
    %1860 = vmatpush.bf16.msra.mxu0 %v425
    %1861 = vmatpush.bf16.msra.mxu0 %v422
    %1862 = vmatmul.bf16.gmra.mxu0 %v1693
    %v1863 = vpop.f32.mrf.mxu0
    %v1864 = vadd.f32 0.0, %v1863
    %v1865 = vpop.f32.mrf.mxu0
    %1866 = vdwg.mxu0
    %v1867 = vadd.f32 %v1825, %v1838
    %v1868 = vadd.f32 %v1826, %v1851
    %v1869 = vxor.u32 %v1867, 2147483648
    %v1870 = vmul.f32 %v1869, 1.442695
    %v1871 = vpow.pop %v1870
    %v1872 = vadd.f32 %v1871, 1.0
    %v1873 = vrcp.pop %v1872
    %v1874 = vmul.f32 %v1872, %v1873
    %v1875 = vsub.f32 1.0, %v1874
    %v1876 = vmul.f32 %v1873, %v1875
    %v1877 = vadd.f32 %v1873, %v1876
    %vm1878 = vweird.f32 %v1872
    %vm1879 = vweird.f32 %v1873
    %vm1880 = vmor %vm1878, %vm1879
    %v1881 = vsel %vm1880, %v1873, %v1877
    %v1882 = vand.u32 2147483647, %v1872
    %vm1883 = vcmp.eq.f32.partialorder %v1882, 8.507059e+37
    %v1884 = vand.u32 %v1872, 2147483648
    %v1885 = vor.u32 1.1754944e-38, %v1884
    %v1886 = vsel %vm1883, %v1885, %v1881
    %v1887 = vmul.f32 1.0, %v1886
    %v1888 = vxor.u32 %v1868, 2147483648
    %v1889 = vmul.f32 %v1888, 1.442695
    %v1890 = vpow.pop %v1889
    %v1891 = vadd.f32 %v1890, 1.0
    %v1892 = vrcp.pop %v1891
    %v1893 = vmul.f32 %v1891, %v1892
    %v1894 = vsub.f32 1.0, %v1893
    %v1895 = vmul.f32 %v1892, %v1894
    %v1896 = vadd.f32 %v1892, %v1895
    %vm1897 = vweird.f32 %v1891
    %vm1898 = vweird.f32 %v1892
    %vm1899 = vmor %vm1897, %vm1898
    %v1900 = vsel %vm1899, %v1892, %v1896
    %v1901 = vand.u32 2147483647, %v1891
    %vm1902 = vcmp.eq.f32.partialorder %v1901, 8.507059e+37
    %v1903 = vand.u32 %v1891, 2147483648
    %v1904 = vor.u32 1.1754944e-38, %v1903
    %v1905 = vsel %vm1902, %v1904, %v1900
    %v1906 = vmul.f32 1.0, %v1905
    %v1907 = vadd.f32 %v1864, %v386
    %v1908 = vmul.f32 %v1887, %v1907
    %v1909 = vadd.f32 %v1827, %v1908
    %v1910 = vtanh.pop %v1909
    %v1911 = vsub.f32 1.0, %v1906
    %v1912 = vmul.f32 %v1911, %v1910
    %v1913 = vmul.f32 %v1906, %v1690
    %v1914 = vadd.f32 %v1912, %v1913
    %v1915 = vpack.c.bf16 %v1914, %v1914
    %v1917 = vsel %vm432, %v1915, 0
    %1919 = vmatpush.bf16.msra.mxu0 0
    %1920 = vmatpush.bf16.msra.mxu0 0
    %1921 = vmatpush.bf16.msra.mxu0 0
    %1922 = vmatpush.bf16.msra.mxu0 0
    %1923 = vmatpush.bf16.msra.mxu0 0
    %1924 = vmatpush.bf16.msra.mxu0 0
    %1925 = vmatpush.bf16.msra.mxu0 %v547
    %1926 = vmatpush.bf16.msra.mxu0 %v544
    %1927 = vmatmul.bf16.gmra.mxu0 %v1917
    %v1928 = vpop.f32.mrf.mxu0
    %v1929 = vadd.f32 %v390, %v1928
    %v1930 = vpop.f32.mrf.mxu0
    %1931 = vdwg.mxu0
    %1932 = vmatpush.bf16.msra.mxu0 0
    %1933 = vmatpush.bf16.msra.mxu0 0
    %1934 = vmatpush.bf16.msra.mxu0 0
    %1935 = vmatpush.bf16.msra.mxu0 0
    %1936 = vmatpush.bf16.msra.mxu0 0
    %1937 = vmatpush.bf16.msra.mxu0 0
    %1938 = vmatpush.bf16.msra.mxu0 %v548
    %1939 = vmatpush.bf16.msra.mxu0 %v545
    %1940 = vmatmul.bf16.gmra.mxu0 %v1917
    %v1941 = vpop.f32.mrf.mxu0
    %v1942 = vadd.f32 %v391, %v1941
    %v1943 = vpop.f32.mrf.mxu0
    %1944 = vdwg.mxu0
    %1945 = vmatpush.bf16.msra.mxu0 0
    %1946 = vmatpush.bf16.msra.mxu0 0
    %1947 = vmatpush.bf16.msra.mxu0 0
    %1948 = vmatpush.bf16.msra.mxu0 0
    %1949 = vmatpush.bf16.msra.mxu0 0
    %1950 = vmatpush.bf16.msra.mxu0 0
    %1951 = vmatpush.bf16.msra.mxu0 %v549
    %1952 = vmatpush.bf16.msra.mxu0 %v546
    %1953 = vmatmul.bf16.gmra.mxu0 %v1917
    %v1954 = vpop.f32.mrf.mxu0
    %v1955 = vadd.f32 %v392, %v1954
    %v1956 = vpop.f32.mrf.mxu0
    %1957 = vdwg.mxu0
    %v1958 = vpack.c.bf16 %v1824, %v1824
    %v1960 = vsel %vm196, %v1958, 0
    %1962 = vmatpush.bf16.msra.mxu0 0
    %1963 = vmatpush.bf16.msra.mxu0 0
    %1964 = vmatpush.bf16.msra.mxu0 0
    %1965 = vmatpush.bf16.msra.mxu0 0
    %1966 = vmatpush.bf16.msra.mxu0 0
    %1967 = vmatpush.bf16.msra.mxu0 0
    %1968 = vmatpush.bf16.msra.mxu0 0
    %1969 = vmatpush.bf16.msra.mxu0 %v610
    %1970 = vmatmul.bf16.gmra.mxu0 %v1960
    %v1971 = vpop.f32.mrf.mxu0
    %v1972 = vadd.f32 0.0, %v1971
    %v1973 = vpop.f32.mrf.mxu0
    %1974 = vdwg.mxu0
    %1975 = vmatpush.bf16.msra.mxu0 0
    %1976 = vmatpush.bf16.msra.mxu0 0
    %1977 = vmatpush.bf16.msra.mxu0 0
    %1978 = vmatpush.bf16.msra.mxu0 0
    %1979 = vmatpush.bf16.msra.mxu0 0
    %1980 = vmatpush.bf16.msra.mxu0 0
    %1981 = vmatpush.bf16.msra.mxu0 0
    %1982 = vmatpush.bf16.msra.mxu0 %v613
    %1983 = vmatmul.bf16.gmra.mxu0 %v1960
    %v1984 = vpop.f32.mrf.mxu0
    %v1985 = vadd.f32 0.0, %v1984
    %v1986 = vpop.f32.mrf.mxu0
    %1987 = vdwg.mxu0
    %1988 = vmatpush.bf16.msra.mxu0 0
    %1989 = vmatpush.bf16.msra.mxu0 0
    %1990 = vmatpush.bf16.msra.mxu0 0
    %1991 = vmatpush.bf16.msra.mxu0 0
    %1992 = vmatpush.bf16.msra.mxu0 0
    %1993 = vmatpush.bf16.msra.mxu0 0
    %1994 = vmatpush.bf16.msra.mxu0 0
    %1995 = vmatpush.bf16.msra.mxu0 %v616
    %1996 = vmatmul.bf16.gmra.mxu0 %v1960
    %v1997 = vpop.f32.mrf.mxu0
    %v1998 = vadd.f32 0.0, %v1997
    %v1999 = vpop.f32.mrf.mxu0
    %2000 = vdwg.mxu0
    %v2001 = vadd.f32 %v1929, %v1972
    %v2002 = vadd.f32 %v1942, %v1985
    %v2003 = vxor.u32 %v2001, 2147483648
    %v2004 = vmul.f32 %v2003, 1.442695
    %v2005 = vpow.pop %v2004
    %v2006 = vadd.f32 %v2005, 1.0
    %v2007 = vrcp.pop %v2006
    %v2008 = vmul.f32 %v2006, %v2007
    %v2009 = vsub.f32 1.0, %v2008
    %v2010 = vmul.f32 %v2007, %v2009
    %v2011 = vadd.f32 %v2007, %v2010
    %vm2012 = vweird.f32 %v2006
    %vm2013 = vweird.f32 %v2007
    %vm2014 = vmor %vm2012, %vm2013
    %v2015 = vsel %vm2014, %v2007, %v2011
    %v2016 = vand.u32 2147483647, %v2006
    %vm2017 = vcmp.eq.f32.partialorder %v2016, 8.507059e+37
    %v2018 = vand.u32 %v2006, 2147483648
    %v2019 = vor.u32 1.1754944e-38, %v2018
    %v2020 = vsel %vm2017, %v2019, %v2015
    %v2021 = vmul.f32 1.0, %v2020
    %v2022 = vxor.u32 %v2002, 2147483648
    %v2023 = vmul.f32 %v2022, 1.442695
    %v2024 = vpow.pop %v2023
    %v2025 = vadd.f32 %v2024, 1.0
    %v2026 = vrcp.pop %v2025
    %v2027 = vmul.f32 %v2025, %v2026
    %v2028 = vsub.f32 1.0, %v2027
    %v2029 = vmul.f32 %v2026, %v2028
    %v2030 = vadd.f32 %v2026, %v2029
    %vm2031 = vweird.f32 %v2025
    %vm2032 = vweird.f32 %v2026
    %vm2033 = vmor %vm2031, %vm2032
    %v2034 = vsel %vm2033, %v2026, %v2030
    %v2035 = vand.u32 2147483647, %v2025
    %vm2036 = vcmp.eq.f32.partialorder %v2035, 8.507059e+37
    %v2037 = vand.u32 %v2025, 2147483648
    %v2038 = vor.u32 1.1754944e-38, %v2037
    %v2039 = vsel %vm2036, %v2038, %v2034
    %v2040 = vmul.f32 1.0, %v2039
    %v2041 = vadd.f32 %v1998, %v396
    %v2042 = vmul.f32 %v2021, %v2041
    %v2043 = vadd.f32 %v1955, %v2042
    %v2044 = vtanh.pop %v2043
    %v2045 = vsub.f32 1.0, %v2040
    %v2046 = vmul.f32 %v2045, %v2044
    %v2047 = vmul.f32 %v2040, %v1824
    %v2048 = vadd.f32 %v2046, %v2047
    %v2049 = vld [vmem:[#allocation2 + $0xa8] sm:$0xff]
    %v2050 = vld [vmem:[#allocation2 + $0xb0] sm:$0xff]
    %v2051 = vld [vmem:[#allocation2 + $0xb8] sm:$0xff]
    %2052 = vmatpush.bf16.msra.mxu0 0
    %2053 = vmatpush.bf16.msra.mxu0 0
    %2054 = vmatpush.bf16.msra.mxu0 0
    %2055 = vmatpush.bf16.msra.mxu0 0
    %2056 = vmatpush.bf16.msra.mxu0 0
    %2057 = vmatpush.bf16.msra.mxu0 0
    %2058 = vmatpush.bf16.msra.mxu0 %v423
    %2059 = vmatpush.bf16.msra.mxu0 %v420
    %2060 = vmatmul.bf16.gmra.mxu0 %v1917
    %v2061 = vpop.f32.mrf.mxu0
    %v2062 = vadd.f32 0.0, %v2061
    %v2063 = vpop.f32.mrf.mxu0
    %2064 = vdwg.mxu0
    %2065 = vmatpush.bf16.msra.mxu0 0
    %2066 = vmatpush.bf16.msra.mxu0 0
    %2067 = vmatpush.bf16.msra.mxu0 0
    %2068 = vmatpush.bf16.msra.mxu0 0
    %2069 = vmatpush.bf16.msra.mxu0 0
    %2070 = vmatpush.bf16.msra.mxu0 0
    %2071 = vmatpush.bf16.msra.mxu0 %v424
    %2072 = vmatpush.bf16.msra.mxu0 %v421
    %2073 = vmatmul.bf16.gmra.mxu0 %v1917
    %v2074 = vpop.f32.mrf.mxu0
    %v2075 = vadd.f32 0.0, %v2074
    %v2076 = vpop.f32.mrf.mxu0
    %2077 = vdwg.mxu0
    %2078 = vmatpush.bf16.msra.mxu0 0
    %2079 = vmatpush.bf16.msra.mxu0 0
    %2080 = vmatpush.bf16.msra.mxu0 0
    %2081 = vmatpush.bf16.msra.mxu0 0
    %2082 = vmatpush.bf16.msra.mxu0 0
    %2083 = vmatpush.bf16.msra.mxu0 0
    %2084 = vmatpush.bf16.msra.mxu0 %v425
    %2085 = vmatpush.bf16.msra.mxu0 %v422
    %2086 = vmatmul.bf16.gmra.mxu0 %v1917
    %v2087 = vpop.f32.mrf.mxu0
    %v2088 = vadd.f32 0.0, %v2087
    %v2089 = vpop.f32.mrf.mxu0
    %2090 = vdwg.mxu0
    %v2091 = vadd.f32 %v2049, %v2062
    %v2092 = vadd.f32 %v2050, %v2075
    %v2093 = vxor.u32 %v2091, 2147483648
    %v2094 = vmul.f32 %v2093, 1.442695
    %v2095 = vpow.pop %v2094
    %v2096 = vadd.f32 %v2095, 1.0
    %v2097 = vrcp.pop %v2096
    %v2098 = vmul.f32 %v2096, %v2097
    %v2099 = vsub.f32 1.0, %v2098
    %v2100 = vmul.f32 %v2097, %v2099
    %v2101 = vadd.f32 %v2097, %v2100
    %vm2102 = vweird.f32 %v2096
    %vm2103 = vweird.f32 %v2097
    %vm2104 = vmor %vm2102, %vm2103
    %v2105 = vsel %vm2104, %v2097, %v2101
    %v2106 = vand.u32 2147483647, %v2096
    %vm2107 = vcmp.eq.f32.partialorder %v2106, 8.507059e+37
    %v2108 = vand.u32 %v2096, 2147483648
    %v2109 = vor.u32 1.1754944e-38, %v2108
    %v2110 = vsel %vm2107, %v2109, %v2105
    %v2111 = vmul.f32 1.0, %v2110
    %v2112 = vxor.u32 %v2092, 2147483648
    %v2113 = vmul.f32 %v2112, 1.442695
    %v2114 = vpow.pop %v2113
    %v2115 = vadd.f32 %v2114, 1.0
    %v2116 = vrcp.pop %v2115
    %v2117 = vmul.f32 %v2115, %v2116
    %v2118 = vsub.f32 1.0, %v2117
    %v2119 = vmul.f32 %v2116, %v2118
    %v2120 = vadd.f32 %v2116, %v2119
    %vm2121 = vweird.f32 %v2115
    %vm2122 = vweird.f32 %v2116
    %vm2123 = vmor %vm2121, %vm2122
    %v2124 = vsel %vm2123, %v2116, %v2120
    %v2125 = vand.u32 2147483647, %v2115
    %vm2126 = vcmp.eq.f32.partialorder %v2125, 8.507059e+37
    %v2127 = vand.u32 %v2115, 2147483648
    %v2128 = vor.u32 1.1754944e-38, %v2127
    %v2129 = vsel %vm2126, %v2128, %v2124
    %v2130 = vmul.f32 1.0, %v2129
    %v2131 = vadd.f32 %v2088, %v386
    %v2132 = vmul.f32 %v2111, %v2131
    %v2133 = vadd.f32 %v2051, %v2132
    %v2134 = vtanh.pop %v2133
    %v2135 = vsub.f32 1.0, %v2130
    %v2136 = vmul.f32 %v2135, %v2134
    %v2137 = vmul.f32 %v2130, %v1914
    %v2138 = vadd.f32 %v2136, %v2137
    %v2139 = vpack.c.bf16 %v2138, %v2138
    %v2141 = vsel %vm432, %v2139, 0
    %2143 = vmatpush.bf16.msra.mxu0 0
    %2144 = vmatpush.bf16.msra.mxu0 0
    %2145 = vmatpush.bf16.msra.mxu0 0
    %2146 = vmatpush.bf16.msra.mxu0 0
    %2147 = vmatpush.bf16.msra.mxu0 0
    %2148 = vmatpush.bf16.msra.mxu0 0
    %2149 = vmatpush.bf16.msra.mxu0 %v547
    %2150 = vmatpush.bf16.msra.mxu0 %v544
    %2151 = vmatmul.bf16.gmra.mxu0 %v2141
    %v2152 = vpop.f32.mrf.mxu0
    %v2153 = vadd.f32 %v390, %v2152
    %v2154 = vpop.f32.mrf.mxu0
    %2155 = vdwg.mxu0
    %2156 = vmatpush.bf16.msra.mxu0 0
    %2157 = vmatpush.bf16.msra.mxu0 0
    %2158 = vmatpush.bf16.msra.mxu0 0
    %2159 = vmatpush.bf16.msra.mxu0 0
    %2160 = vmatpush.bf16.msra.mxu0 0
    %2161 = vmatpush.bf16.msra.mxu0 0
    %2162 = vmatpush.bf16.msra.mxu0 %v548
    %2163 = vmatpush.bf16.msra.mxu0 %v545
    %2164 = vmatmul.bf16.gmra.mxu0 %v2141
    %v2165 = vpop.f32.mrf.mxu0
    %v2166 = vadd.f32 %v391, %v2165
    %v2167 = vpop.f32.mrf.mxu0
    %2168 = vdwg.mxu0
    %2169 = vmatpush.bf16.msra.mxu0 0
    %2170 = vmatpush.bf16.msra.mxu0 0
    %2171 = vmatpush.bf16.msra.mxu0 0
    %2172 = vmatpush.bf16.msra.mxu0 0
    %2173 = vmatpush.bf16.msra.mxu0 0
    %2174 = vmatpush.bf16.msra.mxu0 0
    %2175 = vmatpush.bf16.msra.mxu0 %v549
    %2176 = vmatpush.bf16.msra.mxu0 %v546
    %2177 = vmatmul.bf16.gmra.mxu0 %v2141
    %v2178 = vpop.f32.mrf.mxu0
    %v2179 = vadd.f32 %v392, %v2178
    %v2180 = vpop.f32.mrf.mxu0
    %2181 = vdwg.mxu0
    %v2182 = vpack.c.bf16 %v2048, %v2048
    %v2184 = vsel %vm196, %v2182, 0
    %2186 = vmatpush.bf16.msra.mxu0 0
    %2187 = vmatpush.bf16.msra.mxu0 0
    %2188 = vmatpush.bf16.msra.mxu0 0
    %2189 = vmatpush.bf16.msra.mxu0 0
    %2190 = vmatpush.bf16.msra.mxu0 0
    %2191 = vmatpush.bf16.msra.mxu0 0
    %2192 = vmatpush.bf16.msra.mxu0 0
    %2193 = vmatpush.bf16.msra.mxu0 %v610
    %2194 = vmatmul.bf16.gmra.mxu0 %v2184
    %v2195 = vpop.f32.mrf.mxu0
    %v2196 = vadd.f32 0.0, %v2195
    %v2197 = vpop.f32.mrf.mxu0
    %2198 = vdwg.mxu0
    %2199 = vmatpush.bf16.msra.mxu0 0
    %2200 = vmatpush.bf16.msra.mxu0 0
    %2201 = vmatpush.bf16.msra.mxu0 0
    %2202 = vmatpush.bf16.msra.mxu0 0
    %2203 = vmatpush.bf16.msra.mxu0 0
    %2204 = vmatpush.bf16.msra.mxu0 0
    %2205 = vmatpush.bf16.msra.mxu0 0
    %2206 = vmatpush.bf16.msra.mxu0 %v613
    %2207 = vmatmul.bf16.gmra.mxu0 %v2184
    %v2208 = vpop.f32.mrf.mxu0
    %v2209 = vadd.f32 0.0, %v2208
    %v2210 = vpop.f32.mrf.mxu0
    %2211 = vdwg.mxu0
    %2212 = vmatpush.bf16.msra.mxu0 0
    %2213 = vmatpush.bf16.msra.mxu0 0
    %2214 = vmatpush.bf16.msra.mxu0 0
    %2215 = vmatpush.bf16.msra.mxu0 0
    %2216 = vmatpush.bf16.msra.mxu0 0
    %2217 = vmatpush.bf16.msra.mxu0 0
    %2218 = vmatpush.bf16.msra.mxu0 0
    %2219 = vmatpush.bf16.msra.mxu0 %v616
    %2220 = vmatmul.bf16.gmra.mxu0 %v2184
    %v2221 = vpop.f32.mrf.mxu0
    %v2222 = vadd.f32 0.0, %v2221
    %v2223 = vpop.f32.mrf.mxu0
    %2224 = vdwg.mxu0
    %v2225 = vadd.f32 %v2153, %v2196
    %v2226 = vadd.f32 %v2166, %v2209
    %v2227 = vxor.u32 %v2225, 2147483648
    %v2228 = vmul.f32 %v2227, 1.442695
    %v2229 = vpow.pop %v2228
    %v2230 = vadd.f32 %v2229, 1.0
    %v2231 = vrcp.pop %v2230
    %v2232 = vmul.f32 %v2230, %v2231
    %v2233 = vsub.f32 1.0, %v2232
    %v2234 = vmul.f32 %v2231, %v2233
    %v2235 = vadd.f32 %v2231, %v2234
    %vm2236 = vweird.f32 %v2230
    %vm2237 = vweird.f32 %v2231
    %vm2238 = vmor %vm2236, %vm2237
    %v2239 = vsel %vm2238, %v2231, %v2235
    %v2240 = vand.u32 2147483647, %v2230
    %vm2241 = vcmp.eq.f32.partialorder %v2240, 8.507059e+37
    %v2242 = vand.u32 %v2230, 2147483648
    %v2243 = vor.u32 1.1754944e-38, %v2242
    %v2244 = vsel %vm2241, %v2243, %v2239
    %v2245 = vmul.f32 1.0, %v2244
    %v2246 = vxor.u32 %v2226, 2147483648
    %v2247 = vmul.f32 %v2246, 1.442695
    %v2248 = vpow.pop %v2247
    %v2249 = vadd.f32 %v2248, 1.0
    %v2250 = vrcp.pop %v2249
    %v2251 = vmul.f32 %v2249, %v2250
    %v2252 = vsub.f32 1.0, %v2251
    %v2253 = vmul.f32 %v2250, %v2252
    %v2254 = vadd.f32 %v2250, %v2253
    %vm2255 = vweird.f32 %v2249
    %vm2256 = vweird.f32 %v2250
    %vm2257 = vmor %vm2255, %vm2256
    %v2258 = vsel %vm2257, %v2250, %v2254
    %v2259 = vand.u32 2147483647, %v2249
    %vm2260 = vcmp.eq.f32.partialorder %v2259, 8.507059e+37
    %v2261 = vand.u32 %v2249, 2147483648
    %v2262 = vor.u32 1.1754944e-38, %v2261
    %v2263 = vsel %vm2260, %v2262, %v2258
    %v2264 = vmul.f32 1.0, %v2263
    %v2265 = vadd.f32 %v2222, %v396
    %v2266 = vmul.f32 %v2245, %v2265
    %v2267 = vadd.f32 %v2179, %v2266
    %v2268 = vtanh.pop %v2267
    %v2269 = vsub.f32 1.0, %v2264
    %v2270 = vmul.f32 %v2269, %v2268
    %v2271 = vmul.f32 %v2264, %v2048
    %v2272 = vadd.f32 %v2270, %v2271
    %vm2273 = vcmask 58368
    %2274 = vst.msk [vmem:[#allocation13] sm:$0x3] %vm2273, %v2272
    // Predicated region
    $region22: #{simple_classifier_forward.2} parent=1 // pred_check
      _
    $region23: #{simple_classifier_forward.2} parent=1 // pred_check_branch
      %2276 = sbr.rel (0) target = $region25
    $region24: #{simple_classifier_forward.2} parent=1 // pred_region
      %2278 = vsyncadd [#allocation10], 0
      %s2280 = sshll.u32 [#allocation13], 4
      %s2281 = int_to_ptr.vmem [resolvable:$true] %s2280
      %s2282 = sshll.u32 %s4, 4
      %s2283 = int_to_ptr.hbm [resolvable:$true] %s2282
      %2285 = dma.vmem_to_hbm [thread:$0]  %s2281, 32, %s2283, [#allocation10]
    $region25: #{simple_classifier_forward.2} parent=1 // pred_fallthru
      _
    // Predicated region
    $region26: #{simple_classifier_forward.2} parent=1 // pred_check
      _
    $region27: #{simple_classifier_forward.2} parent=1 // pred_check_branch
      %2287 = sbr.rel (0) target = $region29
    $region28: #{simple_classifier_forward.2} parent=1 // pred_region
      %2289 = dma.done [#allocation10], 32
    $region29: #{simple_classifier_forward.2} parent=1 // pred_fallthru
      _
    %2290 = vsyncpa [#allocation9], 1
    %2291 = vsyncpa [#allocation12], 1
    %2292 = vsyncpa [#allocation10], 1

</llo_original>
